<compile_context>
chip_gen: v7x
topology: tpu7x:2x2x1
jax: 0.10.0
libtpu: 0.0.40
codegen_flags: <defaults>
</compile_context>

<pallas_src>
import functools

import jax
import jax.numpy as jnp
from jax.experimental import pallas as pl
from jax.experimental.pallas import tpu as pltpu

LANE = 128      # lane width (same on v5e / v6e / v7x)
SUBLANE = 8     # f32 sublane count


def _round_up(x, m):
    return ((x + m - 1) // m) * m


def _pad2d(a, rows, cols):
    r, c = a.shape
    return jnp.pad(a, ((0, rows - r), (0, cols - c)))


# ----------------------------- Pallas kernel --------------------------------
def _fc_encoder_kernel(n_layers, out_widths, x_ref, *refs):
    """Fused (Linear -> ReLU) x (n-1) -> Linear.

    x_ref : (TM, d_in) f32 activation tile (one batch tile per grid step);
            cast to bf16 in-kernel so the HBM stream stays 4 B/elem total.
    refs  : n_layers bf16 weight refs (VMEM-resident via constant index_map),
            one stacked f32 bias ref (n_layers, max_width), and the f32 out ref.
    """
    w_refs = refs[:n_layers]
    b_ref = refs[n_layers]
    o_ref = refs[n_layers + 1]

    # In-kernel bf16 compression of the activation tile (VPU cast, hidden
    # under the x DMA); feeds the MXU at bf16 rate with f32 accumulation.
    h = x_ref[...].astype(jnp.bfloat16)
    for l in range(n_layers):
        wl = out_widths[l]
        z = jnp.dot(h, w_refs[l][...], preferred_element_type=jnp.float32)
        z = z + b_ref[l:l + 1, :wl]                        # f32 bias epilogue
        if l < n_layers - 1:
            h = jnp.maximum(z, 0.0).astype(jnp.bfloat16)   # ReLU, recompress
        else:
            o_ref[...] = z.astype(o_ref.dtype)             # final Linear


# --------------------- one-time parameter preparation ------------------------
def prepare_params(params):
    """Hoisted out of the forward path: pad/cast weights & biases exactly once.

    params: list of (W:(in,out) f32, b:(1,out) f32), as in the PyTorch module.
    Only the FINAL layer's output width is lane-padded to 128 (unmasked output
    store); hidden widths stay unpadded (4x less W1 traffic, same MXU cycles).
    """
    d_in = params[0][0].shape[0]
    out_dims = [w.shape[1] for w, _ in params]
    out_widths = out_dims[:-1] + [_round_up(out_dims[-1], LANE)]
    in_widths = [d_in] + out_widths[:-1]
    max_w = max(out_widths)

    wks = tuple(
        _pad2d(w, iw, ow).astype(jnp.bfloat16)
        for (w, _), iw, ow in zip(params, in_widths, out_widths)
    )
    bks = jnp.stack(
        [jnp.pad(b.reshape(-1), (0, max_w - b.shape[-1])) for _, b in params]
    ).astype(jnp.float32)

    return {
        "wks": wks,
        "bks": bks,
        "out_widths": tuple(out_widths),
        "in_widths": tuple(in_widths),
        "out_dim": out_dims[-1],
        "d_in": d_in,
    }


# --------------------------- tiling / VMEM budget ----------------------------
def _vmem_needed(tm, d_in, out_pad, w_bytes):
    x_tiles = 2 * tm * d_in * 4        # f32 x tile, double-buffered pipeline
    x_bf16 = tm * d_in * 2             # in-kernel bf16 copy feeding layer-1 MXU
    o_tiles = 2 * tm * out_pad * 4     # f32 output tile, double-buffered
    return x_tiles + x_bf16 + o_tiles + w_bytes + (2 << 20)   # + headroom


def _choose_tm(B, d_in, out_pad, w_bytes, vmem_cap):
    budget = int(vmem_cap) * 3 // 4
    # Prefer one full-batch block (no partial blocks, no padding) if it fits.
    if B <= 1024 and _vmem_needed(B, d_in, out_pad, w_bytes) <= budget:
        return B
    for cand in (1024, 512, 256, 128, 64, 32, 16, 8):
        if cand < B and _vmem_needed(cand, d_in, out_pad, w_bytes) <= budget:
            return cand
    return SUBLANE


# ------------------------------- forward path --------------------------------
def fc_encoder_forward(x_nchw, prepared):
    """x_nchw: (B, C, 64, 64) float32.  prepared: output of prepare_params()."""
    B = x_nchw.shape[0]
    d_in = prepared["d_in"]
    assert x_nchw.shape[1] * x_nchw.shape[2] * x_nchw.shape[3] == d_in

    wks, bks = prepared["wks"], prepared["bks"]
    out_widths = prepared["out_widths"]
    in_widths = prepared["in_widths"]
    out_pad = out_widths[-1]
    n_layers = len(wks)

    # ReshapeBlock: contiguous NCHW -> (B, C*64*64); stays f32 (no cast pass).
    x2d = x_nchw.reshape(B, d_in)

    try:
        vmem_cap = int(pltpu.get_tpu_info().vmem_capacity_bytes)
    except Exception:
        vmem_cap = 64 << 20   # conservative (v7x per-TC VMEM)

    w_bytes = sum(int(w.size) * 2 for w in wks) + int(bks.size) * 4
    tm = _choose_tm(B, d_in, out_pad, w_bytes, vmem_cap)
    grid = (pl.cdiv(B, tm),)

    needed = _vmem_needed(tm, d_in, out_pad, w_bytes)
    vmem_limit = min(int(vmem_cap), max(int(needed) + (4 << 20), 16 << 20))

    flops = 2 * B * sum(iw * ow for iw, ow in zip(in_widths, out_widths))
    bytes_accessed = int(B * d_in * 4 + w_bytes + B * out_pad * 4)

    kernel = functools.partial(_fc_encoder_kernel, n_layers, out_widths)

    in_specs = [pl.BlockSpec((tm, d_in), lambda i: (i, 0))]
    for wk in wks:   # constant index_map -> weights stay VMEM-resident
        in_specs.append(pl.BlockSpec(wk.shape, lambda i: (0, 0)))
    in_specs.append(pl.BlockSpec(bks.shape, lambda i: (0, 0)))

    out = pl.pallas_call(
        kernel,
        out_shape=jax.ShapeDtypeStruct((B, out_pad), jnp.float32),
        grid=grid,
        in_specs=in_specs,
        out_specs=pl.BlockSpec((tm, out_pad), lambda i: (i, 0)),
        compiler_params=pltpu.CompilerParams(
            dimension_semantics=("parallel",),   # batch tiles -> both TCs on v7x
            vmem_limit_bytes=int(vmem_limit)),
        cost_estimate=pl.CostEstimate(flops=int(flops), transcendentals=0,
                                      bytes_accessed=bytes_accessed),
    )(x2d, *wks, bks)

    return out[:, :prepared["out_dim"]]


# ------------------------- deterministic parameters --------------------------
def xavier_uniform(key, in_dim, out_dim):
    # nn.init.xavier_uniform_ with gain('linear') == 1; stored as (in, out).
    bound = (6.0 / (in_dim + out_dim)) ** 0.5
    return jax.random.uniform(key, (in_dim, out_dim), jnp.float32, -bound, bound)


def make_params(key, input_dim, output_dim, hidden):
    dims = [input_dim * 64 * 64] + list(hidden) + [output_dim]
    params = []
    for i, (di, do) in enumerate(zip(dims[:-1], dims[1:])):
        kw, kb = jax.random.split(jax.random.fold_in(key, i))
        w = xavier_uniform(kw, di, do)
        # nn.Linear default bias init: U(-1/sqrt(fan_in), 1/sqrt(fan_in))
        bb = 1.0 / (di ** 0.5)
        b = jax.random.uniform(kb, (1, do), jnp.float32, -bb, bb)
        params.append((w, b))
    return params


# ------------------------------- references ----------------------------------
def fc_encoder_reference(x_nchw, params):
    """Exact f32 semantics of the PyTorch module."""
    h = x_nchw.reshape(x_nchw.shape[0], -1)
    for i, (w, b) in enumerate(params):
        h = h @ w + b
        if i < len(params) - 1:
            h = jnp.maximum(h, 0.0)
    return h


def fc_encoder_reference_bf16(x_nchw, params):
    """Reference applying the same bf16 operand rounding as the kernel."""
    f32 = jnp.float32
    h = x_nchw.reshape(x_nchw.shape[0], -1).astype(jnp.bfloat16).astype(f32)
    for i, (w, b) in enumerate(params):
        z = h @ w.astype(jnp.bfloat16).astype(f32) + b
        if i < len(params) - 1:
            h = jnp.maximum(z, 0.0).astype(jnp.bfloat16).astype(f32)
        else:
            h = z
    return h


# ---------------------------------- main -------------------------------------
if __name__ == "__main__":
    key = jax.random.PRNGKey(0)
    kx, kp = jax.random.split(key)

    # Small config: 64x64 spatial is fixed by the module's ReshapeBlock.
    B, input_dim, output_dim = 2, 2, 8
    hidden = [32, 32, 32]

    x = jax.random.normal(kx, (B, input_dim, 64, 64), dtype=jnp.float32)
    params = make_params(kp, input_dim, output_dim, hidden)

    prepared = prepare_params(params)          # one-time weight prep (hoisted)
    out = jax.block_until_ready(fc_encoder_forward(x, prepared))
    assert out.shape == (B, output_dim)

    # Tight check vs a reference using the same bf16 operand quantization.
    ref_q = fc_encoder_reference_bf16(x, params)
    assert jnp.allclose(out, ref_q, atol=2e-2, rtol=2e-2), "mismatch vs bf16 reference"

    # Loose check vs exact f32 module semantics (bounds the bf16 error).
    ref = fc_encoder_reference(x, params)
    assert jnp.allclose(out, ref, atol=0.5, rtol=0.1), "mismatch vs f32 reference"

    print("KERNEL_OK")
</pallas_src>

<mosaic_0001>
module attributes {stable_mosaic.version = 11 : i64} {
  func.func @_fc_encoder_kernel(%arg0: i32, %arg1: memref<2x8192xf32, #tpu.memory_space<vmem>>, %arg2: memref<8192x32xbf16, #tpu.memory_space<vmem>>, %arg3: memref<32x32xbf16, #tpu.memory_space<vmem>>, %arg4: memref<32x32xbf16, #tpu.memory_space<vmem>>, %arg5: memref<32x128xbf16, #tpu.memory_space<vmem>>, %arg6: memref<4x128xf32, #tpu.memory_space<vmem>>, %arg7: memref<2x128xf32, #tpu.memory_space<vmem>>) attributes {dimension_semantics = [#tpu.dimension_semantics<parallel>], iteration_bounds = array<i64: 1>, scalar_prefetch = 0 : i64, scratch_operands = 0 : i64, tpu.core_type = #tpu.core_type<tc>, window_params = [{transform_indices = @transform_0, window_bounds = array<i64: 2, 8192>}, {pipeline_mode = #tpu.pipeline_mode<synchronous>, transform_indices = @transform_1, window_bounds = array<i64: 8192, 32>}, {pipeline_mode = #tpu.pipeline_mode<synchronous>, transform_indices = @transform_2, window_bounds = array<i64: 32, 32>}, {pipeline_mode = #tpu.pipeline_mode<synchronous>, transform_indices = @transform_3, window_bounds = array<i64: 32, 32>}, {pipeline_mode = #tpu.pipeline_mode<synchronous>, transform_indices = @transform_4, window_bounds = array<i64: 32, 128>}, {pipeline_mode = #tpu.pipeline_mode<synchronous>, transform_indices = @transform_5, window_bounds = array<i64: 4, 128>}, {transform_indices = @transform_6, window_bounds = array<i64: 2, 128>}]} {
    %c0 = arith.constant 0 : index
    %c0_0 = arith.constant 0 : index
    %0 = vector.load %arg1[%c0, %c0_0] : memref<2x8192xf32, #tpu.memory_space<vmem>>, vector<2x8192xf32>
    %1 = arith.truncf %0 : vector<2x8192xf32> to vector<2x8192xbf16>
    %c0_1 = arith.constant 0 : index
    %c0_2 = arith.constant 0 : index
    %2 = vector.load %arg2[%c0_1, %c0_2] : memref<8192x32xbf16, #tpu.memory_space<vmem>>, vector<8192x32xbf16>
    %cst = arith.constant dense<0.000000e+00> : vector<2x32xf32>
    %3 = tpu.matmul %1, %2, %cst {dimension_numbers = #tpu.dot_dimension_numbers<[1], [0], [0], [1], [0, 0, 1, 1], [], []>} : vector<2x8192xbf16>, vector<8192x32xbf16>, vector<2x32xf32> -> vector<2x32xf32>
    %c0_3 = arith.constant 0 : index
    %c0_4 = arith.constant 0 : index
    %4 = vector.load %arg6[%c0_3, %c0_4] : memref<4x128xf32, #tpu.memory_space<vmem>>, vector<1x32xf32>
    %5 = vector.broadcast %4 : vector<1x32xf32> to vector<2x32xf32>
    %6 = arith.addf %3, %5 : vector<2x32xf32>
    %cst_5 = arith.constant 0.000000e+00 : f32
    %7 = vector.broadcast %cst_5 : f32 to vector<2x32xf32>
    %8 = arith.maximumf %6, %7 : vector<2x32xf32>
    %9 = arith.truncf %8 : vector<2x32xf32> to vector<2x32xbf16>
    %c0_6 = arith.constant 0 : index
    %c0_7 = arith.constant 0 : index
    %10 = vector.load %arg3[%c0_6, %c0_7] : memref<32x32xbf16, #tpu.memory_space<vmem>>, vector<32x32xbf16>
    %cst_8 = arith.constant dense<0.000000e+00> : vector<2x32xf32>
    %11 = tpu.matmul %9, %10, %cst_8 {dimension_numbers = #tpu.dot_dimension_numbers<[1], [0], [0], [1], [0, 0, 1, 1], [], []>} : vector<2x32xbf16>, vector<32x32xbf16>, vector<2x32xf32> -> vector<2x32xf32>
    %c1 = arith.constant 1 : index
    %c0_9 = arith.constant 0 : index
    %12 = vector.load %arg6[%c1, %c0_9] : memref<4x128xf32, #tpu.memory_space<vmem>>, vector<1x32xf32>
    %13 = vector.broadcast %12 : vector<1x32xf32> to vector<2x32xf32>
    %14 = arith.addf %11, %13 : vector<2x32xf32>
    %cst_10 = arith.constant 0.000000e+00 : f32
    %15 = vector.broadcast %cst_10 : f32 to vector<2x32xf32>
    %16 = arith.maximumf %14, %15 : vector<2x32xf32>
    %17 = arith.truncf %16 : vector<2x32xf32> to vector<2x32xbf16>
    %c0_11 = arith.constant 0 : index
    %c0_12 = arith.constant 0 : index
    %18 = vector.load %arg4[%c0_11, %c0_12] : memref<32x32xbf16, #tpu.memory_space<vmem>>, vector<32x32xbf16>
    %cst_13 = arith.constant dense<0.000000e+00> : vector<2x32xf32>
    %19 = tpu.matmul %17, %18, %cst_13 {dimension_numbers = #tpu.dot_dimension_numbers<[1], [0], [0], [1], [0, 0, 1, 1], [], []>} : vector<2x32xbf16>, vector<32x32xbf16>, vector<2x32xf32> -> vector<2x32xf32>
    %c2 = arith.constant 2 : index
    %c0_14 = arith.constant 0 : index
    %20 = vector.load %arg6[%c2, %c0_14] : memref<4x128xf32, #tpu.memory_space<vmem>>, vector<1x32xf32>
    %21 = vector.broadcast %20 : vector<1x32xf32> to vector<2x32xf32>
    %22 = arith.addf %19, %21 : vector<2x32xf32>
    %cst_15 = arith.constant 0.000000e+00 : f32
    %23 = vector.broadcast %cst_15 : f32 to vector<2x32xf32>
    %24 = arith.maximumf %22, %23 : vector<2x32xf32>
    %25 = arith.truncf %24 : vector<2x32xf32> to vector<2x32xbf16>
    %c0_16 = arith.constant 0 : index
    %c0_17 = arith.constant 0 : index
    %26 = vector.load %arg5[%c0_16, %c0_17] : memref<32x128xbf16, #tpu.memory_space<vmem>>, vector<32x128xbf16>
    %cst_18 = arith.constant dense<0.000000e+00> : vector<2x128xf32>
    %27 = tpu.matmul %25, %26, %cst_18 {dimension_numbers = #tpu.dot_dimension_numbers<[1], [0], [0], [1], [0, 0, 1, 1], [], []>} : vector<2x32xbf16>, vector<32x128xbf16>, vector<2x128xf32> -> vector<2x128xf32>
    %c3 = arith.constant 3 : index
    %c0_19 = arith.constant 0 : index
    %28 = vector.load %arg6[%c3, %c0_19] : memref<4x128xf32, #tpu.memory_space<vmem>>, vector<1x128xf32>
    %29 = vector.broadcast %28 : vector<1x128xf32> to vector<2x128xf32>
    %30 = arith.addf %27, %29 : vector<2x128xf32>
    %c0_20 = arith.constant 0 : index
    %c0_21 = arith.constant 0 : index
    %31 = vector.load %arg7[%c0_20, %c0_21] : memref<2x128xf32, #tpu.memory_space<vmem>>, vector<2x128xf32>
    tpu.vector_store %arg7[%c0_20, %c0_21], %30 {strides = array<i32>} : memref<2x128xf32, #tpu.memory_space<vmem>>, vector<2x128xf32>,
    return
  }
  func.func @transform_0(%arg0: i32) -> (i32, i32) {
    %c0_i32 = arith.constant 0 : i32
    %c0_i32_0 = arith.constant 0 : i32
    return %arg0, %c0_i32 : i32, i32
  }
  func.func @transform_1(%arg0: i32) -> (i32, i32) {
    %c0_i32 = arith.constant 0 : i32
    %c0_i32_0 = arith.constant 0 : i32
    %c0_i32_1 = arith.constant 0 : i32
    return %c0_i32, %c0_i32_0 : i32, i32
  }
  func.func @transform_2(%arg0: i32) -> (i32, i32) {
    %c0_i32 = arith.constant 0 : i32
    %c0_i32_0 = arith.constant 0 : i32
    %c0_i32_1 = arith.constant 0 : i32
    return %c0_i32, %c0_i32_0 : i32, i32
  }
  func.func @transform_3(%arg0: i32) -> (i32, i32) {
    %c0_i32 = arith.constant 0 : i32
    %c0_i32_0 = arith.constant 0 : i32
    %c0_i32_1 = arith.constant 0 : i32
    return %c0_i32, %c0_i32_0 : i32, i32
  }
  func.func @transform_4(%arg0: i32) -> (i32, i32) {
    %c0_i32 = arith.constant 0 : i32
    %c0_i32_0 = arith.constant 0 : i32
    %c0_i32_1 = arith.constant 0 : i32
    return %c0_i32, %c0_i32_0 : i32, i32
  }
  func.func @transform_5(%arg0: i32) -> (i32, i32) {
    %c0_i32 = arith.constant 0 : i32
    %c0_i32_0 = arith.constant 0 : i32
    %c0_i32_1 = arith.constant 0 : i32
    return %c0_i32, %c0_i32_0 : i32, i32
  }
  func.func @transform_6(%arg0: i32) -> (i32, i32) {
    %c0_i32 = arith.constant 0 : i32
    %c0_i32_0 = arith.constant 0 : i32
    return %arg0, %c0_i32 : i32, i32
  }
}

</mosaic_0001>

<llo_original>
// kernel: tpu_custom_call.1
$region0: #{tpu_custom_call.1}
  #allocation0 [shape = 'u32[]', space=smem, size = 0x4, offset = 0x4, fixed_abs, tag = 'smem constant byte address 0x4 - core index']
  #allocation1 [shape = 'u32[144,128]{1,0:T(1,128)}', space=vmem, size = 0x12000, scoped, tag = 'internal scratch']
  %s0 = inlined_call_operand.vmem [shape: f32[2,8192], index: 0, kind: input, shape index: {}]
  %s1 = inlined_call_operand.vmem [shape: bf16[8192,32], index: 1, kind: input, shape index: {}]
  %s2 = inlined_call_operand.vmem [shape: bf16[32,32], index: 2, kind: input, shape index: {}]
  %s3 = inlined_call_operand.vmem [shape: bf16[32,32], index: 3, kind: input, shape index: {}]
  %s4 = inlined_call_operand.vmem [shape: bf16[32,128], index: 4, kind: input, shape index: {}]
  %s5 = inlined_call_operand.vmem [shape: f32[4,128], index: 5, kind: input, shape index: {}]
  %s6 = inlined_call_operand.hbm [shape: f32[2,128], index: 6, kind: output, shape index: {}]
  %s7 = sld [smem:[#allocation0]]
  $region34: #{tpu_custom_call.1} parent=0
    _
  %s9 = ssub.s32 1, %s7
  %s10 = scalar_select 0, %s9, %s7
  $region1: #{tpu_custom_call.1} parent=0
    #allocation2 [shape = 'u8[1024]{0}', space=vmem, size = 0x400, scoped, tag = 'output window, operand 0, single buffered']
    #allocation3 [shape = 's32[1]{0}', space=sflag, size = 0x4, scoped, tag = 'scoped memory for tpu_custom_call.1']
    %11 = vsyncpa [#allocation3], 0
    // Predicated region
    $region2: #{tpu_custom_call.1} parent=1 // pred_check
      _
    $region3: #{tpu_custom_call.1} parent=1 // pred_check_branch
      %13 = sbr.rel (0) target = $region5
    $region4: #{tpu_custom_call.1} parent=1 // pred_region
      _
    $region5: #{tpu_custom_call.1} parent=1 // pred_fallthru
      _
    // Predicated region
    $region6: #{tpu_custom_call.1} parent=1 // pred_check
      _
    $region7: #{tpu_custom_call.1} parent=1 // pred_check_branch
      %15 = sbr.rel (0) target = $region9
    $region8: #{tpu_custom_call.1} parent=1 // pred_region
      _
    $region9: #{tpu_custom_call.1} parent=1 // pred_fallthru
      _
    // Predicated region
    $region10: #{tpu_custom_call.1} parent=1 // pred_check
      _
    $region11: #{tpu_custom_call.1} parent=1 // pred_check_branch
      %17 = sbr.rel (0) target = $region13
    $region12: #{tpu_custom_call.1} parent=1 // pred_region
      _
    $region13: #{tpu_custom_call.1} parent=1 // pred_fallthru
      _
    // Predicated region
    $region14: #{tpu_custom_call.1} parent=1 // pred_check
      _
    $region15: #{tpu_custom_call.1} parent=1 // pred_check_branch
      %19 = sbr.rel (0) target = $region17
    $region16: #{tpu_custom_call.1} parent=1 // pred_region
      _
    $region17: #{tpu_custom_call.1} parent=1 // pred_fallthru
      _
    // Predicated region
    $region18: #{tpu_custom_call.1} parent=1 // pred_check
      _
    $region19: #{tpu_custom_call.1} parent=1 // pred_check_branch
      %21 = sbr.rel (0) target = $region21
    $region20: #{tpu_custom_call.1} parent=1 // pred_region
      _
    $region21: #{tpu_custom_call.1} parent=1 // pred_fallthru
      _
    // Predicated region
    $region22: #{tpu_custom_call.1} parent=1 // pred_check
      _
    $region23: #{tpu_custom_call.1} parent=1 // pred_check_branch
      %23 = sbr.rel (0) target = $region25
    $region24: #{tpu_custom_call.1} parent=1 // pred_region
      _
    $region25: #{tpu_custom_call.1} parent=1 // pred_fallthru
      _
    %v25 = vld [vmem:[%s0] sm:$0xff]
    %v26 = vld [vmem:[%s0 + $0x8] sm:$0xff]
    %v27 = vld [vmem:[%s0 + $0x10] sm:$0xff]
    %v28 = vld [vmem:[%s0 + $0x18] sm:$0xff]
    %v29 = vld [vmem:[%s0 + $0x20] sm:$0xff]
    %v30 = vld [vmem:[%s0 + $0x28] sm:$0xff]
    %v31 = vld [vmem:[%s0 + $0x30] sm:$0xff]
    %v32 = vld [vmem:[%s0 + $0x38] sm:$0xff]
    %v33 = vld [vmem:[%s0 + $0x40] sm:$0xff]
    %v34 = vld [vmem:[%s0 + $0x48] sm:$0xff]
    %v35 = vld [vmem:[%s0 + $0x50] sm:$0xff]
    %v36 = vld [vmem:[%s0 + $0x58] sm:$0xff]
    %v37 = vld [vmem:[%s0 + $0x60] sm:$0xff]
    %v38 = vld [vmem:[%s0 + $0x68] sm:$0xff]
    %v39 = vld [vmem:[%s0 + $0x70] sm:$0xff]
    %v40 = vld [vmem:[%s0 + $0x78] sm:$0xff]
    %v57 = vcombine.high %v25, %v25
    %v59 = vunpack.c.l.s4 1983009808
    %v60 = vunpack.c.0.s8 %v59
    %v61 = vlaneseq
    %v62 = vshrl.u32 %v61, 7
    %v63 = vsub.s32 %v60, %v62
    %v64 = vrot.slane %v25, %v63
    %v66 = vunpack.c.l.s4 1983009808
    %v67 = vunpack.c.0.s8 %v66
    %v68 = vlaneseq
    %v69 = vshrl.u32 %v68, 7
    %v70 = vsub.s32 %v67, %v69
    %v71 = vrot.slane %v57, %v70
    %v72 = vcombine.high %v64, %v64
    %v73 = vcombine.high %v71, %v71
    %v74 = vcombine.high %v26, %v26
    %v76 = vunpack.c.l.s4 1983009808
    %v77 = vunpack.c.0.s8 %v76
    %v78 = vlaneseq
    %v79 = vshrl.u32 %v78, 7
    %v80 = vsub.s32 %v77, %v79
    %v81 = vrot.slane %v26, %v80
    %v83 = vunpack.c.l.s4 1983009808
    %v84 = vunpack.c.0.s8 %v83
    %v85 = vlaneseq
    %v86 = vshrl.u32 %v85, 7
    %v87 = vsub.s32 %v84, %v86
    %v88 = vrot.slane %v74, %v87
    %v89 = vcombine.high %v81, %v81
    %v90 = vcombine.high %v88, %v88
    %v91 = vcombine.high %v27, %v27
    %v93 = vunpack.c.l.s4 1983009808
    %v94 = vunpack.c.0.s8 %v93
    %v95 = vlaneseq
    %v96 = vshrl.u32 %v95, 7
    %v97 = vsub.s32 %v94, %v96
    %v98 = vrot.slane %v27, %v97
    %v100 = vunpack.c.l.s4 1983009808
    %v101 = vunpack.c.0.s8 %v100
    %v102 = vlaneseq
    %v103 = vshrl.u32 %v102, 7
    %v104 = vsub.s32 %v101, %v103
    %v105 = vrot.slane %v91, %v104
    %v106 = vcombine.high %v98, %v98
    %v107 = vcombine.high %v105, %v105
    %v108 = vcombine.high %v28, %v28
    %v110 = vunpack.c.l.s4 1983009808
    %v111 = vunpack.c.0.s8 %v110
    %v112 = vlaneseq
    %v113 = vshrl.u32 %v112, 7
    %v114 = vsub.s32 %v111, %v113
    %v115 = vrot.slane %v28, %v114
    %v117 = vunpack.c.l.s4 1983009808
    %v118 = vunpack.c.0.s8 %v117
    %v119 = vlaneseq
    %v120 = vshrl.u32 %v119, 7
    %v121 = vsub.s32 %v118, %v120
    %v122 = vrot.slane %v108, %v121
    %v123 = vcombine.high %v115, %v115
    %v124 = vcombine.high %v122, %v122
    %v125 = vcombine.high %v29, %v29
    %v127 = vunpack.c.l.s4 1983009808
    %v128 = vunpack.c.0.s8 %v127
    %v129 = vlaneseq
    %v130 = vshrl.u32 %v129, 7
    %v131 = vsub.s32 %v128, %v130
    %v132 = vrot.slane %v29, %v131
    %v134 = vunpack.c.l.s4 1983009808
    %v135 = vunpack.c.0.s8 %v134
    %v136 = vlaneseq
    %v137 = vshrl.u32 %v136, 7
    %v138 = vsub.s32 %v135, %v137
    %v139 = vrot.slane %v125, %v138
    %v140 = vcombine.high %v132, %v132
    %v141 = vcombine.high %v139, %v139
    %v142 = vcombine.high %v30, %v30
    %v144 = vunpack.c.l.s4 1983009808
    %v145 = vunpack.c.0.s8 %v144
    %v146 = vlaneseq
    %v147 = vshrl.u32 %v146, 7
    %v148 = vsub.s32 %v145, %v147
    %v149 = vrot.slane %v30, %v148
    %v151 = vunpack.c.l.s4 1983009808
    %v152 = vunpack.c.0.s8 %v151
    %v153 = vlaneseq
    %v154 = vshrl.u32 %v153, 7
    %v155 = vsub.s32 %v152, %v154
    %v156 = vrot.slane %v142, %v155
    %v157 = vcombine.high %v149, %v149
    %v158 = vcombine.high %v156, %v156
    %v159 = vcombine.high %v31, %v31
    %v161 = vunpack.c.l.s4 1983009808
    %v162 = vunpack.c.0.s8 %v161
    %v163 = vlaneseq
    %v164 = vshrl.u32 %v163, 7
    %v165 = vsub.s32 %v162, %v164
    %v166 = vrot.slane %v31, %v165
    %v168 = vunpack.c.l.s4 1983009808
    %v169 = vunpack.c.0.s8 %v168
    %v170 = vlaneseq
    %v171 = vshrl.u32 %v170, 7
    %v172 = vsub.s32 %v169, %v171
    %v173 = vrot.slane %v159, %v172
    %v174 = vcombine.high %v166, %v166
    %v175 = vcombine.high %v173, %v173
    %v176 = vcombine.high %v32, %v32
    %v178 = vunpack.c.l.s4 1983009808
    %v179 = vunpack.c.0.s8 %v178
    %v180 = vlaneseq
    %v181 = vshrl.u32 %v180, 7
    %v182 = vsub.s32 %v179, %v181
    %v183 = vrot.slane %v32, %v182
    %v185 = vunpack.c.l.s4 1983009808
    %v186 = vunpack.c.0.s8 %v185
    %v187 = vlaneseq
    %v188 = vshrl.u32 %v187, 7
    %v189 = vsub.s32 %v186, %v188
    %v190 = vrot.slane %v176, %v189
    %v191 = vcombine.high %v183, %v183
    %v192 = vcombine.high %v190, %v190
    %v193 = vcombine.high %v33, %v33
    %v195 = vunpack.c.l.s4 1983009808
    %v196 = vunpack.c.0.s8 %v195
    %v197 = vlaneseq
    %v198 = vshrl.u32 %v197, 7
    %v199 = vsub.s32 %v196, %v198
    %v200 = vrot.slane %v33, %v199
    %v202 = vunpack.c.l.s4 1983009808
    %v203 = vunpack.c.0.s8 %v202
    %v204 = vlaneseq
    %v205 = vshrl.u32 %v204, 7
    %v206 = vsub.s32 %v203, %v205
    %v207 = vrot.slane %v193, %v206
    %v208 = vcombine.high %v200, %v200
    %v209 = vcombine.high %v207, %v207
    %v210 = vcombine.high %v34, %v34
    %v212 = vunpack.c.l.s4 1983009808
    %v213 = vunpack.c.0.s8 %v212
    %v214 = vlaneseq
    %v215 = vshrl.u32 %v214, 7
    %v216 = vsub.s32 %v213, %v215
    %v217 = vrot.slane %v34, %v216
    %v219 = vunpack.c.l.s4 1983009808
    %v220 = vunpack.c.0.s8 %v219
    %v221 = vlaneseq
    %v222 = vshrl.u32 %v221, 7
    %v223 = vsub.s32 %v220, %v222
    %v224 = vrot.slane %v210, %v223
    %v225 = vcombine.high %v217, %v217
    %v226 = vcombine.high %v224, %v224
    %v227 = vcombine.high %v35, %v35
    %v229 = vunpack.c.l.s4 1983009808
    %v230 = vunpack.c.0.s8 %v229
    %v231 = vlaneseq
    %v232 = vshrl.u32 %v231, 7
    %v233 = vsub.s32 %v230, %v232
    %v234 = vrot.slane %v35, %v233
    %v236 = vunpack.c.l.s4 1983009808
    %v237 = vunpack.c.0.s8 %v236
    %v238 = vlaneseq
    %v239 = vshrl.u32 %v238, 7
    %v240 = vsub.s32 %v237, %v239
    %v241 = vrot.slane %v227, %v240
    %v242 = vcombine.high %v234, %v234
    %v243 = vcombine.high %v241, %v241
    %v244 = vcombine.high %v36, %v36
    %v246 = vunpack.c.l.s4 1983009808
    %v247 = vunpack.c.0.s8 %v246
    %v248 = vlaneseq
    %v249 = vshrl.u32 %v248, 7
    %v250 = vsub.s32 %v247, %v249
    %v251 = vrot.slane %v36, %v250
    %v253 = vunpack.c.l.s4 1983009808
    %v254 = vunpack.c.0.s8 %v253
    %v255 = vlaneseq
    %v256 = vshrl.u32 %v255, 7
    %v257 = vsub.s32 %v254, %v256
    %v258 = vrot.slane %v244, %v257
    %v259 = vcombine.high %v251, %v251
    %v260 = vcombine.high %v258, %v258
    %v261 = vcombine.high %v37, %v37
    %v263 = vunpack.c.l.s4 1983009808
    %v264 = vunpack.c.0.s8 %v263
    %v265 = vlaneseq
    %v266 = vshrl.u32 %v265, 7
    %v267 = vsub.s32 %v264, %v266
    %v268 = vrot.slane %v37, %v267
    %v270 = vunpack.c.l.s4 1983009808
    %v271 = vunpack.c.0.s8 %v270
    %v272 = vlaneseq
    %v273 = vshrl.u32 %v272, 7
    %v274 = vsub.s32 %v271, %v273
    %v275 = vrot.slane %v261, %v274
    %v276 = vcombine.high %v268, %v268
    %v277 = vcombine.high %v275, %v275
    %v278 = vcombine.high %v38, %v38
    %v280 = vunpack.c.l.s4 1983009808
    %v281 = vunpack.c.0.s8 %v280
    %v282 = vlaneseq
    %v283 = vshrl.u32 %v282, 7
    %v284 = vsub.s32 %v281, %v283
    %v285 = vrot.slane %v38, %v284
    %v287 = vunpack.c.l.s4 1983009808
    %v288 = vunpack.c.0.s8 %v287
    %v289 = vlaneseq
    %v290 = vshrl.u32 %v289, 7
    %v291 = vsub.s32 %v288, %v290
    %v292 = vrot.slane %v278, %v291
    %v293 = vcombine.high %v285, %v285
    %v294 = vcombine.high %v292, %v292
    %v295 = vcombine.high %v39, %v39
    %v297 = vunpack.c.l.s4 1983009808
    %v298 = vunpack.c.0.s8 %v297
    %v299 = vlaneseq
    %v300 = vshrl.u32 %v299, 7
    %v301 = vsub.s32 %v298, %v300
    %v302 = vrot.slane %v39, %v301
    %v304 = vunpack.c.l.s4 1983009808
    %v305 = vunpack.c.0.s8 %v304
    %v306 = vlaneseq
    %v307 = vshrl.u32 %v306, 7
    %v308 = vsub.s32 %v305, %v307
    %v309 = vrot.slane %v295, %v308
    %v310 = vcombine.high %v302, %v302
    %v311 = vcombine.high %v309, %v309
    %v312 = vcombine.high %v40, %v40
    %v314 = vunpack.c.l.s4 1983009808
    %v315 = vunpack.c.0.s8 %v314
    %v316 = vlaneseq
    %v317 = vshrl.u32 %v316, 7
    %v318 = vsub.s32 %v315, %v317
    %v319 = vrot.slane %v40, %v318
    %v321 = vunpack.c.l.s4 1983009808
    %v322 = vunpack.c.0.s8 %v321
    %v323 = vlaneseq
    %v324 = vshrl.u32 %v323, 7
    %v325 = vsub.s32 %v322, %v324
    %v326 = vrot.slane %v312, %v325
    %v327 = vcombine.high %v319, %v319
    %v328 = vcombine.high %v326, %v326
    %v393 = vpack.c.bf16 %v64, %v64
    %v394 = vpack.c.bf16 %v72, %v72
    %v395 = vpack.c.bf16 %v71, %v71
    %v396 = vpack.c.bf16 %v73, %v73
    %v397 = vpack.c.bf16 %v81, %v81
    %v398 = vpack.c.bf16 %v89, %v89
    %v399 = vpack.c.bf16 %v88, %v88
    %v400 = vpack.c.bf16 %v90, %v90
    %v401 = vpack.c.bf16 %v98, %v98
    %v402 = vpack.c.bf16 %v106, %v106
    %v403 = vpack.c.bf16 %v105, %v105
    %v404 = vpack.c.bf16 %v107, %v107
    %v405 = vpack.c.bf16 %v115, %v115
    %v406 = vpack.c.bf16 %v123, %v123
    %v407 = vpack.c.bf16 %v122, %v122
    %v408 = vpack.c.bf16 %v124, %v124
    %v409 = vpack.c.bf16 %v132, %v132
    %v410 = vpack.c.bf16 %v140, %v140
    %v411 = vpack.c.bf16 %v139, %v139
    %v412 = vpack.c.bf16 %v141, %v141
    %v413 = vpack.c.bf16 %v149, %v149
    %v414 = vpack.c.bf16 %v157, %v157
    %v415 = vpack.c.bf16 %v156, %v156
    %v416 = vpack.c.bf16 %v158, %v158
    %v417 = vpack.c.bf16 %v166, %v166
    %v418 = vpack.c.bf16 %v174, %v174
    %v419 = vpack.c.bf16 %v173, %v173
    %v420 = vpack.c.bf16 %v175, %v175
    %v421 = vpack.c.bf16 %v183, %v183
    %v422 = vpack.c.bf16 %v191, %v191
    %v423 = vpack.c.bf16 %v190, %v190
    %v424 = vpack.c.bf16 %v192, %v192
    %v425 = vpack.c.bf16 %v200, %v200
    %v426 = vpack.c.bf16 %v208, %v208
    %v427 = vpack.c.bf16 %v207, %v207
    %v428 = vpack.c.bf16 %v209, %v209
    %v429 = vpack.c.bf16 %v217, %v217
    %v430 = vpack.c.bf16 %v225, %v225
    %v431 = vpack.c.bf16 %v224, %v224
    %v432 = vpack.c.bf16 %v226, %v226
    %v433 = vpack.c.bf16 %v234, %v234
    %v434 = vpack.c.bf16 %v242, %v242
    %v435 = vpack.c.bf16 %v241, %v241
    %v436 = vpack.c.bf16 %v243, %v243
    %v437 = vpack.c.bf16 %v251, %v251
    %v438 = vpack.c.bf16 %v259, %v259
    %v439 = vpack.c.bf16 %v258, %v258
    %v440 = vpack.c.bf16 %v260, %v260
    %v441 = vpack.c.bf16 %v268, %v268
    %v442 = vpack.c.bf16 %v276, %v276
    %v443 = vpack.c.bf16 %v275, %v275
    %v444 = vpack.c.bf16 %v277, %v277
    %v445 = vpack.c.bf16 %v285, %v285
    %v446 = vpack.c.bf16 %v293, %v293
    %v447 = vpack.c.bf16 %v292, %v292
    %v448 = vpack.c.bf16 %v294, %v294
    %v449 = vpack.c.bf16 %v302, %v302
    %v450 = vpack.c.bf16 %v310, %v310
    %v451 = vpack.c.bf16 %v309, %v309
    %v452 = vpack.c.bf16 %v311, %v311
    %v453 = vpack.c.bf16 %v319, %v319
    %v454 = vpack.c.bf16 %v327, %v327
    %v455 = vpack.c.bf16 %v326, %v326
    %v456 = vpack.c.bf16 %v328, %v328
    %v457 = vld [vmem:[%s1] sm:$0xf]
    %v458 = vld [vmem:[%s1 + $0x4] sm:$0xf]
    %v459 = vld [vmem:[%s1 + $0x8] sm:$0xf]
    %v460 = vld [vmem:[%s1 + $0xc] sm:$0xf]
    %v461 = vld [vmem:[%s1 + $0x10] sm:$0xf]
    %v462 = vld [vmem:[%s1 + $0x14] sm:$0xf]
    %v463 = vld [vmem:[%s1 + $0x18] sm:$0xf]
    %v464 = vld [vmem:[%s1 + $0x1c] sm:$0xf]
    %v465 = vld [vmem:[%s1 + $0x20] sm:$0xf]
    %v466 = vld [vmem:[%s1 + $0x24] sm:$0xf]
    %v467 = vld [vmem:[%s1 + $0x28] sm:$0xf]
    %v468 = vld [vmem:[%s1 + $0x2c] sm:$0xf]
    %v469 = vld [vmem:[%s1 + $0x30] sm:$0xf]
    %v470 = vld [vmem:[%s1 + $0x34] sm:$0xf]
    %v471 = vld [vmem:[%s1 + $0x38] sm:$0xf]
    %v472 = vld [vmem:[%s1 + $0x3c] sm:$0xf]
    %v473 = vld [vmem:[%s1 + $0x40] sm:$0xf]
    %v474 = vld [vmem:[%s1 + $0x44] sm:$0xf]
    %v475 = vld [vmem:[%s1 + $0x48] sm:$0xf]
    %v476 = vld [vmem:[%s1 + $0x4c] sm:$0xf]
    %v477 = vld [vmem:[%s1 + $0x50] sm:$0xf]
    %v478 = vld [vmem:[%s1 + $0x54] sm:$0xf]
    %v479 = vld [vmem:[%s1 + $0x58] sm:$0xf]
    %v480 = vld [vmem:[%s1 + $0x5c] sm:$0xf]
    %v481 = vld [vmem:[%s1 + $0x60] sm:$0xf]
    %v482 = vld [vmem:[%s1 + $0x64] sm:$0xf]
    %v483 = vld [vmem:[%s1 + $0x68] sm:$0xf]
    %v484 = vld [vmem:[%s1 + $0x6c] sm:$0xf]
    %v485 = vld [vmem:[%s1 + $0x70] sm:$0xf]
    %v486 = vld [vmem:[%s1 + $0x74] sm:$0xf]
    %v487 = vld [vmem:[%s1 + $0x78] sm:$0xf]
    %v488 = vld [vmem:[%s1 + $0x7c] sm:$0xf]
    %v489 = vld [vmem:[%s1 + $0x80] sm:$0xf]
    %v490 = vld [vmem:[%s1 + $0x84] sm:$0xf]
    %v491 = vld [vmem:[%s1 + $0x88] sm:$0xf]
    %v492 = vld [vmem:[%s1 + $0x8c] sm:$0xf]
    %v493 = vld [vmem:[%s1 + $0x90] sm:$0xf]
    %v494 = vld [vmem:[%s1 + $0x94] sm:$0xf]
    %v495 = vld [vmem:[%s1 + $0x98] sm:$0xf]
    %v496 = vld [vmem:[%s1 + $0x9c] sm:$0xf]
    %v497 = vld [vmem:[%s1 + $0xa0] sm:$0xf]
    %v498 = vld [vmem:[%s1 + $0xa4] sm:$0xf]
    %v499 = vld [vmem:[%s1 + $0xa8] sm:$0xf]
    %v500 = vld [vmem:[%s1 + $0xac] sm:$0xf]
    %v501 = vld [vmem:[%s1 + $0xb0] sm:$0xf]
    %v502 = vld [vmem:[%s1 + $0xb4] sm:$0xf]
    %v503 = vld [vmem:[%s1 + $0xb8] sm:$0xf]
    %v504 = vld [vmem:[%s1 + $0xbc] sm:$0xf]
    %v505 = vld [vmem:[%s1 + $0xc0] sm:$0xf]
    %v506 = vld [vmem:[%s1 + $0xc4] sm:$0xf]
    %v507 = vld [vmem:[%s1 + $0xc8] sm:$0xf]
    %v508 = vld [vmem:[%s1 + $0xcc] sm:$0xf]
    %v509 = vld [vmem:[%s1 + $0xd0] sm:$0xf]
    %v510 = vld [vmem:[%s1 + $0xd4] sm:$0xf]
    %v511 = vld [vmem:[%s1 + $0xd8] sm:$0xf]
    %v512 = vld [vmem:[%s1 + $0xdc] sm:$0xf]
    %v513 = vld [vmem:[%s1 + $0xe0] sm:$0xf]
    %v514 = vld [vmem:[%s1 + $0xe4] sm:$0xf]
    %v515 = vld [vmem:[%s1 + $0xe8] sm:$0xf]
    %v516 = vld [vmem:[%s1 + $0xec] sm:$0xf]
    %v517 = vld [vmem:[%s1 + $0xf0] sm:$0xf]
    %v518 = vld [vmem:[%s1 + $0xf4] sm:$0xf]
    %v519 = vld [vmem:[%s1 + $0xf8] sm:$0xf]
    %v520 = vld [vmem:[%s1 + $0xfc] sm:$0xf]
    %v521 = vld [vmem:[%s1 + $0x100] sm:$0xf]
    %v522 = vld [vmem:[%s1 + $0x104] sm:$0xf]
    %v523 = vld [vmem:[%s1 + $0x108] sm:$0xf]
    %v524 = vld [vmem:[%s1 + $0x10c] sm:$0xf]
    %v525 = vld [vmem:[%s1 + $0x110] sm:$0xf]
    %v526 = vld [vmem:[%s1 + $0x114] sm:$0xf]
    %v527 = vld [vmem:[%s1 + $0x118] sm:$0xf]
    %v528 = vld [vmem:[%s1 + $0x11c] sm:$0xf]
    %v529 = vld [vmem:[%s1 + $0x120] sm:$0xf]
    %v530 = vld [vmem:[%s1 + $0x124] sm:$0xf]
    %v531 = vld [vmem:[%s1 + $0x128] sm:$0xf]
    %v532 = vld [vmem:[%s1 + $0x12c] sm:$0xf]
    %v533 = vld [vmem:[%s1 + $0x130] sm:$0xf]
    %v534 = vld [vmem:[%s1 + $0x134] sm:$0xf]
    %v535 = vld [vmem:[%s1 + $0x138] sm:$0xf]
    %v536 = vld [vmem:[%s1 + $0x13c] sm:$0xf]
    %v537 = vld [vmem:[%s1 + $0x140] sm:$0xf]
    %v538 = vld [vmem:[%s1 + $0x144] sm:$0xf]
    %v539 = vld [vmem:[%s1 + $0x148] sm:$0xf]
    %v540 = vld [vmem:[%s1 + $0x14c] sm:$0xf]
    %v541 = vld [vmem:[%s1 + $0x150] sm:$0xf]
    %v542 = vld [vmem:[%s1 + $0x154] sm:$0xf]
    %v543 = vld [vmem:[%s1 + $0x158] sm:$0xf]
    %v544 = vld [vmem:[%s1 + $0x15c] sm:$0xf]
    %v545 = vld [vmem:[%s1 + $0x160] sm:$0xf]
    %v546 = vld [vmem:[%s1 + $0x164] sm:$0xf]
    %v547 = vld [vmem:[%s1 + $0x168] sm:$0xf]
    %v548 = vld [vmem:[%s1 + $0x16c] sm:$0xf]
    %v549 = vld [vmem:[%s1 + $0x170] sm:$0xf]
    %v550 = vld [vmem:[%s1 + $0x174] sm:$0xf]
    %v551 = vld [vmem:[%s1 + $0x178] sm:$0xf]
    %v552 = vld [vmem:[%s1 + $0x17c] sm:$0xf]
    %v553 = vld [vmem:[%s1 + $0x180] sm:$0xf]
    %v554 = vld [vmem:[%s1 + $0x184] sm:$0xf]
    %v555 = vld [vmem:[%s1 + $0x188] sm:$0xf]
    %v556 = vld [vmem:[%s1 + $0x18c] sm:$0xf]
    %v557 = vld [vmem:[%s1 + $0x190] sm:$0xf]
    %v558 = vld [vmem:[%s1 + $0x194] sm:$0xf]
    %v559 = vld [vmem:[%s1 + $0x198] sm:$0xf]
    %v560 = vld [vmem:[%s1 + $0x19c] sm:$0xf]
    %v561 = vld [vmem:[%s1 + $0x1a0] sm:$0xf]
    %v562 = vld [vmem:[%s1 + $0x1a4] sm:$0xf]
    %v563 = vld [vmem:[%s1 + $0x1a8] sm:$0xf]
    %v564 = vld [vmem:[%s1 + $0x1ac] sm:$0xf]
    %v565 = vld [vmem:[%s1 + $0x1b0] sm:$0xf]
    %v566 = vld [vmem:[%s1 + $0x1b4] sm:$0xf]
    %v567 = vld [vmem:[%s1 + $0x1b8] sm:$0xf]
    %v568 = vld [vmem:[%s1 + $0x1bc] sm:$0xf]
    %v569 = vld [vmem:[%s1 + $0x1c0] sm:$0xf]
    %v570 = vld [vmem:[%s1 + $0x1c4] sm:$0xf]
    %v571 = vld [vmem:[%s1 + $0x1c8] sm:$0xf]
    %v572 = vld [vmem:[%s1 + $0x1cc] sm:$0xf]
    %v573 = vld [vmem:[%s1 + $0x1d0] sm:$0xf]
    %v574 = vld [vmem:[%s1 + $0x1d4] sm:$0xf]
    %v575 = vld [vmem:[%s1 + $0x1d8] sm:$0xf]
    %v576 = vld [vmem:[%s1 + $0x1dc] sm:$0xf]
    %v577 = vld [vmem:[%s1 + $0x1e0] sm:$0xf]
    %v578 = vld [vmem:[%s1 + $0x1e4] sm:$0xf]
    %v579 = vld [vmem:[%s1 + $0x1e8] sm:$0xf]
    %v580 = vld [vmem:[%s1 + $0x1ec] sm:$0xf]
    %v581 = vld [vmem:[%s1 + $0x1f0] sm:$0xf]
    %v582 = vld [vmem:[%s1 + $0x1f4] sm:$0xf]
    %v583 = vld [vmem:[%s1 + $0x1f8] sm:$0xf]
    %v584 = vld [vmem:[%s1 + $0x1fc] sm:$0xf]
    %v585 = vld [vmem:[%s1 + $0x200] sm:$0xf]
    %v586 = vld [vmem:[%s1 + $0x204] sm:$0xf]
    %v587 = vld [vmem:[%s1 + $0x208] sm:$0xf]
    %v588 = vld [vmem:[%s1 + $0x20c] sm:$0xf]
    %v589 = vld [vmem:[%s1 + $0x210] sm:$0xf]
    %v590 = vld [vmem:[%s1 + $0x214] sm:$0xf]
    %v591 = vld [vmem:[%s1 + $0x218] sm:$0xf]
    %v592 = vld [vmem:[%s1 + $0x21c] sm:$0xf]
    %v593 = vld [vmem:[%s1 + $0x220] sm:$0xf]
    %v594 = vld [vmem:[%s1 + $0x224] sm:$0xf]
    %v595 = vld [vmem:[%s1 + $0x228] sm:$0xf]
    %v596 = vld [vmem:[%s1 + $0x22c] sm:$0xf]
    %v597 = vld [vmem:[%s1 + $0x230] sm:$0xf]
    %v598 = vld [vmem:[%s1 + $0x234] sm:$0xf]
    %v599 = vld [vmem:[%s1 + $0x238] sm:$0xf]
    %v600 = vld [vmem:[%s1 + $0x23c] sm:$0xf]
    %v601 = vld [vmem:[%s1 + $0x240] sm:$0xf]
    %v602 = vld [vmem:[%s1 + $0x244] sm:$0xf]
    %v603 = vld [vmem:[%s1 + $0x248] sm:$0xf]
    %v604 = vld [vmem:[%s1 + $0x24c] sm:$0xf]
    %v605 = vld [vmem:[%s1 + $0x250] sm:$0xf]
    %v606 = vld [vmem:[%s1 + $0x254] sm:$0xf]
    %v607 = vld [vmem:[%s1 + $0x258] sm:$0xf]
    %v608 = vld [vmem:[%s1 + $0x25c] sm:$0xf]
    %v609 = vld [vmem:[%s1 + $0x260] sm:$0xf]
    %v610 = vld [vmem:[%s1 + $0x264] sm:$0xf]
    %v611 = vld [vmem:[%s1 + $0x268] sm:$0xf]
    %v612 = vld [vmem:[%s1 + $0x26c] sm:$0xf]
    %v613 = vld [vmem:[%s1 + $0x270] sm:$0xf]
    %v614 = vld [vmem:[%s1 + $0x274] sm:$0xf]
    %v615 = vld [vmem:[%s1 + $0x278] sm:$0xf]
    %v616 = vld [vmem:[%s1 + $0x27c] sm:$0xf]
    %v617 = vld [vmem:[%s1 + $0x280] sm:$0xf]
    %v618 = vld [vmem:[%s1 + $0x284] sm:$0xf]
    %v619 = vld [vmem:[%s1 + $0x288] sm:$0xf]
    %v620 = vld [vmem:[%s1 + $0x28c] sm:$0xf]
    %v621 = vld [vmem:[%s1 + $0x290] sm:$0xf]
    %v622 = vld [vmem:[%s1 + $0x294] sm:$0xf]
    %v623 = vld [vmem:[%s1 + $0x298] sm:$0xf]
    %v624 = vld [vmem:[%s1 + $0x29c] sm:$0xf]
    %v625 = vld [vmem:[%s1 + $0x2a0] sm:$0xf]
    %v626 = vld [vmem:[%s1 + $0x2a4] sm:$0xf]
    %v627 = vld [vmem:[%s1 + $0x2a8] sm:$0xf]
    %v628 = vld [vmem:[%s1 + $0x2ac] sm:$0xf]
    %v629 = vld [vmem:[%s1 + $0x2b0] sm:$0xf]
    %v630 = vld [vmem:[%s1 + $0x2b4] sm:$0xf]
    %v631 = vld [vmem:[%s1 + $0x2b8] sm:$0xf]
    %v632 = vld [vmem:[%s1 + $0x2bc] sm:$0xf]
    %v633 = vld [vmem:[%s1 + $0x2c0] sm:$0xf]
    %v634 = vld [vmem:[%s1 + $0x2c4] sm:$0xf]
    %v635 = vld [vmem:[%s1 + $0x2c8] sm:$0xf]
    %v636 = vld [vmem:[%s1 + $0x2cc] sm:$0xf]
    %v637 = vld [vmem:[%s1 + $0x2d0] sm:$0xf]
    %v638 = vld [vmem:[%s1 + $0x2d4] sm:$0xf]
    %v639 = vld [vmem:[%s1 + $0x2d8] sm:$0xf]
    %v640 = vld [vmem:[%s1 + $0x2dc] sm:$0xf]
    %v641 = vld [vmem:[%s1 + $0x2e0] sm:$0xf]
    %v642 = vld [vmem:[%s1 + $0x2e4] sm:$0xf]
    %v643 = vld [vmem:[%s1 + $0x2e8] sm:$0xf]
    %v644 = vld [vmem:[%s1 + $0x2ec] sm:$0xf]
    %v645 = vld [vmem:[%s1 + $0x2f0] sm:$0xf]
    %v646 = vld [vmem:[%s1 + $0x2f4] sm:$0xf]
    %v647 = vld [vmem:[%s1 + $0x2f8] sm:$0xf]
    %v648 = vld [vmem:[%s1 + $0x2fc] sm:$0xf]
    %v649 = vld [vmem:[%s1 + $0x300] sm:$0xf]
    %v650 = vld [vmem:[%s1 + $0x304] sm:$0xf]
    %v651 = vld [vmem:[%s1 + $0x308] sm:$0xf]
    %v652 = vld [vmem:[%s1 + $0x30c] sm:$0xf]
    %v653 = vld [vmem:[%s1 + $0x310] sm:$0xf]
    %v654 = vld [vmem:[%s1 + $0x314] sm:$0xf]
    %v655 = vld [vmem:[%s1 + $0x318] sm:$0xf]
    %v656 = vld [vmem:[%s1 + $0x31c] sm:$0xf]
    %v657 = vld [vmem:[%s1 + $0x320] sm:$0xf]
    %v658 = vld [vmem:[%s1 + $0x324] sm:$0xf]
    %v659 = vld [vmem:[%s1 + $0x328] sm:$0xf]
    %v660 = vld [vmem:[%s1 + $0x32c] sm:$0xf]
    %v661 = vld [vmem:[%s1 + $0x330] sm:$0xf]
    %v662 = vld [vmem:[%s1 + $0x334] sm:$0xf]
    %v663 = vld [vmem:[%s1 + $0x338] sm:$0xf]
    %v664 = vld [vmem:[%s1 + $0x33c] sm:$0xf]
    %v665 = vld [vmem:[%s1 + $0x340] sm:$0xf]
    %v666 = vld [vmem:[%s1 + $0x344] sm:$0xf]
    %v667 = vld [vmem:[%s1 + $0x348] sm:$0xf]
    %v668 = vld [vmem:[%s1 + $0x34c] sm:$0xf]
    %v669 = vld [vmem:[%s1 + $0x350] sm:$0xf]
    %v670 = vld [vmem:[%s1 + $0x354] sm:$0xf]
    %v671 = vld [vmem:[%s1 + $0x358] sm:$0xf]
    %v672 = vld [vmem:[%s1 + $0x35c] sm:$0xf]
    %v673 = vld [vmem:[%s1 + $0x360] sm:$0xf]
    %v674 = vld [vmem:[%s1 + $0x364] sm:$0xf]
    %v675 = vld [vmem:[%s1 + $0x368] sm:$0xf]
    %v676 = vld [vmem:[%s1 + $0x36c] sm:$0xf]
    %v677 = vld [vmem:[%s1 + $0x370] sm:$0xf]
    %v678 = vld [vmem:[%s1 + $0x374] sm:$0xf]
    %v679 = vld [vmem:[%s1 + $0x378] sm:$0xf]
    %v680 = vld [vmem:[%s1 + $0x37c] sm:$0xf]
    %v681 = vld [vmem:[%s1 + $0x380] sm:$0xf]
    %v682 = vld [vmem:[%s1 + $0x384] sm:$0xf]
    %v683 = vld [vmem:[%s1 + $0x388] sm:$0xf]
    %v684 = vld [vmem:[%s1 + $0x38c] sm:$0xf]
    %v685 = vld [vmem:[%s1 + $0x390] sm:$0xf]
    %v686 = vld [vmem:[%s1 + $0x394] sm:$0xf]
    %v687 = vld [vmem:[%s1 + $0x398] sm:$0xf]
    %v688 = vld [vmem:[%s1 + $0x39c] sm:$0xf]
    %v689 = vld [vmem:[%s1 + $0x3a0] sm:$0xf]
    %v690 = vld [vmem:[%s1 + $0x3a4] sm:$0xf]
    %v691 = vld [vmem:[%s1 + $0x3a8] sm:$0xf]
    %v692 = vld [vmem:[%s1 + $0x3ac] sm:$0xf]
    %v693 = vld [vmem:[%s1 + $0x3b0] sm:$0xf]
    %v694 = vld [vmem:[%s1 + $0x3b4] sm:$0xf]
    %v695 = vld [vmem:[%s1 + $0x3b8] sm:$0xf]
    %v696 = vld [vmem:[%s1 + $0x3bc] sm:$0xf]
    %v697 = vld [vmem:[%s1 + $0x3c0] sm:$0xf]
    %v698 = vld [vmem:[%s1 + $0x3c4] sm:$0xf]
    %v699 = vld [vmem:[%s1 + $0x3c8] sm:$0xf]
    %v700 = vld [vmem:[%s1 + $0x3cc] sm:$0xf]
    %v701 = vld [vmem:[%s1 + $0x3d0] sm:$0xf]
    %v702 = vld [vmem:[%s1 + $0x3d4] sm:$0xf]
    %v703 = vld [vmem:[%s1 + $0x3d8] sm:$0xf]
    %v704 = vld [vmem:[%s1 + $0x3dc] sm:$0xf]
    %v705 = vld [vmem:[%s1 + $0x3e0] sm:$0xf]
    %v706 = vld [vmem:[%s1 + $0x3e4] sm:$0xf]
    %v707 = vld [vmem:[%s1 + $0x3e8] sm:$0xf]
    %v708 = vld [vmem:[%s1 + $0x3ec] sm:$0xf]
    %v709 = vld [vmem:[%s1 + $0x3f0] sm:$0xf]
    %v710 = vld [vmem:[%s1 + $0x3f4] sm:$0xf]
    %v711 = vld [vmem:[%s1 + $0x3f8] sm:$0xf]
    %v712 = vld [vmem:[%s1 + $0x3fc] sm:$0xf]
    %v713 = vld [vmem:[%s1 + $0x400] sm:$0xf]
    %v714 = vld [vmem:[%s1 + $0x404] sm:$0xf]
    %v715 = vld [vmem:[%s1 + $0x408] sm:$0xf]
    %v716 = vld [vmem:[%s1 + $0x40c] sm:$0xf]
    %v717 = vld [vmem:[%s1 + $0x410] sm:$0xf]
    %v718 = vld [vmem:[%s1 + $0x414] sm:$0xf]
    %v719 = vld [vmem:[%s1 + $0x418] sm:$0xf]
    %v720 = vld [vmem:[%s1 + $0x41c] sm:$0xf]
    %v721 = vld [vmem:[%s1 + $0x420] sm:$0xf]
    %v722 = vld [vmem:[%s1 + $0x424] sm:$0xf]
    %v723 = vld [vmem:[%s1 + $0x428] sm:$0xf]
    %v724 = vld [vmem:[%s1 + $0x42c] sm:$0xf]
    %v725 = vld [vmem:[%s1 + $0x430] sm:$0xf]
    %v726 = vld [vmem:[%s1 + $0x434] sm:$0xf]
    %v727 = vld [vmem:[%s1 + $0x438] sm:$0xf]
    %v728 = vld [vmem:[%s1 + $0x43c] sm:$0xf]
    %v729 = vld [vmem:[%s1 + $0x440] sm:$0xf]
    %v730 = vld [vmem:[%s1 + $0x444] sm:$0xf]
    %v731 = vld [vmem:[%s1 + $0x448] sm:$0xf]
    %v732 = vld [vmem:[%s1 + $0x44c] sm:$0xf]
    %v733 = vld [vmem:[%s1 + $0x450] sm:$0xf]
    %v734 = vld [vmem:[%s1 + $0x454] sm:$0xf]
    %v735 = vld [vmem:[%s1 + $0x458] sm:$0xf]
    %v736 = vld [vmem:[%s1 + $0x45c] sm:$0xf]
    %v737 = vld [vmem:[%s1 + $0x460] sm:$0xf]
    %v738 = vld [vmem:[%s1 + $0x464] sm:$0xf]
    %v739 = vld [vmem:[%s1 + $0x468] sm:$0xf]
    %v740 = vld [vmem:[%s1 + $0x46c] sm:$0xf]
    %v741 = vld [vmem:[%s1 + $0x470] sm:$0xf]
    %v742 = vld [vmem:[%s1 + $0x474] sm:$0xf]
    %v743 = vld [vmem:[%s1 + $0x478] sm:$0xf]
    %v744 = vld [vmem:[%s1 + $0x47c] sm:$0xf]
    %v745 = vld [vmem:[%s1 + $0x480] sm:$0xf]
    %v746 = vld [vmem:[%s1 + $0x484] sm:$0xf]
    %v747 = vld [vmem:[%s1 + $0x488] sm:$0xf]
    %v748 = vld [vmem:[%s1 + $0x48c] sm:$0xf]
    %v749 = vld [vmem:[%s1 + $0x490] sm:$0xf]
    %v750 = vld [vmem:[%s1 + $0x494] sm:$0xf]
    %v751 = vld [vmem:[%s1 + $0x498] sm:$0xf]
    %v752 = vld [vmem:[%s1 + $0x49c] sm:$0xf]
    %v753 = vld [vmem:[%s1 + $0x4a0] sm:$0xf]
    %v754 = vld [vmem:[%s1 + $0x4a4] sm:$0xf]
    %v755 = vld [vmem:[%s1 + $0x4a8] sm:$0xf]
    %v756 = vld [vmem:[%s1 + $0x4ac] sm:$0xf]
    %v757 = vld [vmem:[%s1 + $0x4b0] sm:$0xf]
    %v758 = vld [vmem:[%s1 + $0x4b4] sm:$0xf]
    %v759 = vld [vmem:[%s1 + $0x4b8] sm:$0xf]
    %v760 = vld [vmem:[%s1 + $0x4bc] sm:$0xf]
    %v761 = vld [vmem:[%s1 + $0x4c0] sm:$0xf]
    %v762 = vld [vmem:[%s1 + $0x4c4] sm:$0xf]
    %v763 = vld [vmem:[%s1 + $0x4c8] sm:$0xf]
    %v764 = vld [vmem:[%s1 + $0x4cc] sm:$0xf]
    %v765 = vld [vmem:[%s1 + $0x4d0] sm:$0xf]
    %v766 = vld [vmem:[%s1 + $0x4d4] sm:$0xf]
    %v767 = vld [vmem:[%s1 + $0x4d8] sm:$0xf]
    %v768 = vld [vmem:[%s1 + $0x4dc] sm:$0xf]
    %v769 = vld [vmem:[%s1 + $0x4e0] sm:$0xf]
    %v770 = vld [vmem:[%s1 + $0x4e4] sm:$0xf]
    %v771 = vld [vmem:[%s1 + $0x4e8] sm:$0xf]
    %v772 = vld [vmem:[%s1 + $0x4ec] sm:$0xf]
    %v773 = vld [vmem:[%s1 + $0x4f0] sm:$0xf]
    %v774 = vld [vmem:[%s1 + $0x4f4] sm:$0xf]
    %v775 = vld [vmem:[%s1 + $0x4f8] sm:$0xf]
    %v776 = vld [vmem:[%s1 + $0x4fc] sm:$0xf]
    %v777 = vld [vmem:[%s1 + $0x500] sm:$0xf]
    %v778 = vld [vmem:[%s1 + $0x504] sm:$0xf]
    %v779 = vld [vmem:[%s1 + $0x508] sm:$0xf]
    %v780 = vld [vmem:[%s1 + $0x50c] sm:$0xf]
    %v781 = vld [vmem:[%s1 + $0x510] sm:$0xf]
    %v782 = vld [vmem:[%s1 + $0x514] sm:$0xf]
    %v783 = vld [vmem:[%s1 + $0x518] sm:$0xf]
    %v784 = vld [vmem:[%s1 + $0x51c] sm:$0xf]
    %v785 = vld [vmem:[%s1 + $0x520] sm:$0xf]
    %v786 = vld [vmem:[%s1 + $0x524] sm:$0xf]
    %v787 = vld [vmem:[%s1 + $0x528] sm:$0xf]
    %v788 = vld [vmem:[%s1 + $0x52c] sm:$0xf]
    %v789 = vld [vmem:[%s1 + $0x530] sm:$0xf]
    %v790 = vld [vmem:[%s1 + $0x534] sm:$0xf]
    %v791 = vld [vmem:[%s1 + $0x538] sm:$0xf]
    %v792 = vld [vmem:[%s1 + $0x53c] sm:$0xf]
    %v793 = vld [vmem:[%s1 + $0x540] sm:$0xf]
    %v794 = vld [vmem:[%s1 + $0x544] sm:$0xf]
    %v795 = vld [vmem:[%s1 + $0x548] sm:$0xf]
    %v796 = vld [vmem:[%s1 + $0x54c] sm:$0xf]
    %v797 = vld [vmem:[%s1 + $0x550] sm:$0xf]
    %v798 = vld [vmem:[%s1 + $0x554] sm:$0xf]
    %v799 = vld [vmem:[%s1 + $0x558] sm:$0xf]
    %v800 = vld [vmem:[%s1 + $0x55c] sm:$0xf]
    %v801 = vld [vmem:[%s1 + $0x560] sm:$0xf]
    %v802 = vld [vmem:[%s1 + $0x564] sm:$0xf]
    %v803 = vld [vmem:[%s1 + $0x568] sm:$0xf]
    %v804 = vld [vmem:[%s1 + $0x56c] sm:$0xf]
    %v805 = vld [vmem:[%s1 + $0x570] sm:$0xf]
    %v806 = vld [vmem:[%s1 + $0x574] sm:$0xf]
    %v807 = vld [vmem:[%s1 + $0x578] sm:$0xf]
    %v808 = vld [vmem:[%s1 + $0x57c] sm:$0xf]
    %v809 = vld [vmem:[%s1 + $0x580] sm:$0xf]
    %v810 = vld [vmem:[%s1 + $0x584] sm:$0xf]
    %v811 = vld [vmem:[%s1 + $0x588] sm:$0xf]
    %v812 = vld [vmem:[%s1 + $0x58c] sm:$0xf]
    %v813 = vld [vmem:[%s1 + $0x590] sm:$0xf]
    %v814 = vld [vmem:[%s1 + $0x594] sm:$0xf]
    %v815 = vld [vmem:[%s1 + $0x598] sm:$0xf]
    %v816 = vld [vmem:[%s1 + $0x59c] sm:$0xf]
    %v817 = vld [vmem:[%s1 + $0x5a0] sm:$0xf]
    %v818 = vld [vmem:[%s1 + $0x5a4] sm:$0xf]
    %v819 = vld [vmem:[%s1 + $0x5a8] sm:$0xf]
    %v820 = vld [vmem:[%s1 + $0x5ac] sm:$0xf]
    %v821 = vld [vmem:[%s1 + $0x5b0] sm:$0xf]
    %v822 = vld [vmem:[%s1 + $0x5b4] sm:$0xf]
    %v823 = vld [vmem:[%s1 + $0x5b8] sm:$0xf]
    %v824 = vld [vmem:[%s1 + $0x5bc] sm:$0xf]
    %v825 = vld [vmem:[%s1 + $0x5c0] sm:$0xf]
    %v826 = vld [vmem:[%s1 + $0x5c4] sm:$0xf]
    %v827 = vld [vmem:[%s1 + $0x5c8] sm:$0xf]
    %v828 = vld [vmem:[%s1 + $0x5cc] sm:$0xf]
    %v829 = vld [vmem:[%s1 + $0x5d0] sm:$0xf]
    %v830 = vld [vmem:[%s1 + $0x5d4] sm:$0xf]
    %v831 = vld [vmem:[%s1 + $0x5d8] sm:$0xf]
    %v832 = vld [vmem:[%s1 + $0x5dc] sm:$0xf]
    %v833 = vld [vmem:[%s1 + $0x5e0] sm:$0xf]
    %v834 = vld [vmem:[%s1 + $0x5e4] sm:$0xf]
    %v835 = vld [vmem:[%s1 + $0x5e8] sm:$0xf]
    %v836 = vld [vmem:[%s1 + $0x5ec] sm:$0xf]
    %v837 = vld [vmem:[%s1 + $0x5f0] sm:$0xf]
    %v838 = vld [vmem:[%s1 + $0x5f4] sm:$0xf]
    %v839 = vld [vmem:[%s1 + $0x5f8] sm:$0xf]
    %v840 = vld [vmem:[%s1 + $0x5fc] sm:$0xf]
    %v841 = vld [vmem:[%s1 + $0x600] sm:$0xf]
    %v842 = vld [vmem:[%s1 + $0x604] sm:$0xf]
    %v843 = vld [vmem:[%s1 + $0x608] sm:$0xf]
    %v844 = vld [vmem:[%s1 + $0x60c] sm:$0xf]
    %v845 = vld [vmem:[%s1 + $0x610] sm:$0xf]
    %v846 = vld [vmem:[%s1 + $0x614] sm:$0xf]
    %v847 = vld [vmem:[%s1 + $0x618] sm:$0xf]
    %v848 = vld [vmem:[%s1 + $0x61c] sm:$0xf]
    %v849 = vld [vmem:[%s1 + $0x620] sm:$0xf]
    %v850 = vld [vmem:[%s1 + $0x624] sm:$0xf]
    %v851 = vld [vmem:[%s1 + $0x628] sm:$0xf]
    %v852 = vld [vmem:[%s1 + $0x62c] sm:$0xf]
    %v853 = vld [vmem:[%s1 + $0x630] sm:$0xf]
    %v854 = vld [vmem:[%s1 + $0x634] sm:$0xf]
    %v855 = vld [vmem:[%s1 + $0x638] sm:$0xf]
    %v856 = vld [vmem:[%s1 + $0x63c] sm:$0xf]
    %v857 = vld [vmem:[%s1 + $0x640] sm:$0xf]
    %v858 = vld [vmem:[%s1 + $0x644] sm:$0xf]
    %v859 = vld [vmem:[%s1 + $0x648] sm:$0xf]
    %v860 = vld [vmem:[%s1 + $0x64c] sm:$0xf]
    %v861 = vld [vmem:[%s1 + $0x650] sm:$0xf]
    %v862 = vld [vmem:[%s1 + $0x654] sm:$0xf]
    %v863 = vld [vmem:[%s1 + $0x658] sm:$0xf]
    %v864 = vld [vmem:[%s1 + $0x65c] sm:$0xf]
    %v865 = vld [vmem:[%s1 + $0x660] sm:$0xf]
    %v866 = vld [vmem:[%s1 + $0x664] sm:$0xf]
    %v867 = vld [vmem:[%s1 + $0x668] sm:$0xf]
    %v868 = vld [vmem:[%s1 + $0x66c] sm:$0xf]
    %v869 = vld [vmem:[%s1 + $0x670] sm:$0xf]
    %v870 = vld [vmem:[%s1 + $0x674] sm:$0xf]
    %v871 = vld [vmem:[%s1 + $0x678] sm:$0xf]
    %v872 = vld [vmem:[%s1 + $0x67c] sm:$0xf]
    %v873 = vld [vmem:[%s1 + $0x680] sm:$0xf]
    %v874 = vld [vmem:[%s1 + $0x684] sm:$0xf]
    %v875 = vld [vmem:[%s1 + $0x688] sm:$0xf]
    %v876 = vld [vmem:[%s1 + $0x68c] sm:$0xf]
    %v877 = vld [vmem:[%s1 + $0x690] sm:$0xf]
    %v878 = vld [vmem:[%s1 + $0x694] sm:$0xf]
    %v879 = vld [vmem:[%s1 + $0x698] sm:$0xf]
    %v880 = vld [vmem:[%s1 + $0x69c] sm:$0xf]
    %v881 = vld [vmem:[%s1 + $0x6a0] sm:$0xf]
    %v882 = vld [vmem:[%s1 + $0x6a4] sm:$0xf]
    %v883 = vld [vmem:[%s1 + $0x6a8] sm:$0xf]
    %v884 = vld [vmem:[%s1 + $0x6ac] sm:$0xf]
    %v885 = vld [vmem:[%s1 + $0x6b0] sm:$0xf]
    %v886 = vld [vmem:[%s1 + $0x6b4] sm:$0xf]
    %v887 = vld [vmem:[%s1 + $0x6b8] sm:$0xf]
    %v888 = vld [vmem:[%s1 + $0x6bc] sm:$0xf]
    %v889 = vld [vmem:[%s1 + $0x6c0] sm:$0xf]
    %v890 = vld [vmem:[%s1 + $0x6c4] sm:$0xf]
    %v891 = vld [vmem:[%s1 + $0x6c8] sm:$0xf]
    %v892 = vld [vmem:[%s1 + $0x6cc] sm:$0xf]
    %v893 = vld [vmem:[%s1 + $0x6d0] sm:$0xf]
    %v894 = vld [vmem:[%s1 + $0x6d4] sm:$0xf]
    %v895 = vld [vmem:[%s1 + $0x6d8] sm:$0xf]
    %v896 = vld [vmem:[%s1 + $0x6dc] sm:$0xf]
    %v897 = vld [vmem:[%s1 + $0x6e0] sm:$0xf]
    %v898 = vld [vmem:[%s1 + $0x6e4] sm:$0xf]
    %v899 = vld [vmem:[%s1 + $0x6e8] sm:$0xf]
    %v900 = vld [vmem:[%s1 + $0x6ec] sm:$0xf]
    %v901 = vld [vmem:[%s1 + $0x6f0] sm:$0xf]
    %v902 = vld [vmem:[%s1 + $0x6f4] sm:$0xf]
    %v903 = vld [vmem:[%s1 + $0x6f8] sm:$0xf]
    %v904 = vld [vmem:[%s1 + $0x6fc] sm:$0xf]
    %v905 = vld [vmem:[%s1 + $0x700] sm:$0xf]
    %v906 = vld [vmem:[%s1 + $0x704] sm:$0xf]
    %v907 = vld [vmem:[%s1 + $0x708] sm:$0xf]
    %v908 = vld [vmem:[%s1 + $0x70c] sm:$0xf]
    %v909 = vld [vmem:[%s1 + $0x710] sm:$0xf]
    %v910 = vld [vmem:[%s1 + $0x714] sm:$0xf]
    %v911 = vld [vmem:[%s1 + $0x718] sm:$0xf]
    %v912 = vld [vmem:[%s1 + $0x71c] sm:$0xf]
    %v913 = vld [vmem:[%s1 + $0x720] sm:$0xf]
    %v914 = vld [vmem:[%s1 + $0x724] sm:$0xf]
    %v915 = vld [vmem:[%s1 + $0x728] sm:$0xf]
    %v916 = vld [vmem:[%s1 + $0x72c] sm:$0xf]
    %v917 = vld [vmem:[%s1 + $0x730] sm:$0xf]
    %v918 = vld [vmem:[%s1 + $0x734] sm:$0xf]
    %v919 = vld [vmem:[%s1 + $0x738] sm:$0xf]
    %v920 = vld [vmem:[%s1 + $0x73c] sm:$0xf]
    %v921 = vld [vmem:[%s1 + $0x740] sm:$0xf]
    %v922 = vld [vmem:[%s1 + $0x744] sm:$0xf]
    %v923 = vld [vmem:[%s1 + $0x748] sm:$0xf]
    %v924 = vld [vmem:[%s1 + $0x74c] sm:$0xf]
    %v925 = vld [vmem:[%s1 + $0x750] sm:$0xf]
    %v926 = vld [vmem:[%s1 + $0x754] sm:$0xf]
    %v927 = vld [vmem:[%s1 + $0x758] sm:$0xf]
    %v928 = vld [vmem:[%s1 + $0x75c] sm:$0xf]
    %v929 = vld [vmem:[%s1 + $0x760] sm:$0xf]
    %v930 = vld [vmem:[%s1 + $0x764] sm:$0xf]
    %v931 = vld [vmem:[%s1 + $0x768] sm:$0xf]
    %v932 = vld [vmem:[%s1 + $0x76c] sm:$0xf]
    %v933 = vld [vmem:[%s1 + $0x770] sm:$0xf]
    %v934 = vld [vmem:[%s1 + $0x774] sm:$0xf]
    %v935 = vld [vmem:[%s1 + $0x778] sm:$0xf]
    %v936 = vld [vmem:[%s1 + $0x77c] sm:$0xf]
    %v937 = vld [vmem:[%s1 + $0x780] sm:$0xf]
    %v938 = vld [vmem:[%s1 + $0x784] sm:$0xf]
    %v939 = vld [vmem:[%s1 + $0x788] sm:$0xf]
    %v940 = vld [vmem:[%s1 + $0x78c] sm:$0xf]
    %v941 = vld [vmem:[%s1 + $0x790] sm:$0xf]
    %v942 = vld [vmem:[%s1 + $0x794] sm:$0xf]
    %v943 = vld [vmem:[%s1 + $0x798] sm:$0xf]
    %v944 = vld [vmem:[%s1 + $0x79c] sm:$0xf]
    %v945 = vld [vmem:[%s1 + $0x7a0] sm:$0xf]
    %v946 = vld [vmem:[%s1 + $0x7a4] sm:$0xf]
    %v947 = vld [vmem:[%s1 + $0x7a8] sm:$0xf]
    %v948 = vld [vmem:[%s1 + $0x7ac] sm:$0xf]
    %v949 = vld [vmem:[%s1 + $0x7b0] sm:$0xf]
    %v950 = vld [vmem:[%s1 + $0x7b4] sm:$0xf]
    %v951 = vld [vmem:[%s1 + $0x7b8] sm:$0xf]
    %v952 = vld [vmem:[%s1 + $0x7bc] sm:$0xf]
    %v953 = vld [vmem:[%s1 + $0x7c0] sm:$0xf]
    %v954 = vld [vmem:[%s1 + $0x7c4] sm:$0xf]
    %v955 = vld [vmem:[%s1 + $0x7c8] sm:$0xf]
    %v956 = vld [vmem:[%s1 + $0x7cc] sm:$0xf]
    %v957 = vld [vmem:[%s1 + $0x7d0] sm:$0xf]
    %v958 = vld [vmem:[%s1 + $0x7d4] sm:$0xf]
    %v959 = vld [vmem:[%s1 + $0x7d8] sm:$0xf]
    %v960 = vld [vmem:[%s1 + $0x7dc] sm:$0xf]
    %v961 = vld [vmem:[%s1 + $0x7e0] sm:$0xf]
    %v962 = vld [vmem:[%s1 + $0x7e4] sm:$0xf]
    %v963 = vld [vmem:[%s1 + $0x7e8] sm:$0xf]
    %v964 = vld [vmem:[%s1 + $0x7ec] sm:$0xf]
    %v965 = vld [vmem:[%s1 + $0x7f0] sm:$0xf]
    %v966 = vld [vmem:[%s1 + $0x7f4] sm:$0xf]
    %v967 = vld [vmem:[%s1 + $0x7f8] sm:$0xf]
    %v968 = vld [vmem:[%s1 + $0x7fc] sm:$0xf]
    %v969 = vld [vmem:[%s1 + $0x800] sm:$0xf]
    %v970 = vld [vmem:[%s1 + $0x804] sm:$0xf]
    %v971 = vld [vmem:[%s1 + $0x808] sm:$0xf]
    %v972 = vld [vmem:[%s1 + $0x80c] sm:$0xf]
    %v973 = vld [vmem:[%s1 + $0x810] sm:$0xf]
    %v974 = vld [vmem:[%s1 + $0x814] sm:$0xf]
    %v975 = vld [vmem:[%s1 + $0x818] sm:$0xf]
    %v976 = vld [vmem:[%s1 + $0x81c] sm:$0xf]
    %v977 = vld [vmem:[%s1 + $0x820] sm:$0xf]
    %v978 = vld [vmem:[%s1 + $0x824] sm:$0xf]
    %v979 = vld [vmem:[%s1 + $0x828] sm:$0xf]
    %v980 = vld [vmem:[%s1 + $0x82c] sm:$0xf]
    %v981 = vld [vmem:[%s1 + $0x830] sm:$0xf]
    %v982 = vld [vmem:[%s1 + $0x834] sm:$0xf]
    %v983 = vld [vmem:[%s1 + $0x838] sm:$0xf]
    %v984 = vld [vmem:[%s1 + $0x83c] sm:$0xf]
    %v985 = vld [vmem:[%s1 + $0x840] sm:$0xf]
    %v986 = vld [vmem:[%s1 + $0x844] sm:$0xf]
    %v987 = vld [vmem:[%s1 + $0x848] sm:$0xf]
    %v988 = vld [vmem:[%s1 + $0x84c] sm:$0xf]
    %v989 = vld [vmem:[%s1 + $0x850] sm:$0xf]
    %v990 = vld [vmem:[%s1 + $0x854] sm:$0xf]
    %v991 = vld [vmem:[%s1 + $0x858] sm:$0xf]
    %v992 = vld [vmem:[%s1 + $0x85c] sm:$0xf]
    %v993 = vld [vmem:[%s1 + $0x860] sm:$0xf]
    %v994 = vld [vmem:[%s1 + $0x864] sm:$0xf]
    %v995 = vld [vmem:[%s1 + $0x868] sm:$0xf]
    %v996 = vld [vmem:[%s1 + $0x86c] sm:$0xf]
    %v997 = vld [vmem:[%s1 + $0x870] sm:$0xf]
    %v998 = vld [vmem:[%s1 + $0x874] sm:$0xf]
    %v999 = vld [vmem:[%s1 + $0x878] sm:$0xf]
    %v1000 = vld [vmem:[%s1 + $0x87c] sm:$0xf]
    %v1001 = vld [vmem:[%s1 + $0x880] sm:$0xf]
    %v1002 = vld [vmem:[%s1 + $0x884] sm:$0xf]
    %v1003 = vld [vmem:[%s1 + $0x888] sm:$0xf]
    %v1004 = vld [vmem:[%s1 + $0x88c] sm:$0xf]
    %v1005 = vld [vmem:[%s1 + $0x890] sm:$0xf]
    %v1006 = vld [vmem:[%s1 + $0x894] sm:$0xf]
    %v1007 = vld [vmem:[%s1 + $0x898] sm:$0xf]
    %v1008 = vld [vmem:[%s1 + $0x89c] sm:$0xf]
    %v1009 = vld [vmem:[%s1 + $0x8a0] sm:$0xf]
    %v1010 = vld [vmem:[%s1 + $0x8a4] sm:$0xf]
    %v1011 = vld [vmem:[%s1 + $0x8a8] sm:$0xf]
    %v1012 = vld [vmem:[%s1 + $0x8ac] sm:$0xf]
    %v1013 = vld [vmem:[%s1 + $0x8b0] sm:$0xf]
    %v1014 = vld [vmem:[%s1 + $0x8b4] sm:$0xf]
    %v1015 = vld [vmem:[%s1 + $0x8b8] sm:$0xf]
    %v1016 = vld [vmem:[%s1 + $0x8bc] sm:$0xf]
    %v1017 = vld [vmem:[%s1 + $0x8c0] sm:$0xf]
    %v1018 = vld [vmem:[%s1 + $0x8c4] sm:$0xf]
    %v1019 = vld [vmem:[%s1 + $0x8c8] sm:$0xf]
    %v1020 = vld [vmem:[%s1 + $0x8cc] sm:$0xf]
    %v1021 = vld [vmem:[%s1 + $0x8d0] sm:$0xf]
    %v1022 = vld [vmem:[%s1 + $0x8d4] sm:$0xf]
    %v1023 = vld [vmem:[%s1 + $0x8d8] sm:$0xf]
    %v1024 = vld [vmem:[%s1 + $0x8dc] sm:$0xf]
    %v1025 = vld [vmem:[%s1 + $0x8e0] sm:$0xf]
    %v1026 = vld [vmem:[%s1 + $0x8e4] sm:$0xf]
    %v1027 = vld [vmem:[%s1 + $0x8e8] sm:$0xf]
    %v1028 = vld [vmem:[%s1 + $0x8ec] sm:$0xf]
    %v1029 = vld [vmem:[%s1 + $0x8f0] sm:$0xf]
    %v1030 = vld [vmem:[%s1 + $0x8f4] sm:$0xf]
    %v1031 = vld [vmem:[%s1 + $0x8f8] sm:$0xf]
    %v1032 = vld [vmem:[%s1 + $0x8fc] sm:$0xf]
    %v1033 = vld [vmem:[%s1 + $0x900] sm:$0xf]
    %v1034 = vld [vmem:[%s1 + $0x904] sm:$0xf]
    %v1035 = vld [vmem:[%s1 + $0x908] sm:$0xf]
    %v1036 = vld [vmem:[%s1 + $0x90c] sm:$0xf]
    %v1037 = vld [vmem:[%s1 + $0x910] sm:$0xf]
    %v1038 = vld [vmem:[%s1 + $0x914] sm:$0xf]
    %v1039 = vld [vmem:[%s1 + $0x918] sm:$0xf]
    %v1040 = vld [vmem:[%s1 + $0x91c] sm:$0xf]
    %v1041 = vld [vmem:[%s1 + $0x920] sm:$0xf]
    %v1042 = vld [vmem:[%s1 + $0x924] sm:$0xf]
    %v1043 = vld [vmem:[%s1 + $0x928] sm:$0xf]
    %v1044 = vld [vmem:[%s1 + $0x92c] sm:$0xf]
    %v1045 = vld [vmem:[%s1 + $0x930] sm:$0xf]
    %v1046 = vld [vmem:[%s1 + $0x934] sm:$0xf]
    %v1047 = vld [vmem:[%s1 + $0x938] sm:$0xf]
    %v1048 = vld [vmem:[%s1 + $0x93c] sm:$0xf]
    %v1049 = vld [vmem:[%s1 + $0x940] sm:$0xf]
    %v1050 = vld [vmem:[%s1 + $0x944] sm:$0xf]
    %v1051 = vld [vmem:[%s1 + $0x948] sm:$0xf]
    %v1052 = vld [vmem:[%s1 + $0x94c] sm:$0xf]
    %v1053 = vld [vmem:[%s1 + $0x950] sm:$0xf]
    %v1054 = vld [vmem:[%s1 + $0x954] sm:$0xf]
    %v1055 = vld [vmem:[%s1 + $0x958] sm:$0xf]
    %v1056 = vld [vmem:[%s1 + $0x95c] sm:$0xf]
    %v1057 = vld [vmem:[%s1 + $0x960] sm:$0xf]
    %v1058 = vld [vmem:[%s1 + $0x964] sm:$0xf]
    %v1059 = vld [vmem:[%s1 + $0x968] sm:$0xf]
    %v1060 = vld [vmem:[%s1 + $0x96c] sm:$0xf]
    %v1061 = vld [vmem:[%s1 + $0x970] sm:$0xf]
    %v1062 = vld [vmem:[%s1 + $0x974] sm:$0xf]
    %v1063 = vld [vmem:[%s1 + $0x978] sm:$0xf]
    %v1064 = vld [vmem:[%s1 + $0x97c] sm:$0xf]
    %v1065 = vld [vmem:[%s1 + $0x980] sm:$0xf]
    %v1066 = vld [vmem:[%s1 + $0x984] sm:$0xf]
    %v1067 = vld [vmem:[%s1 + $0x988] sm:$0xf]
    %v1068 = vld [vmem:[%s1 + $0x98c] sm:$0xf]
    %v1069 = vld [vmem:[%s1 + $0x990] sm:$0xf]
    %v1070 = vld [vmem:[%s1 + $0x994] sm:$0xf]
    %v1071 = vld [vmem:[%s1 + $0x998] sm:$0xf]
    %v1072 = vld [vmem:[%s1 + $0x99c] sm:$0xf]
    %v1073 = vld [vmem:[%s1 + $0x9a0] sm:$0xf]
    %v1074 = vld [vmem:[%s1 + $0x9a4] sm:$0xf]
    %v1075 = vld [vmem:[%s1 + $0x9a8] sm:$0xf]
    %v1076 = vld [vmem:[%s1 + $0x9ac] sm:$0xf]
    %v1077 = vld [vmem:[%s1 + $0x9b0] sm:$0xf]
    %v1078 = vld [vmem:[%s1 + $0x9b4] sm:$0xf]
    %v1079 = vld [vmem:[%s1 + $0x9b8] sm:$0xf]
    %v1080 = vld [vmem:[%s1 + $0x9bc] sm:$0xf]
    %v1081 = vld [vmem:[%s1 + $0x9c0] sm:$0xf]
    %v1082 = vld [vmem:[%s1 + $0x9c4] sm:$0xf]
    %v1083 = vld [vmem:[%s1 + $0x9c8] sm:$0xf]
    %v1084 = vld [vmem:[%s1 + $0x9cc] sm:$0xf]
    %v1085 = vld [vmem:[%s1 + $0x9d0] sm:$0xf]
    %v1086 = vld [vmem:[%s1 + $0x9d4] sm:$0xf]
    %v1087 = vld [vmem:[%s1 + $0x9d8] sm:$0xf]
    %v1088 = vld [vmem:[%s1 + $0x9dc] sm:$0xf]
    %v1089 = vld [vmem:[%s1 + $0x9e0] sm:$0xf]
    %v1090 = vld [vmem:[%s1 + $0x9e4] sm:$0xf]
    %v1091 = vld [vmem:[%s1 + $0x9e8] sm:$0xf]
    %v1092 = vld [vmem:[%s1 + $0x9ec] sm:$0xf]
    %v1093 = vld [vmem:[%s1 + $0x9f0] sm:$0xf]
    %v1094 = vld [vmem:[%s1 + $0x9f4] sm:$0xf]
    %v1095 = vld [vmem:[%s1 + $0x9f8] sm:$0xf]
    %v1096 = vld [vmem:[%s1 + $0x9fc] sm:$0xf]
    %v1097 = vld [vmem:[%s1 + $0xa00] sm:$0xf]
    %v1098 = vld [vmem:[%s1 + $0xa04] sm:$0xf]
    %v1099 = vld [vmem:[%s1 + $0xa08] sm:$0xf]
    %v1100 = vld [vmem:[%s1 + $0xa0c] sm:$0xf]
    %v1101 = vld [vmem:[%s1 + $0xa10] sm:$0xf]
    %v1102 = vld [vmem:[%s1 + $0xa14] sm:$0xf]
    %v1103 = vld [vmem:[%s1 + $0xa18] sm:$0xf]
    %v1104 = vld [vmem:[%s1 + $0xa1c] sm:$0xf]
    %v1105 = vld [vmem:[%s1 + $0xa20] sm:$0xf]
    %v1106 = vld [vmem:[%s1 + $0xa24] sm:$0xf]
    %v1107 = vld [vmem:[%s1 + $0xa28] sm:$0xf]
    %v1108 = vld [vmem:[%s1 + $0xa2c] sm:$0xf]
    %v1109 = vld [vmem:[%s1 + $0xa30] sm:$0xf]
    %v1110 = vld [vmem:[%s1 + $0xa34] sm:$0xf]
    %v1111 = vld [vmem:[%s1 + $0xa38] sm:$0xf]
    %v1112 = vld [vmem:[%s1 + $0xa3c] sm:$0xf]
    %v1113 = vld [vmem:[%s1 + $0xa40] sm:$0xf]
    %v1114 = vld [vmem:[%s1 + $0xa44] sm:$0xf]
    %v1115 = vld [vmem:[%s1 + $0xa48] sm:$0xf]
    %v1116 = vld [vmem:[%s1 + $0xa4c] sm:$0xf]
    %v1117 = vld [vmem:[%s1 + $0xa50] sm:$0xf]
    %v1118 = vld [vmem:[%s1 + $0xa54] sm:$0xf]
    %v1119 = vld [vmem:[%s1 + $0xa58] sm:$0xf]
    %v1120 = vld [vmem:[%s1 + $0xa5c] sm:$0xf]
    %v1121 = vld [vmem:[%s1 + $0xa60] sm:$0xf]
    %v1122 = vld [vmem:[%s1 + $0xa64] sm:$0xf]
    %v1123 = vld [vmem:[%s1 + $0xa68] sm:$0xf]
    %v1124 = vld [vmem:[%s1 + $0xa6c] sm:$0xf]
    %v1125 = vld [vmem:[%s1 + $0xa70] sm:$0xf]
    %v1126 = vld [vmem:[%s1 + $0xa74] sm:$0xf]
    %v1127 = vld [vmem:[%s1 + $0xa78] sm:$0xf]
    %v1128 = vld [vmem:[%s1 + $0xa7c] sm:$0xf]
    %v1129 = vld [vmem:[%s1 + $0xa80] sm:$0xf]
    %v1130 = vld [vmem:[%s1 + $0xa84] sm:$0xf]
    %v1131 = vld [vmem:[%s1 + $0xa88] sm:$0xf]
    %v1132 = vld [vmem:[%s1 + $0xa8c] sm:$0xf]
    %v1133 = vld [vmem:[%s1 + $0xa90] sm:$0xf]
    %v1134 = vld [vmem:[%s1 + $0xa94] sm:$0xf]
    %v1135 = vld [vmem:[%s1 + $0xa98] sm:$0xf]
    %v1136 = vld [vmem:[%s1 + $0xa9c] sm:$0xf]
    %v1137 = vld [vmem:[%s1 + $0xaa0] sm:$0xf]
    %v1138 = vld [vmem:[%s1 + $0xaa4] sm:$0xf]
    %v1139 = vld [vmem:[%s1 + $0xaa8] sm:$0xf]
    %v1140 = vld [vmem:[%s1 + $0xaac] sm:$0xf]
    %v1141 = vld [vmem:[%s1 + $0xab0] sm:$0xf]
    %v1142 = vld [vmem:[%s1 + $0xab4] sm:$0xf]
    %v1143 = vld [vmem:[%s1 + $0xab8] sm:$0xf]
    %v1144 = vld [vmem:[%s1 + $0xabc] sm:$0xf]
    %v1145 = vld [vmem:[%s1 + $0xac0] sm:$0xf]
    %v1146 = vld [vmem:[%s1 + $0xac4] sm:$0xf]
    %v1147 = vld [vmem:[%s1 + $0xac8] sm:$0xf]
    %v1148 = vld [vmem:[%s1 + $0xacc] sm:$0xf]
    %v1149 = vld [vmem:[%s1 + $0xad0] sm:$0xf]
    %v1150 = vld [vmem:[%s1 + $0xad4] sm:$0xf]
    %v1151 = vld [vmem:[%s1 + $0xad8] sm:$0xf]
    %v1152 = vld [vmem:[%s1 + $0xadc] sm:$0xf]
    %v1153 = vld [vmem:[%s1 + $0xae0] sm:$0xf]
    %v1154 = vld [vmem:[%s1 + $0xae4] sm:$0xf]
    %v1155 = vld [vmem:[%s1 + $0xae8] sm:$0xf]
    %v1156 = vld [vmem:[%s1 + $0xaec] sm:$0xf]
    %v1157 = vld [vmem:[%s1 + $0xaf0] sm:$0xf]
    %v1158 = vld [vmem:[%s1 + $0xaf4] sm:$0xf]
    %v1159 = vld [vmem:[%s1 + $0xaf8] sm:$0xf]
    %v1160 = vld [vmem:[%s1 + $0xafc] sm:$0xf]
    %v1161 = vld [vmem:[%s1 + $0xb00] sm:$0xf]
    %v1162 = vld [vmem:[%s1 + $0xb04] sm:$0xf]
    %v1163 = vld [vmem:[%s1 + $0xb08] sm:$0xf]
    %v1164 = vld [vmem:[%s1 + $0xb0c] sm:$0xf]
    %v1165 = vld [vmem:[%s1 + $0xb10] sm:$0xf]
    %v1166 = vld [vmem:[%s1 + $0xb14] sm:$0xf]
    %v1167 = vld [vmem:[%s1 + $0xb18] sm:$0xf]
    %v1168 = vld [vmem:[%s1 + $0xb1c] sm:$0xf]
    %v1169 = vld [vmem:[%s1 + $0xb20] sm:$0xf]
    %v1170 = vld [vmem:[%s1 + $0xb24] sm:$0xf]
    %v1171 = vld [vmem:[%s1 + $0xb28] sm:$0xf]
    %v1172 = vld [vmem:[%s1 + $0xb2c] sm:$0xf]
    %v1173 = vld [vmem:[%s1 + $0xb30] sm:$0xf]
    %v1174 = vld [vmem:[%s1 + $0xb34] sm:$0xf]
    %v1175 = vld [vmem:[%s1 + $0xb38] sm:$0xf]
    %v1176 = vld [vmem:[%s1 + $0xb3c] sm:$0xf]
    %v1177 = vld [vmem:[%s1 + $0xb40] sm:$0xf]
    %v1178 = vld [vmem:[%s1 + $0xb44] sm:$0xf]
    %v1179 = vld [vmem:[%s1 + $0xb48] sm:$0xf]
    %v1180 = vld [vmem:[%s1 + $0xb4c] sm:$0xf]
    %v1181 = vld [vmem:[%s1 + $0xb50] sm:$0xf]
    %v1182 = vld [vmem:[%s1 + $0xb54] sm:$0xf]
    %v1183 = vld [vmem:[%s1 + $0xb58] sm:$0xf]
    %v1184 = vld [vmem:[%s1 + $0xb5c] sm:$0xf]
    %v1185 = vld [vmem:[%s1 + $0xb60] sm:$0xf]
    %v1186 = vld [vmem:[%s1 + $0xb64] sm:$0xf]
    %v1187 = vld [vmem:[%s1 + $0xb68] sm:$0xf]
    %v1188 = vld [vmem:[%s1 + $0xb6c] sm:$0xf]
    %v1189 = vld [vmem:[%s1 + $0xb70] sm:$0xf]
    %v1190 = vld [vmem:[%s1 + $0xb74] sm:$0xf]
    %v1191 = vld [vmem:[%s1 + $0xb78] sm:$0xf]
    %v1192 = vld [vmem:[%s1 + $0xb7c] sm:$0xf]
    %v1193 = vld [vmem:[%s1 + $0xb80] sm:$0xf]
    %v1194 = vld [vmem:[%s1 + $0xb84] sm:$0xf]
    %v1195 = vld [vmem:[%s1 + $0xb88] sm:$0xf]
    %v1196 = vld [vmem:[%s1 + $0xb8c] sm:$0xf]
    %v1197 = vld [vmem:[%s1 + $0xb90] sm:$0xf]
    %v1198 = vld [vmem:[%s1 + $0xb94] sm:$0xf]
    %v1199 = vld [vmem:[%s1 + $0xb98] sm:$0xf]
    %v1200 = vld [vmem:[%s1 + $0xb9c] sm:$0xf]
    %v1201 = vld [vmem:[%s1 + $0xba0] sm:$0xf]
    %v1202 = vld [vmem:[%s1 + $0xba4] sm:$0xf]
    %v1203 = vld [vmem:[%s1 + $0xba8] sm:$0xf]
    %v1204 = vld [vmem:[%s1 + $0xbac] sm:$0xf]
    %v1205 = vld [vmem:[%s1 + $0xbb0] sm:$0xf]
    %v1206 = vld [vmem:[%s1 + $0xbb4] sm:$0xf]
    %v1207 = vld [vmem:[%s1 + $0xbb8] sm:$0xf]
    %v1208 = vld [vmem:[%s1 + $0xbbc] sm:$0xf]
    %v1209 = vld [vmem:[%s1 + $0xbc0] sm:$0xf]
    %v1210 = vld [vmem:[%s1 + $0xbc4] sm:$0xf]
    %v1211 = vld [vmem:[%s1 + $0xbc8] sm:$0xf]
    %v1212 = vld [vmem:[%s1 + $0xbcc] sm:$0xf]
    %v1213 = vld [vmem:[%s1 + $0xbd0] sm:$0xf]
    %v1214 = vld [vmem:[%s1 + $0xbd4] sm:$0xf]
    %v1215 = vld [vmem:[%s1 + $0xbd8] sm:$0xf]
    %v1216 = vld [vmem:[%s1 + $0xbdc] sm:$0xf]
    %v1217 = vld [vmem:[%s1 + $0xbe0] sm:$0xf]
    %v1218 = vld [vmem:[%s1 + $0xbe4] sm:$0xf]
    %v1219 = vld [vmem:[%s1 + $0xbe8] sm:$0xf]
    %v1220 = vld [vmem:[%s1 + $0xbec] sm:$0xf]
    %v1221 = vld [vmem:[%s1 + $0xbf0] sm:$0xf]
    %v1222 = vld [vmem:[%s1 + $0xbf4] sm:$0xf]
    %v1223 = vld [vmem:[%s1 + $0xbf8] sm:$0xf]
    %v1224 = vld [vmem:[%s1 + $0xbfc] sm:$0xf]
    %v1225 = vld [vmem:[%s1 + $0xc00] sm:$0xf]
    %v1226 = vld [vmem:[%s1 + $0xc04] sm:$0xf]
    %v1227 = vld [vmem:[%s1 + $0xc08] sm:$0xf]
    %v1228 = vld [vmem:[%s1 + $0xc0c] sm:$0xf]
    %v1229 = vld [vmem:[%s1 + $0xc10] sm:$0xf]
    %v1230 = vld [vmem:[%s1 + $0xc14] sm:$0xf]
    %v1231 = vld [vmem:[%s1 + $0xc18] sm:$0xf]
    %v1232 = vld [vmem:[%s1 + $0xc1c] sm:$0xf]
    %v1233 = vld [vmem:[%s1 + $0xc20] sm:$0xf]
    %v1234 = vld [vmem:[%s1 + $0xc24] sm:$0xf]
    %v1235 = vld [vmem:[%s1 + $0xc28] sm:$0xf]
    %v1236 = vld [vmem:[%s1 + $0xc2c] sm:$0xf]
    %v1237 = vld [vmem:[%s1 + $0xc30] sm:$0xf]
    %v1238 = vld [vmem:[%s1 + $0xc34] sm:$0xf]
    %v1239 = vld [vmem:[%s1 + $0xc38] sm:$0xf]
    %v1240 = vld [vmem:[%s1 + $0xc3c] sm:$0xf]
    %v1241 = vld [vmem:[%s1 + $0xc40] sm:$0xf]
    %v1242 = vld [vmem:[%s1 + $0xc44] sm:$0xf]
    %v1243 = vld [vmem:[%s1 + $0xc48] sm:$0xf]
    %v1244 = vld [vmem:[%s1 + $0xc4c] sm:$0xf]
    %v1245 = vld [vmem:[%s1 + $0xc50] sm:$0xf]
    %v1246 = vld [vmem:[%s1 + $0xc54] sm:$0xf]
    %v1247 = vld [vmem:[%s1 + $0xc58] sm:$0xf]
    %v1248 = vld [vmem:[%s1 + $0xc5c] sm:$0xf]
    %v1249 = vld [vmem:[%s1 + $0xc60] sm:$0xf]
    %v1250 = vld [vmem:[%s1 + $0xc64] sm:$0xf]
    %v1251 = vld [vmem:[%s1 + $0xc68] sm:$0xf]
    %v1252 = vld [vmem:[%s1 + $0xc6c] sm:$0xf]
    %v1253 = vld [vmem:[%s1 + $0xc70] sm:$0xf]
    %v1254 = vld [vmem:[%s1 + $0xc74] sm:$0xf]
    %v1255 = vld [vmem:[%s1 + $0xc78] sm:$0xf]
    %v1256 = vld [vmem:[%s1 + $0xc7c] sm:$0xf]
    %v1257 = vld [vmem:[%s1 + $0xc80] sm:$0xf]
    %v1258 = vld [vmem:[%s1 + $0xc84] sm:$0xf]
    %v1259 = vld [vmem:[%s1 + $0xc88] sm:$0xf]
    %v1260 = vld [vmem:[%s1 + $0xc8c] sm:$0xf]
    %v1261 = vld [vmem:[%s1 + $0xc90] sm:$0xf]
    %v1262 = vld [vmem:[%s1 + $0xc94] sm:$0xf]
    %v1263 = vld [vmem:[%s1 + $0xc98] sm:$0xf]
    %v1264 = vld [vmem:[%s1 + $0xc9c] sm:$0xf]
    %v1265 = vld [vmem:[%s1 + $0xca0] sm:$0xf]
    %v1266 = vld [vmem:[%s1 + $0xca4] sm:$0xf]
    %v1267 = vld [vmem:[%s1 + $0xca8] sm:$0xf]
    %v1268 = vld [vmem:[%s1 + $0xcac] sm:$0xf]
    %v1269 = vld [vmem:[%s1 + $0xcb0] sm:$0xf]
    %v1270 = vld [vmem:[%s1 + $0xcb4] sm:$0xf]
    %v1271 = vld [vmem:[%s1 + $0xcb8] sm:$0xf]
    %v1272 = vld [vmem:[%s1 + $0xcbc] sm:$0xf]
    %v1273 = vld [vmem:[%s1 + $0xcc0] sm:$0xf]
    %v1274 = vld [vmem:[%s1 + $0xcc4] sm:$0xf]
    %v1275 = vld [vmem:[%s1 + $0xcc8] sm:$0xf]
    %v1276 = vld [vmem:[%s1 + $0xccc] sm:$0xf]
    %v1277 = vld [vmem:[%s1 + $0xcd0] sm:$0xf]
    %v1278 = vld [vmem:[%s1 + $0xcd4] sm:$0xf]
    %v1279 = vld [vmem:[%s1 + $0xcd8] sm:$0xf]
    %v1280 = vld [vmem:[%s1 + $0xcdc] sm:$0xf]
    %v1281 = vld [vmem:[%s1 + $0xce0] sm:$0xf]
    %v1282 = vld [vmem:[%s1 + $0xce4] sm:$0xf]
    %v1283 = vld [vmem:[%s1 + $0xce8] sm:$0xf]
    %v1284 = vld [vmem:[%s1 + $0xcec] sm:$0xf]
    %v1285 = vld [vmem:[%s1 + $0xcf0] sm:$0xf]
    %v1286 = vld [vmem:[%s1 + $0xcf4] sm:$0xf]
    %v1287 = vld [vmem:[%s1 + $0xcf8] sm:$0xf]
    %v1288 = vld [vmem:[%s1 + $0xcfc] sm:$0xf]
    %v1289 = vld [vmem:[%s1 + $0xd00] sm:$0xf]
    %v1290 = vld [vmem:[%s1 + $0xd04] sm:$0xf]
    %v1291 = vld [vmem:[%s1 + $0xd08] sm:$0xf]
    %v1292 = vld [vmem:[%s1 + $0xd0c] sm:$0xf]
    %v1293 = vld [vmem:[%s1 + $0xd10] sm:$0xf]
    %v1294 = vld [vmem:[%s1 + $0xd14] sm:$0xf]
    %v1295 = vld [vmem:[%s1 + $0xd18] sm:$0xf]
    %v1296 = vld [vmem:[%s1 + $0xd1c] sm:$0xf]
    %v1297 = vld [vmem:[%s1 + $0xd20] sm:$0xf]
    %v1298 = vld [vmem:[%s1 + $0xd24] sm:$0xf]
    %v1299 = vld [vmem:[%s1 + $0xd28] sm:$0xf]
    %v1300 = vld [vmem:[%s1 + $0xd2c] sm:$0xf]
    %v1301 = vld [vmem:[%s1 + $0xd30] sm:$0xf]
    %v1302 = vld [vmem:[%s1 + $0xd34] sm:$0xf]
    %v1303 = vld [vmem:[%s1 + $0xd38] sm:$0xf]
    %v1304 = vld [vmem:[%s1 + $0xd3c] sm:$0xf]
    %v1305 = vld [vmem:[%s1 + $0xd40] sm:$0xf]
    %v1306 = vld [vmem:[%s1 + $0xd44] sm:$0xf]
    %v1307 = vld [vmem:[%s1 + $0xd48] sm:$0xf]
    %v1308 = vld [vmem:[%s1 + $0xd4c] sm:$0xf]
    %v1309 = vld [vmem:[%s1 + $0xd50] sm:$0xf]
    %v1310 = vld [vmem:[%s1 + $0xd54] sm:$0xf]
    %v1311 = vld [vmem:[%s1 + $0xd58] sm:$0xf]
    %v1312 = vld [vmem:[%s1 + $0xd5c] sm:$0xf]
    %v1313 = vld [vmem:[%s1 + $0xd60] sm:$0xf]
    %v1314 = vld [vmem:[%s1 + $0xd64] sm:$0xf]
    %v1315 = vld [vmem:[%s1 + $0xd68] sm:$0xf]
    %v1316 = vld [vmem:[%s1 + $0xd6c] sm:$0xf]
    %v1317 = vld [vmem:[%s1 + $0xd70] sm:$0xf]
    %v1318 = vld [vmem:[%s1 + $0xd74] sm:$0xf]
    %v1319 = vld [vmem:[%s1 + $0xd78] sm:$0xf]
    %v1320 = vld [vmem:[%s1 + $0xd7c] sm:$0xf]
    %v1321 = vld [vmem:[%s1 + $0xd80] sm:$0xf]
    %v1322 = vld [vmem:[%s1 + $0xd84] sm:$0xf]
    %v1323 = vld [vmem:[%s1 + $0xd88] sm:$0xf]
    %v1324 = vld [vmem:[%s1 + $0xd8c] sm:$0xf]
    %v1325 = vld [vmem:[%s1 + $0xd90] sm:$0xf]
    %v1326 = vld [vmem:[%s1 + $0xd94] sm:$0xf]
    %v1327 = vld [vmem:[%s1 + $0xd98] sm:$0xf]
    %v1328 = vld [vmem:[%s1 + $0xd9c] sm:$0xf]
    %v1329 = vld [vmem:[%s1 + $0xda0] sm:$0xf]
    %v1330 = vld [vmem:[%s1 + $0xda4] sm:$0xf]
    %v1331 = vld [vmem:[%s1 + $0xda8] sm:$0xf]
    %v1332 = vld [vmem:[%s1 + $0xdac] sm:$0xf]
    %v1333 = vld [vmem:[%s1 + $0xdb0] sm:$0xf]
    %v1334 = vld [vmem:[%s1 + $0xdb4] sm:$0xf]
    %v1335 = vld [vmem:[%s1 + $0xdb8] sm:$0xf]
    %v1336 = vld [vmem:[%s1 + $0xdbc] sm:$0xf]
    %v1337 = vld [vmem:[%s1 + $0xdc0] sm:$0xf]
    %v1338 = vld [vmem:[%s1 + $0xdc4] sm:$0xf]
    %v1339 = vld [vmem:[%s1 + $0xdc8] sm:$0xf]
    %v1340 = vld [vmem:[%s1 + $0xdcc] sm:$0xf]
    %v1341 = vld [vmem:[%s1 + $0xdd0] sm:$0xf]
    %v1342 = vld [vmem:[%s1 + $0xdd4] sm:$0xf]
    %v1343 = vld [vmem:[%s1 + $0xdd8] sm:$0xf]
    %v1344 = vld [vmem:[%s1 + $0xddc] sm:$0xf]
    %v1345 = vld [vmem:[%s1 + $0xde0] sm:$0xf]
    %v1346 = vld [vmem:[%s1 + $0xde4] sm:$0xf]
    %v1347 = vld [vmem:[%s1 + $0xde8] sm:$0xf]
    %v1348 = vld [vmem:[%s1 + $0xdec] sm:$0xf]
    %v1349 = vld [vmem:[%s1 + $0xdf0] sm:$0xf]
    %v1350 = vld [vmem:[%s1 + $0xdf4] sm:$0xf]
    %v1351 = vld [vmem:[%s1 + $0xdf8] sm:$0xf]
    %v1352 = vld [vmem:[%s1 + $0xdfc] sm:$0xf]
    %v1353 = vld [vmem:[%s1 + $0xe00] sm:$0xf]
    %v1354 = vld [vmem:[%s1 + $0xe04] sm:$0xf]
    %v1355 = vld [vmem:[%s1 + $0xe08] sm:$0xf]
    %v1356 = vld [vmem:[%s1 + $0xe0c] sm:$0xf]
    %v1357 = vld [vmem:[%s1 + $0xe10] sm:$0xf]
    %v1358 = vld [vmem:[%s1 + $0xe14] sm:$0xf]
    %v1359 = vld [vmem:[%s1 + $0xe18] sm:$0xf]
    %v1360 = vld [vmem:[%s1 + $0xe1c] sm:$0xf]
    %v1361 = vld [vmem:[%s1 + $0xe20] sm:$0xf]
    %v1362 = vld [vmem:[%s1 + $0xe24] sm:$0xf]
    %v1363 = vld [vmem:[%s1 + $0xe28] sm:$0xf]
    %v1364 = vld [vmem:[%s1 + $0xe2c] sm:$0xf]
    %v1365 = vld [vmem:[%s1 + $0xe30] sm:$0xf]
    %v1366 = vld [vmem:[%s1 + $0xe34] sm:$0xf]
    %v1367 = vld [vmem:[%s1 + $0xe38] sm:$0xf]
    %v1368 = vld [vmem:[%s1 + $0xe3c] sm:$0xf]
    %v1369 = vld [vmem:[%s1 + $0xe40] sm:$0xf]
    %v1370 = vld [vmem:[%s1 + $0xe44] sm:$0xf]
    %v1371 = vld [vmem:[%s1 + $0xe48] sm:$0xf]
    %v1372 = vld [vmem:[%s1 + $0xe4c] sm:$0xf]
    %v1373 = vld [vmem:[%s1 + $0xe50] sm:$0xf]
    %v1374 = vld [vmem:[%s1 + $0xe54] sm:$0xf]
    %v1375 = vld [vmem:[%s1 + $0xe58] sm:$0xf]
    %v1376 = vld [vmem:[%s1 + $0xe5c] sm:$0xf]
    %v1377 = vld [vmem:[%s1 + $0xe60] sm:$0xf]
    %v1378 = vld [vmem:[%s1 + $0xe64] sm:$0xf]
    %v1379 = vld [vmem:[%s1 + $0xe68] sm:$0xf]
    %v1380 = vld [vmem:[%s1 + $0xe6c] sm:$0xf]
    %v1381 = vld [vmem:[%s1 + $0xe70] sm:$0xf]
    %v1382 = vld [vmem:[%s1 + $0xe74] sm:$0xf]
    %v1383 = vld [vmem:[%s1 + $0xe78] sm:$0xf]
    %v1384 = vld [vmem:[%s1 + $0xe7c] sm:$0xf]
    %v1385 = vld [vmem:[%s1 + $0xe80] sm:$0xf]
    %v1386 = vld [vmem:[%s1 + $0xe84] sm:$0xf]
    %v1387 = vld [vmem:[%s1 + $0xe88] sm:$0xf]
    %v1388 = vld [vmem:[%s1 + $0xe8c] sm:$0xf]
    %v1389 = vld [vmem:[%s1 + $0xe90] sm:$0xf]
    %v1390 = vld [vmem:[%s1 + $0xe94] sm:$0xf]
    %v1391 = vld [vmem:[%s1 + $0xe98] sm:$0xf]
    %v1392 = vld [vmem:[%s1 + $0xe9c] sm:$0xf]
    %v1393 = vld [vmem:[%s1 + $0xea0] sm:$0xf]
    %v1394 = vld [vmem:[%s1 + $0xea4] sm:$0xf]
    %v1395 = vld [vmem:[%s1 + $0xea8] sm:$0xf]
    %v1396 = vld [vmem:[%s1 + $0xeac] sm:$0xf]
    %v1397 = vld [vmem:[%s1 + $0xeb0] sm:$0xf]
    %v1398 = vld [vmem:[%s1 + $0xeb4] sm:$0xf]
    %v1399 = vld [vmem:[%s1 + $0xeb8] sm:$0xf]
    %v1400 = vld [vmem:[%s1 + $0xebc] sm:$0xf]
    %v1401 = vld [vmem:[%s1 + $0xec0] sm:$0xf]
    %v1402 = vld [vmem:[%s1 + $0xec4] sm:$0xf]
    %v1403 = vld [vmem:[%s1 + $0xec8] sm:$0xf]
    %v1404 = vld [vmem:[%s1 + $0xecc] sm:$0xf]
    %v1405 = vld [vmem:[%s1 + $0xed0] sm:$0xf]
    %v1406 = vld [vmem:[%s1 + $0xed4] sm:$0xf]
    %v1407 = vld [vmem:[%s1 + $0xed8] sm:$0xf]
    %v1408 = vld [vmem:[%s1 + $0xedc] sm:$0xf]
    %v1409 = vld [vmem:[%s1 + $0xee0] sm:$0xf]
    %v1410 = vld [vmem:[%s1 + $0xee4] sm:$0xf]
    %v1411 = vld [vmem:[%s1 + $0xee8] sm:$0xf]
    %v1412 = vld [vmem:[%s1 + $0xeec] sm:$0xf]
    %v1413 = vld [vmem:[%s1 + $0xef0] sm:$0xf]
    %v1414 = vld [vmem:[%s1 + $0xef4] sm:$0xf]
    %v1415 = vld [vmem:[%s1 + $0xef8] sm:$0xf]
    %v1416 = vld [vmem:[%s1 + $0xefc] sm:$0xf]
    %v1417 = vld [vmem:[%s1 + $0xf00] sm:$0xf]
    %v1418 = vld [vmem:[%s1 + $0xf04] sm:$0xf]
    %v1419 = vld [vmem:[%s1 + $0xf08] sm:$0xf]
    %v1420 = vld [vmem:[%s1 + $0xf0c] sm:$0xf]
    %v1421 = vld [vmem:[%s1 + $0xf10] sm:$0xf]
    %v1422 = vld [vmem:[%s1 + $0xf14] sm:$0xf]
    %v1423 = vld [vmem:[%s1 + $0xf18] sm:$0xf]
    %v1424 = vld [vmem:[%s1 + $0xf1c] sm:$0xf]
    %v1425 = vld [vmem:[%s1 + $0xf20] sm:$0xf]
    %v1426 = vld [vmem:[%s1 + $0xf24] sm:$0xf]
    %v1427 = vld [vmem:[%s1 + $0xf28] sm:$0xf]
    %v1428 = vld [vmem:[%s1 + $0xf2c] sm:$0xf]
    %v1429 = vld [vmem:[%s1 + $0xf30] sm:$0xf]
    %v1430 = vld [vmem:[%s1 + $0xf34] sm:$0xf]
    %v1431 = vld [vmem:[%s1 + $0xf38] sm:$0xf]
    %v1432 = vld [vmem:[%s1 + $0xf3c] sm:$0xf]
    %v1433 = vld [vmem:[%s1 + $0xf40] sm:$0xf]
    %v1434 = vld [vmem:[%s1 + $0xf44] sm:$0xf]
    %v1435 = vld [vmem:[%s1 + $0xf48] sm:$0xf]
    %v1436 = vld [vmem:[%s1 + $0xf4c] sm:$0xf]
    %v1437 = vld [vmem:[%s1 + $0xf50] sm:$0xf]
    %v1438 = vld [vmem:[%s1 + $0xf54] sm:$0xf]
    %v1439 = vld [vmem:[%s1 + $0xf58] sm:$0xf]
    %v1440 = vld [vmem:[%s1 + $0xf5c] sm:$0xf]
    %v1441 = vld [vmem:[%s1 + $0xf60] sm:$0xf]
    %v1442 = vld [vmem:[%s1 + $0xf64] sm:$0xf]
    %v1443 = vld [vmem:[%s1 + $0xf68] sm:$0xf]
    %v1444 = vld [vmem:[%s1 + $0xf6c] sm:$0xf]
    %v1445 = vld [vmem:[%s1 + $0xf70] sm:$0xf]
    %v1446 = vld [vmem:[%s1 + $0xf74] sm:$0xf]
    %v1447 = vld [vmem:[%s1 + $0xf78] sm:$0xf]
    %v1448 = vld [vmem:[%s1 + $0xf7c] sm:$0xf]
    %v1449 = vld [vmem:[%s1 + $0xf80] sm:$0xf]
    %v1450 = vld [vmem:[%s1 + $0xf84] sm:$0xf]
    %v1451 = vld [vmem:[%s1 + $0xf88] sm:$0xf]
    %v1452 = vld [vmem:[%s1 + $0xf8c] sm:$0xf]
    %v1453 = vld [vmem:[%s1 + $0xf90] sm:$0xf]
    %v1454 = vld [vmem:[%s1 + $0xf94] sm:$0xf]
    %v1455 = vld [vmem:[%s1 + $0xf98] sm:$0xf]
    %v1456 = vld [vmem:[%s1 + $0xf9c] sm:$0xf]
    %v1457 = vld [vmem:[%s1 + $0xfa0] sm:$0xf]
    %v1458 = vld [vmem:[%s1 + $0xfa4] sm:$0xf]
    %v1459 = vld [vmem:[%s1 + $0xfa8] sm:$0xf]
    %v1460 = vld [vmem:[%s1 + $0xfac] sm:$0xf]
    %v1461 = vld [vmem:[%s1 + $0xfb0] sm:$0xf]
    %v1462 = vld [vmem:[%s1 + $0xfb4] sm:$0xf]
    %v1463 = vld [vmem:[%s1 + $0xfb8] sm:$0xf]
    %v1464 = vld [vmem:[%s1 + $0xfbc] sm:$0xf]
    %v1465 = vld [vmem:[%s1 + $0xfc0] sm:$0xf]
    %v1466 = vld [vmem:[%s1 + $0xfc4] sm:$0xf]
    %v1467 = vld [vmem:[%s1 + $0xfc8] sm:$0xf]
    %v1468 = vld [vmem:[%s1 + $0xfcc] sm:$0xf]
    %v1469 = vld [vmem:[%s1 + $0xfd0] sm:$0xf]
    %v1470 = vld [vmem:[%s1 + $0xfd4] sm:$0xf]
    %v1471 = vld [vmem:[%s1 + $0xfd8] sm:$0xf]
    %v1472 = vld [vmem:[%s1 + $0xfdc] sm:$0xf]
    %v1473 = vld [vmem:[%s1 + $0xfe0] sm:$0xf]
    %v1474 = vld [vmem:[%s1 + $0xfe4] sm:$0xf]
    %v1475 = vld [vmem:[%s1 + $0xfe8] sm:$0xf]
    %v1476 = vld [vmem:[%s1 + $0xfec] sm:$0xf]
    %v1477 = vld [vmem:[%s1 + $0xff0] sm:$0xf]
    %v1478 = vld [vmem:[%s1 + $0xff4] sm:$0xf]
    %v1479 = vld [vmem:[%s1 + $0xff8] sm:$0xf]
    %v1480 = vld [vmem:[%s1 + $0xffc] sm:$0xf]
    %v1481 = vld [vmem:[%s5] sm:$0x1]
    %v1482 = vlaneseq
    %v1483 = vshrl.u32 %v1482, 7
    %v1484 = vsub.s32 0, %v1483
    %v1485 = vrot.slane %v1481, %v1484
    %v2510 = vunpack.c.l.b16 %v457
    %v2511 = vunpack.c.l.b16 %v458
    %v2512 = vunpack.c.l.b16 %v459
    %v2513 = vunpack.c.l.b16 %v460
    %v2514 = vunpack.c.l.b16 %v461
    %v2515 = vunpack.c.l.b16 %v462
    %v2516 = vunpack.c.l.b16 %v463
    %v2517 = vunpack.c.l.b16 %v464
    %v2518 = vunpack.c.l.b16 %v465
    %v2519 = vunpack.c.l.b16 %v466
    %v2520 = vunpack.c.l.b16 %v467
    %v2521 = vunpack.c.l.b16 %v468
    %v2522 = vunpack.c.l.b16 %v469
    %v2523 = vunpack.c.l.b16 %v470
    %v2524 = vunpack.c.l.b16 %v471
    %v2525 = vunpack.c.l.b16 %v472
    %v2526 = vunpack.c.l.b16 %v473
    %v2527 = vunpack.c.l.b16 %v474
    %v2528 = vunpack.c.l.b16 %v475
    %v2529 = vunpack.c.l.b16 %v476
    %v2530 = vunpack.c.l.b16 %v477
    %v2531 = vunpack.c.l.b16 %v478
    %v2532 = vunpack.c.l.b16 %v479
    %v2533 = vunpack.c.l.b16 %v480
    %v2534 = vunpack.c.l.b16 %v481
    %v2535 = vunpack.c.l.b16 %v482
    %v2536 = vunpack.c.l.b16 %v483
    %v2537 = vunpack.c.l.b16 %v484
    %v2538 = vunpack.c.l.b16 %v485
    %v2539 = vunpack.c.l.b16 %v486
    %v2540 = vunpack.c.l.b16 %v487
    %v2541 = vunpack.c.l.b16 %v488
    %v2542 = vunpack.c.l.b16 %v489
    %v2543 = vunpack.c.l.b16 %v490
    %v2544 = vunpack.c.l.b16 %v491
    %v2545 = vunpack.c.l.b16 %v492
    %v2546 = vunpack.c.l.b16 %v493
    %v2547 = vunpack.c.l.b16 %v494
    %v2548 = vunpack.c.l.b16 %v495
    %v2549 = vunpack.c.l.b16 %v496
    %v2550 = vunpack.c.l.b16 %v497
    %v2551 = vunpack.c.l.b16 %v498
    %v2552 = vunpack.c.l.b16 %v499
    %v2553 = vunpack.c.l.b16 %v500
    %v2554 = vunpack.c.l.b16 %v501
    %v2555 = vunpack.c.l.b16 %v502
    %v2556 = vunpack.c.l.b16 %v503
    %v2557 = vunpack.c.l.b16 %v504
    %v2558 = vunpack.c.l.b16 %v505
    %v2559 = vunpack.c.l.b16 %v506
    %v2560 = vunpack.c.l.b16 %v507
    %v2561 = vunpack.c.l.b16 %v508
    %v2562 = vunpack.c.l.b16 %v509
    %v2563 = vunpack.c.l.b16 %v510
    %v2564 = vunpack.c.l.b16 %v511
    %v2565 = vunpack.c.l.b16 %v512
    %v2566 = vunpack.c.l.b16 %v513
    %v2567 = vunpack.c.l.b16 %v514
    %v2568 = vunpack.c.l.b16 %v515
    %v2569 = vunpack.c.l.b16 %v516
    %v2570 = vunpack.c.l.b16 %v517
    %v2571 = vunpack.c.l.b16 %v518
    %v2572 = vunpack.c.l.b16 %v519
    %v2573 = vunpack.c.l.b16 %v520
    %v2574 = vunpack.c.l.b16 %v521
    %v2575 = vunpack.c.l.b16 %v522
    %v2576 = vunpack.c.l.b16 %v523
    %v2577 = vunpack.c.l.b16 %v524
    %v2578 = vunpack.c.l.b16 %v525
    %v2579 = vunpack.c.l.b16 %v526
    %v2580 = vunpack.c.l.b16 %v527
    %v2581 = vunpack.c.l.b16 %v528
    %v2582 = vunpack.c.l.b16 %v529
    %v2583 = vunpack.c.l.b16 %v530
    %v2584 = vunpack.c.l.b16 %v531
    %v2585 = vunpack.c.l.b16 %v532
    %v2586 = vunpack.c.l.b16 %v533
    %v2587 = vunpack.c.l.b16 %v534
    %v2588 = vunpack.c.l.b16 %v535
    %v2589 = vunpack.c.l.b16 %v536
    %v2590 = vunpack.c.l.b16 %v537
    %v2591 = vunpack.c.l.b16 %v538
    %v2592 = vunpack.c.l.b16 %v539
    %v2593 = vunpack.c.l.b16 %v540
    %v2594 = vunpack.c.l.b16 %v541
    %v2595 = vunpack.c.l.b16 %v542
    %v2596 = vunpack.c.l.b16 %v543
    %v2597 = vunpack.c.l.b16 %v544
    %v2598 = vunpack.c.l.b16 %v545
    %v2599 = vunpack.c.l.b16 %v546
    %v2600 = vunpack.c.l.b16 %v547
    %v2601 = vunpack.c.l.b16 %v548
    %v2602 = vunpack.c.l.b16 %v549
    %v2603 = vunpack.c.l.b16 %v550
    %v2604 = vunpack.c.l.b16 %v551
    %v2605 = vunpack.c.l.b16 %v552
    %v2606 = vunpack.c.l.b16 %v553
    %v2607 = vunpack.c.l.b16 %v554
    %v2608 = vunpack.c.l.b16 %v555
    %v2609 = vunpack.c.l.b16 %v556
    %v2610 = vunpack.c.l.b16 %v557
    %v2611 = vunpack.c.l.b16 %v558
    %v2612 = vunpack.c.l.b16 %v559
    %v2613 = vunpack.c.l.b16 %v560
    %v2614 = vunpack.c.l.b16 %v561
    %v2615 = vunpack.c.l.b16 %v562
    %v2616 = vunpack.c.l.b16 %v563
    %v2617 = vunpack.c.l.b16 %v564
    %v2618 = vunpack.c.l.b16 %v565
    %v2619 = vunpack.c.l.b16 %v566
    %v2620 = vunpack.c.l.b16 %v567
    %v2621 = vunpack.c.l.b16 %v568
    %v2622 = vunpack.c.l.b16 %v569
    %v2623 = vunpack.c.l.b16 %v570
    %v2624 = vunpack.c.l.b16 %v571
    %v2625 = vunpack.c.l.b16 %v572
    %v2626 = vunpack.c.l.b16 %v573
    %v2627 = vunpack.c.l.b16 %v574
    %v2628 = vunpack.c.l.b16 %v575
    %v2629 = vunpack.c.l.b16 %v576
    %v2630 = vunpack.c.l.b16 %v577
    %v2631 = vunpack.c.l.b16 %v578
    %v2632 = vunpack.c.l.b16 %v579
    %v2633 = vunpack.c.l.b16 %v580
    %v2634 = vunpack.c.l.b16 %v581
    %v2635 = vunpack.c.l.b16 %v582
    %v2636 = vunpack.c.l.b16 %v583
    %v2637 = vunpack.c.l.b16 %v584
    %v2638 = vunpack.c.l.b16 %v585
    %v2639 = vunpack.c.l.b16 %v586
    %v2640 = vunpack.c.l.b16 %v587
    %v2641 = vunpack.c.l.b16 %v588
    %v2642 = vunpack.c.l.b16 %v589
    %v2643 = vunpack.c.l.b16 %v590
    %v2644 = vunpack.c.l.b16 %v591
    %v2645 = vunpack.c.l.b16 %v592
    %v2646 = vunpack.c.l.b16 %v593
    %v2647 = vunpack.c.l.b16 %v594
    %v2648 = vunpack.c.l.b16 %v595
    %v2649 = vunpack.c.l.b16 %v596
    %v2650 = vunpack.c.l.b16 %v597
    %v2651 = vunpack.c.l.b16 %v598
    %v2652 = vunpack.c.l.b16 %v599
    %v2653 = vunpack.c.l.b16 %v600
    %v2654 = vunpack.c.l.b16 %v601
    %v2655 = vunpack.c.l.b16 %v602
    %v2656 = vunpack.c.l.b16 %v603
    %v2657 = vunpack.c.l.b16 %v604
    %v2658 = vunpack.c.l.b16 %v605
    %v2659 = vunpack.c.l.b16 %v606
    %v2660 = vunpack.c.l.b16 %v607
    %v2661 = vunpack.c.l.b16 %v608
    %v2662 = vunpack.c.l.b16 %v609
    %v2663 = vunpack.c.l.b16 %v610
    %v2664 = vunpack.c.l.b16 %v611
    %v2665 = vunpack.c.l.b16 %v612
    %v2666 = vunpack.c.l.b16 %v613
    %v2667 = vunpack.c.l.b16 %v614
    %v2668 = vunpack.c.l.b16 %v615
    %v2669 = vunpack.c.l.b16 %v616
    %v2670 = vunpack.c.l.b16 %v617
    %v2671 = vunpack.c.l.b16 %v618
    %v2672 = vunpack.c.l.b16 %v619
    %v2673 = vunpack.c.l.b16 %v620
    %v2674 = vunpack.c.l.b16 %v621
    %v2675 = vunpack.c.l.b16 %v622
    %v2676 = vunpack.c.l.b16 %v623
    %v2677 = vunpack.c.l.b16 %v624
    %v2678 = vunpack.c.l.b16 %v625
    %v2679 = vunpack.c.l.b16 %v626
    %v2680 = vunpack.c.l.b16 %v627
    %v2681 = vunpack.c.l.b16 %v628
    %v2682 = vunpack.c.l.b16 %v629
    %v2683 = vunpack.c.l.b16 %v630
    %v2684 = vunpack.c.l.b16 %v631
    %v2685 = vunpack.c.l.b16 %v632
    %v2686 = vunpack.c.l.b16 %v633
    %v2687 = vunpack.c.l.b16 %v634
    %v2688 = vunpack.c.l.b16 %v635
    %v2689 = vunpack.c.l.b16 %v636
    %v2690 = vunpack.c.l.b16 %v637
    %v2691 = vunpack.c.l.b16 %v638
    %v2692 = vunpack.c.l.b16 %v639
    %v2693 = vunpack.c.l.b16 %v640
    %v2694 = vunpack.c.l.b16 %v641
    %v2695 = vunpack.c.l.b16 %v642
    %v2696 = vunpack.c.l.b16 %v643
    %v2697 = vunpack.c.l.b16 %v644
    %v2698 = vunpack.c.l.b16 %v645
    %v2699 = vunpack.c.l.b16 %v646
    %v2700 = vunpack.c.l.b16 %v647
    %v2701 = vunpack.c.l.b16 %v648
    %v2702 = vunpack.c.l.b16 %v649
    %v2703 = vunpack.c.l.b16 %v650
    %v2704 = vunpack.c.l.b16 %v651
    %v2705 = vunpack.c.l.b16 %v652
    %v2706 = vunpack.c.l.b16 %v653
    %v2707 = vunpack.c.l.b16 %v654
    %v2708 = vunpack.c.l.b16 %v655
    %v2709 = vunpack.c.l.b16 %v656
    %v2710 = vunpack.c.l.b16 %v657
    %v2711 = vunpack.c.l.b16 %v658
    %v2712 = vunpack.c.l.b16 %v659
    %v2713 = vunpack.c.l.b16 %v660
    %v2714 = vunpack.c.l.b16 %v661
    %v2715 = vunpack.c.l.b16 %v662
    %v2716 = vunpack.c.l.b16 %v663
    %v2717 = vunpack.c.l.b16 %v664
    %v2718 = vunpack.c.l.b16 %v665
    %v2719 = vunpack.c.l.b16 %v666
    %v2720 = vunpack.c.l.b16 %v667
    %v2721 = vunpack.c.l.b16 %v668
    %v2722 = vunpack.c.l.b16 %v669
    %v2723 = vunpack.c.l.b16 %v670
    %v2724 = vunpack.c.l.b16 %v671
    %v2725 = vunpack.c.l.b16 %v672
    %v2726 = vunpack.c.l.b16 %v673
    %v2727 = vunpack.c.l.b16 %v674
    %v2728 = vunpack.c.l.b16 %v675
    %v2729 = vunpack.c.l.b16 %v676
    %v2730 = vunpack.c.l.b16 %v677
    %v2731 = vunpack.c.l.b16 %v678
    %v2732 = vunpack.c.l.b16 %v679
    %v2733 = vunpack.c.l.b16 %v680
    %v2734 = vunpack.c.l.b16 %v681
    %v2735 = vunpack.c.l.b16 %v682
    %v2736 = vunpack.c.l.b16 %v683
    %v2737 = vunpack.c.l.b16 %v684
    %v2738 = vunpack.c.l.b16 %v685
    %v2739 = vunpack.c.l.b16 %v686
    %v2740 = vunpack.c.l.b16 %v687
    %v2741 = vunpack.c.l.b16 %v688
    %v2742 = vunpack.c.l.b16 %v689
    %v2743 = vunpack.c.l.b16 %v690
    %v2744 = vunpack.c.l.b16 %v691
    %v2745 = vunpack.c.l.b16 %v692
    %v2746 = vunpack.c.l.b16 %v693
    %v2747 = vunpack.c.l.b16 %v694
    %v2748 = vunpack.c.l.b16 %v695
    %v2749 = vunpack.c.l.b16 %v696
    %v2750 = vunpack.c.l.b16 %v697
    %v2751 = vunpack.c.l.b16 %v698
    %v2752 = vunpack.c.l.b16 %v699
    %v2753 = vunpack.c.l.b16 %v700
    %v2754 = vunpack.c.l.b16 %v701
    %v2755 = vunpack.c.l.b16 %v702
    %v2756 = vunpack.c.l.b16 %v703
    %v2757 = vunpack.c.l.b16 %v704
    %v2758 = vunpack.c.l.b16 %v705
    %v2759 = vunpack.c.l.b16 %v706
    %v2760 = vunpack.c.l.b16 %v707
    %v2761 = vunpack.c.l.b16 %v708
    %v2762 = vunpack.c.l.b16 %v709
    %v2763 = vunpack.c.l.b16 %v710
    %v2764 = vunpack.c.l.b16 %v711
    %v2765 = vunpack.c.l.b16 %v712
    %v2766 = vunpack.c.l.b16 %v713
    %v2767 = vunpack.c.l.b16 %v714
    %v2768 = vunpack.c.l.b16 %v715
    %v2769 = vunpack.c.l.b16 %v716
    %v2770 = vunpack.c.l.b16 %v717
    %v2771 = vunpack.c.l.b16 %v718
    %v2772 = vunpack.c.l.b16 %v719
    %v2773 = vunpack.c.l.b16 %v720
    %v2774 = vunpack.c.l.b16 %v721
    %v2775 = vunpack.c.l.b16 %v722
    %v2776 = vunpack.c.l.b16 %v723
    %v2777 = vunpack.c.l.b16 %v724
    %v2778 = vunpack.c.l.b16 %v725
    %v2779 = vunpack.c.l.b16 %v726
    %v2780 = vunpack.c.l.b16 %v727
    %v2781 = vunpack.c.l.b16 %v728
    %v2782 = vunpack.c.l.b16 %v729
    %v2783 = vunpack.c.l.b16 %v730
    %v2784 = vunpack.c.l.b16 %v731
    %v2785 = vunpack.c.l.b16 %v732
    %v2786 = vunpack.c.l.b16 %v733
    %v2787 = vunpack.c.l.b16 %v734
    %v2788 = vunpack.c.l.b16 %v735
    %v2789 = vunpack.c.l.b16 %v736
    %v2790 = vunpack.c.l.b16 %v737
    %v2791 = vunpack.c.l.b16 %v738
    %v2792 = vunpack.c.l.b16 %v739
    %v2793 = vunpack.c.l.b16 %v740
    %v2794 = vunpack.c.l.b16 %v741
    %v2795 = vunpack.c.l.b16 %v742
    %v2796 = vunpack.c.l.b16 %v743
    %v2797 = vunpack.c.l.b16 %v744
    %v2798 = vunpack.c.l.b16 %v745
    %v2799 = vunpack.c.l.b16 %v746
    %v2800 = vunpack.c.l.b16 %v747
    %v2801 = vunpack.c.l.b16 %v748
    %v2802 = vunpack.c.l.b16 %v749
    %v2803 = vunpack.c.l.b16 %v750
    %v2804 = vunpack.c.l.b16 %v751
    %v2805 = vunpack.c.l.b16 %v752
    %v2806 = vunpack.c.l.b16 %v753
    %v2807 = vunpack.c.l.b16 %v754
    %v2808 = vunpack.c.l.b16 %v755
    %v2809 = vunpack.c.l.b16 %v756
    %v2810 = vunpack.c.l.b16 %v757
    %v2811 = vunpack.c.l.b16 %v758
    %v2812 = vunpack.c.l.b16 %v759
    %v2813 = vunpack.c.l.b16 %v760
    %v2814 = vunpack.c.l.b16 %v761
    %v2815 = vunpack.c.l.b16 %v762
    %v2816 = vunpack.c.l.b16 %v763
    %v2817 = vunpack.c.l.b16 %v764
    %v2818 = vunpack.c.l.b16 %v765
    %v2819 = vunpack.c.l.b16 %v766
    %v2820 = vunpack.c.l.b16 %v767
    %v2821 = vunpack.c.l.b16 %v768
    %v2822 = vunpack.c.l.b16 %v769
    %v2823 = vunpack.c.l.b16 %v770
    %v2824 = vunpack.c.l.b16 %v771
    %v2825 = vunpack.c.l.b16 %v772
    %v2826 = vunpack.c.l.b16 %v773
    %v2827 = vunpack.c.l.b16 %v774
    %v2828 = vunpack.c.l.b16 %v775
    %v2829 = vunpack.c.l.b16 %v776
    %v2830 = vunpack.c.l.b16 %v777
    %v2831 = vunpack.c.l.b16 %v778
    %v2832 = vunpack.c.l.b16 %v779
    %v2833 = vunpack.c.l.b16 %v780
    %v2834 = vunpack.c.l.b16 %v781
    %v2835 = vunpack.c.l.b16 %v782
    %v2836 = vunpack.c.l.b16 %v783
    %v2837 = vunpack.c.l.b16 %v784
    %v2838 = vunpack.c.l.b16 %v785
    %v2839 = vunpack.c.l.b16 %v786
    %v2840 = vunpack.c.l.b16 %v787
    %v2841 = vunpack.c.l.b16 %v788
    %v2842 = vunpack.c.l.b16 %v789
    %v2843 = vunpack.c.l.b16 %v790
    %v2844 = vunpack.c.l.b16 %v791
    %v2845 = vunpack.c.l.b16 %v792
    %v2846 = vunpack.c.l.b16 %v793
    %v2847 = vunpack.c.l.b16 %v794
    %v2848 = vunpack.c.l.b16 %v795
    %v2849 = vunpack.c.l.b16 %v796
    %v2850 = vunpack.c.l.b16 %v797
    %v2851 = vunpack.c.l.b16 %v798
    %v2852 = vunpack.c.l.b16 %v799
    %v2853 = vunpack.c.l.b16 %v800
    %v2854 = vunpack.c.l.b16 %v801
    %v2855 = vunpack.c.l.b16 %v802
    %v2856 = vunpack.c.l.b16 %v803
    %v2857 = vunpack.c.l.b16 %v804
    %v2858 = vunpack.c.l.b16 %v805
    %v2859 = vunpack.c.l.b16 %v806
    %v2860 = vunpack.c.l.b16 %v807
    %v2861 = vunpack.c.l.b16 %v808
    %v2862 = vunpack.c.l.b16 %v809
    %v2863 = vunpack.c.l.b16 %v810
    %v2864 = vunpack.c.l.b16 %v811
    %v2865 = vunpack.c.l.b16 %v812
    %v2866 = vunpack.c.l.b16 %v813
    %v2867 = vunpack.c.l.b16 %v814
    %v2868 = vunpack.c.l.b16 %v815
    %v2869 = vunpack.c.l.b16 %v816
    %v2870 = vunpack.c.l.b16 %v817
    %v2871 = vunpack.c.l.b16 %v818
    %v2872 = vunpack.c.l.b16 %v819
    %v2873 = vunpack.c.l.b16 %v820
    %v2874 = vunpack.c.l.b16 %v821
    %v2875 = vunpack.c.l.b16 %v822
    %v2876 = vunpack.c.l.b16 %v823
    %v2877 = vunpack.c.l.b16 %v824
    %v2878 = vunpack.c.l.b16 %v825
    %v2879 = vunpack.c.l.b16 %v826
    %v2880 = vunpack.c.l.b16 %v827
    %v2881 = vunpack.c.l.b16 %v828
    %v2882 = vunpack.c.l.b16 %v829
    %v2883 = vunpack.c.l.b16 %v830
    %v2884 = vunpack.c.l.b16 %v831
    %v2885 = vunpack.c.l.b16 %v832
    %v2886 = vunpack.c.l.b16 %v833
    %v2887 = vunpack.c.l.b16 %v834
    %v2888 = vunpack.c.l.b16 %v835
    %v2889 = vunpack.c.l.b16 %v836
    %v2890 = vunpack.c.l.b16 %v837
    %v2891 = vunpack.c.l.b16 %v838
    %v2892 = vunpack.c.l.b16 %v839
    %v2893 = vunpack.c.l.b16 %v840
    %v2894 = vunpack.c.l.b16 %v841
    %v2895 = vunpack.c.l.b16 %v842
    %v2896 = vunpack.c.l.b16 %v843
    %v2897 = vunpack.c.l.b16 %v844
    %v2898 = vunpack.c.l.b16 %v845
    %v2899 = vunpack.c.l.b16 %v846
    %v2900 = vunpack.c.l.b16 %v847
    %v2901 = vunpack.c.l.b16 %v848
    %v2902 = vunpack.c.l.b16 %v849
    %v2903 = vunpack.c.l.b16 %v850
    %v2904 = vunpack.c.l.b16 %v851
    %v2905 = vunpack.c.l.b16 %v852
    %v2906 = vunpack.c.l.b16 %v853
    %v2907 = vunpack.c.l.b16 %v854
    %v2908 = vunpack.c.l.b16 %v855
    %v2909 = vunpack.c.l.b16 %v856
    %v2910 = vunpack.c.l.b16 %v857
    %v2911 = vunpack.c.l.b16 %v858
    %v2912 = vunpack.c.l.b16 %v859
    %v2913 = vunpack.c.l.b16 %v860
    %v2914 = vunpack.c.l.b16 %v861
    %v2915 = vunpack.c.l.b16 %v862
    %v2916 = vunpack.c.l.b16 %v863
    %v2917 = vunpack.c.l.b16 %v864
    %v2918 = vunpack.c.l.b16 %v865
    %v2919 = vunpack.c.l.b16 %v866
    %v2920 = vunpack.c.l.b16 %v867
    %v2921 = vunpack.c.l.b16 %v868
    %v2922 = vunpack.c.l.b16 %v869
    %v2923 = vunpack.c.l.b16 %v870
    %v2924 = vunpack.c.l.b16 %v871
    %v2925 = vunpack.c.l.b16 %v872
    %v2926 = vunpack.c.l.b16 %v873
    %v2927 = vunpack.c.l.b16 %v874
    %v2928 = vunpack.c.l.b16 %v875
    %v2929 = vunpack.c.l.b16 %v876
    %v2930 = vunpack.c.l.b16 %v877
    %v2931 = vunpack.c.l.b16 %v878
    %v2932 = vunpack.c.l.b16 %v879
    %v2933 = vunpack.c.l.b16 %v880
    %v2934 = vunpack.c.l.b16 %v881
    %v2935 = vunpack.c.l.b16 %v882
    %v2936 = vunpack.c.l.b16 %v883
    %v2937 = vunpack.c.l.b16 %v884
    %v2938 = vunpack.c.l.b16 %v885
    %v2939 = vunpack.c.l.b16 %v886
    %v2940 = vunpack.c.l.b16 %v887
    %v2941 = vunpack.c.l.b16 %v888
    %v2942 = vunpack.c.l.b16 %v889
    %v2943 = vunpack.c.l.b16 %v890
    %v2944 = vunpack.c.l.b16 %v891
    %v2945 = vunpack.c.l.b16 %v892
    %v2946 = vunpack.c.l.b16 %v893
    %v2947 = vunpack.c.l.b16 %v894
    %v2948 = vunpack.c.l.b16 %v895
    %v2949 = vunpack.c.l.b16 %v896
    %v2950 = vunpack.c.l.b16 %v897
    %v2951 = vunpack.c.l.b16 %v898
    %v2952 = vunpack.c.l.b16 %v899
    %v2953 = vunpack.c.l.b16 %v900
    %v2954 = vunpack.c.l.b16 %v901
    %v2955 = vunpack.c.l.b16 %v902
    %v2956 = vunpack.c.l.b16 %v903
    %v2957 = vunpack.c.l.b16 %v904
    %v2958 = vunpack.c.l.b16 %v905
    %v2959 = vunpack.c.l.b16 %v906
    %v2960 = vunpack.c.l.b16 %v907
    %v2961 = vunpack.c.l.b16 %v908
    %v2962 = vunpack.c.l.b16 %v909
    %v2963 = vunpack.c.l.b16 %v910
    %v2964 = vunpack.c.l.b16 %v911
    %v2965 = vunpack.c.l.b16 %v912
    %v2966 = vunpack.c.l.b16 %v913
    %v2967 = vunpack.c.l.b16 %v914
    %v2968 = vunpack.c.l.b16 %v915
    %v2969 = vunpack.c.l.b16 %v916
    %v2970 = vunpack.c.l.b16 %v917
    %v2971 = vunpack.c.l.b16 %v918
    %v2972 = vunpack.c.l.b16 %v919
    %v2973 = vunpack.c.l.b16 %v920
    %v2974 = vunpack.c.l.b16 %v921
    %v2975 = vunpack.c.l.b16 %v922
    %v2976 = vunpack.c.l.b16 %v923
    %v2977 = vunpack.c.l.b16 %v924
    %v2978 = vunpack.c.l.b16 %v925
    %v2979 = vunpack.c.l.b16 %v926
    %v2980 = vunpack.c.l.b16 %v927
    %v2981 = vunpack.c.l.b16 %v928
    %v2982 = vunpack.c.l.b16 %v929
    %v2983 = vunpack.c.l.b16 %v930
    %v2984 = vunpack.c.l.b16 %v931
    %v2985 = vunpack.c.l.b16 %v932
    %v2986 = vunpack.c.l.b16 %v933
    %v2987 = vunpack.c.l.b16 %v934
    %v2988 = vunpack.c.l.b16 %v935
    %v2989 = vunpack.c.l.b16 %v936
    %v2990 = vunpack.c.l.b16 %v937
    %v2991 = vunpack.c.l.b16 %v938
    %v2992 = vunpack.c.l.b16 %v939
    %v2993 = vunpack.c.l.b16 %v940
    %v2994 = vunpack.c.l.b16 %v941
    %v2995 = vunpack.c.l.b16 %v942
    %v2996 = vunpack.c.l.b16 %v943
    %v2997 = vunpack.c.l.b16 %v944
    %v2998 = vunpack.c.l.b16 %v945
    %v2999 = vunpack.c.l.b16 %v946
    %v3000 = vunpack.c.l.b16 %v947
    %v3001 = vunpack.c.l.b16 %v948
    %v3002 = vunpack.c.l.b16 %v949
    %v3003 = vunpack.c.l.b16 %v950
    %v3004 = vunpack.c.l.b16 %v951
    %v3005 = vunpack.c.l.b16 %v952
    %v3006 = vunpack.c.l.b16 %v953
    %v3007 = vunpack.c.l.b16 %v954
    %v3008 = vunpack.c.l.b16 %v955
    %v3009 = vunpack.c.l.b16 %v956
    %v3010 = vunpack.c.l.b16 %v957
    %v3011 = vunpack.c.l.b16 %v958
    %v3012 = vunpack.c.l.b16 %v959
    %v3013 = vunpack.c.l.b16 %v960
    %v3014 = vunpack.c.l.b16 %v961
    %v3015 = vunpack.c.l.b16 %v962
    %v3016 = vunpack.c.l.b16 %v963
    %v3017 = vunpack.c.l.b16 %v964
    %v3018 = vunpack.c.l.b16 %v965
    %v3019 = vunpack.c.l.b16 %v966
    %v3020 = vunpack.c.l.b16 %v967
    %v3021 = vunpack.c.l.b16 %v968
    %v3022 = vunpack.c.l.b16 %v969
    %v3023 = vunpack.c.l.b16 %v970
    %v3024 = vunpack.c.l.b16 %v971
    %v3025 = vunpack.c.l.b16 %v972
    %v3026 = vunpack.c.l.b16 %v973
    %v3027 = vunpack.c.l.b16 %v974
    %v3028 = vunpack.c.l.b16 %v975
    %v3029 = vunpack.c.l.b16 %v976
    %v3030 = vunpack.c.l.b16 %v977
    %v3031 = vunpack.c.l.b16 %v978
    %v3032 = vunpack.c.l.b16 %v979
    %v3033 = vunpack.c.l.b16 %v980
    %v3034 = vunpack.c.l.b16 %v981
    %v3035 = vunpack.c.l.b16 %v982
    %v3036 = vunpack.c.l.b16 %v983
    %v3037 = vunpack.c.l.b16 %v984
    %v3038 = vunpack.c.l.b16 %v985
    %v3039 = vunpack.c.l.b16 %v986
    %v3040 = vunpack.c.l.b16 %v987
    %v3041 = vunpack.c.l.b16 %v988
    %v3042 = vunpack.c.l.b16 %v989
    %v3043 = vunpack.c.l.b16 %v990
    %v3044 = vunpack.c.l.b16 %v991
    %v3045 = vunpack.c.l.b16 %v992
    %v3046 = vunpack.c.l.b16 %v993
    %v3047 = vunpack.c.l.b16 %v994
    %v3048 = vunpack.c.l.b16 %v995
    %v3049 = vunpack.c.l.b16 %v996
    %v3050 = vunpack.c.l.b16 %v997
    %v3051 = vunpack.c.l.b16 %v998
    %v3052 = vunpack.c.l.b16 %v999
    %v3053 = vunpack.c.l.b16 %v1000
    %v3054 = vunpack.c.l.b16 %v1001
    %v3055 = vunpack.c.l.b16 %v1002
    %v3056 = vunpack.c.l.b16 %v1003
    %v3057 = vunpack.c.l.b16 %v1004
    %v3058 = vunpack.c.l.b16 %v1005
    %v3059 = vunpack.c.l.b16 %v1006
    %v3060 = vunpack.c.l.b16 %v1007
    %v3061 = vunpack.c.l.b16 %v1008
    %v3062 = vunpack.c.l.b16 %v1009
    %v3063 = vunpack.c.l.b16 %v1010
    %v3064 = vunpack.c.l.b16 %v1011
    %v3065 = vunpack.c.l.b16 %v1012
    %v3066 = vunpack.c.l.b16 %v1013
    %v3067 = vunpack.c.l.b16 %v1014
    %v3068 = vunpack.c.l.b16 %v1015
    %v3069 = vunpack.c.l.b16 %v1016
    %v3070 = vunpack.c.l.b16 %v1017
    %v3071 = vunpack.c.l.b16 %v1018
    %v3072 = vunpack.c.l.b16 %v1019
    %v3073 = vunpack.c.l.b16 %v1020
    %v3074 = vunpack.c.l.b16 %v1021
    %v3075 = vunpack.c.l.b16 %v1022
    %v3076 = vunpack.c.l.b16 %v1023
    %v3077 = vunpack.c.l.b16 %v1024
    %v3078 = vunpack.c.l.b16 %v1025
    %v3079 = vunpack.c.l.b16 %v1026
    %v3080 = vunpack.c.l.b16 %v1027
    %v3081 = vunpack.c.l.b16 %v1028
    %v3082 = vunpack.c.l.b16 %v1029
    %v3083 = vunpack.c.l.b16 %v1030
    %v3084 = vunpack.c.l.b16 %v1031
    %v3085 = vunpack.c.l.b16 %v1032
    %v3086 = vunpack.c.l.b16 %v1033
    %v3087 = vunpack.c.l.b16 %v1034
    %v3088 = vunpack.c.l.b16 %v1035
    %v3089 = vunpack.c.l.b16 %v1036
    %v3090 = vunpack.c.l.b16 %v1037
    %v3091 = vunpack.c.l.b16 %v1038
    %v3092 = vunpack.c.l.b16 %v1039
    %v3093 = vunpack.c.l.b16 %v1040
    %v3094 = vunpack.c.l.b16 %v1041
    %v3095 = vunpack.c.l.b16 %v1042
    %v3096 = vunpack.c.l.b16 %v1043
    %v3097 = vunpack.c.l.b16 %v1044
    %v3098 = vunpack.c.l.b16 %v1045
    %v3099 = vunpack.c.l.b16 %v1046
    %v3100 = vunpack.c.l.b16 %v1047
    %v3101 = vunpack.c.l.b16 %v1048
    %v3102 = vunpack.c.l.b16 %v1049
    %v3103 = vunpack.c.l.b16 %v1050
    %v3104 = vunpack.c.l.b16 %v1051
    %v3105 = vunpack.c.l.b16 %v1052
    %v3106 = vunpack.c.l.b16 %v1053
    %v3107 = vunpack.c.l.b16 %v1054
    %v3108 = vunpack.c.l.b16 %v1055
    %v3109 = vunpack.c.l.b16 %v1056
    %v3110 = vunpack.c.l.b16 %v1057
    %v3111 = vunpack.c.l.b16 %v1058
    %v3112 = vunpack.c.l.b16 %v1059
    %v3113 = vunpack.c.l.b16 %v1060
    %v3114 = vunpack.c.l.b16 %v1061
    %v3115 = vunpack.c.l.b16 %v1062
    %v3116 = vunpack.c.l.b16 %v1063
    %v3117 = vunpack.c.l.b16 %v1064
    %v3118 = vunpack.c.l.b16 %v1065
    %v3119 = vunpack.c.l.b16 %v1066
    %v3120 = vunpack.c.l.b16 %v1067
    %v3121 = vunpack.c.l.b16 %v1068
    %v3122 = vunpack.c.l.b16 %v1069
    %v3123 = vunpack.c.l.b16 %v1070
    %v3124 = vunpack.c.l.b16 %v1071
    %v3125 = vunpack.c.l.b16 %v1072
    %v3126 = vunpack.c.l.b16 %v1073
    %v3127 = vunpack.c.l.b16 %v1074
    %v3128 = vunpack.c.l.b16 %v1075
    %v3129 = vunpack.c.l.b16 %v1076
    %v3130 = vunpack.c.l.b16 %v1077
    %v3131 = vunpack.c.l.b16 %v1078
    %v3132 = vunpack.c.l.b16 %v1079
    %v3133 = vunpack.c.l.b16 %v1080
    %v3134 = vunpack.c.l.b16 %v1081
    %v3135 = vunpack.c.l.b16 %v1082
    %v3136 = vunpack.c.l.b16 %v1083
    %v3137 = vunpack.c.l.b16 %v1084
    %v3138 = vunpack.c.l.b16 %v1085
    %v3139 = vunpack.c.l.b16 %v1086
    %v3140 = vunpack.c.l.b16 %v1087
    %v3141 = vunpack.c.l.b16 %v1088
    %v3142 = vunpack.c.l.b16 %v1089
    %v3143 = vunpack.c.l.b16 %v1090
    %v3144 = vunpack.c.l.b16 %v1091
    %v3145 = vunpack.c.l.b16 %v1092
    %v3146 = vunpack.c.l.b16 %v1093
    %v3147 = vunpack.c.l.b16 %v1094
    %v3148 = vunpack.c.l.b16 %v1095
    %v3149 = vunpack.c.l.b16 %v1096
    %v3150 = vunpack.c.l.b16 %v1097
    %v3151 = vunpack.c.l.b16 %v1098
    %v3152 = vunpack.c.l.b16 %v1099
    %v3153 = vunpack.c.l.b16 %v1100
    %v3154 = vunpack.c.l.b16 %v1101
    %v3155 = vunpack.c.l.b16 %v1102
    %v3156 = vunpack.c.l.b16 %v1103
    %v3157 = vunpack.c.l.b16 %v1104
    %v3158 = vunpack.c.l.b16 %v1105
    %v3159 = vunpack.c.l.b16 %v1106
    %v3160 = vunpack.c.l.b16 %v1107
    %v3161 = vunpack.c.l.b16 %v1108
    %v3162 = vunpack.c.l.b16 %v1109
    %v3163 = vunpack.c.l.b16 %v1110
    %v3164 = vunpack.c.l.b16 %v1111
    %v3165 = vunpack.c.l.b16 %v1112
    %v3166 = vunpack.c.l.b16 %v1113
    %v3167 = vunpack.c.l.b16 %v1114
    %v3168 = vunpack.c.l.b16 %v1115
    %v3169 = vunpack.c.l.b16 %v1116
    %v3170 = vunpack.c.l.b16 %v1117
    %v3171 = vunpack.c.l.b16 %v1118
    %v3172 = vunpack.c.l.b16 %v1119
    %v3173 = vunpack.c.l.b16 %v1120
    %v3174 = vunpack.c.l.b16 %v1121
    %v3175 = vunpack.c.l.b16 %v1122
    %v3176 = vunpack.c.l.b16 %v1123
    %v3177 = vunpack.c.l.b16 %v1124
    %v3178 = vunpack.c.l.b16 %v1125
    %v3179 = vunpack.c.l.b16 %v1126
    %v3180 = vunpack.c.l.b16 %v1127
    %v3181 = vunpack.c.l.b16 %v1128
    %v3182 = vunpack.c.l.b16 %v1129
    %v3183 = vunpack.c.l.b16 %v1130
    %v3184 = vunpack.c.l.b16 %v1131
    %v3185 = vunpack.c.l.b16 %v1132
    %v3186 = vunpack.c.l.b16 %v1133
    %v3187 = vunpack.c.l.b16 %v1134
    %v3188 = vunpack.c.l.b16 %v1135
    %v3189 = vunpack.c.l.b16 %v1136
    %v3190 = vunpack.c.l.b16 %v1137
    %v3191 = vunpack.c.l.b16 %v1138
    %v3192 = vunpack.c.l.b16 %v1139
    %v3193 = vunpack.c.l.b16 %v1140
    %v3194 = vunpack.c.l.b16 %v1141
    %v3195 = vunpack.c.l.b16 %v1142
    %v3196 = vunpack.c.l.b16 %v1143
    %v3197 = vunpack.c.l.b16 %v1144
    %v3198 = vunpack.c.l.b16 %v1145
    %v3199 = vunpack.c.l.b16 %v1146
    %v3200 = vunpack.c.l.b16 %v1147
    %v3201 = vunpack.c.l.b16 %v1148
    %v3202 = vunpack.c.l.b16 %v1149
    %v3203 = vunpack.c.l.b16 %v1150
    %v3204 = vunpack.c.l.b16 %v1151
    %v3205 = vunpack.c.l.b16 %v1152
    %v3206 = vunpack.c.l.b16 %v1153
    %v3207 = vunpack.c.l.b16 %v1154
    %v3208 = vunpack.c.l.b16 %v1155
    %v3209 = vunpack.c.l.b16 %v1156
    %v3210 = vunpack.c.l.b16 %v1157
    %v3211 = vunpack.c.l.b16 %v1158
    %v3212 = vunpack.c.l.b16 %v1159
    %v3213 = vunpack.c.l.b16 %v1160
    %v3214 = vunpack.c.l.b16 %v1161
    %v3215 = vunpack.c.l.b16 %v1162
    %v3216 = vunpack.c.l.b16 %v1163
    %v3217 = vunpack.c.l.b16 %v1164
    %v3218 = vunpack.c.l.b16 %v1165
    %v3219 = vunpack.c.l.b16 %v1166
    %v3220 = vunpack.c.l.b16 %v1167
    %v3221 = vunpack.c.l.b16 %v1168
    %v3222 = vunpack.c.l.b16 %v1169
    %v3223 = vunpack.c.l.b16 %v1170
    %v3224 = vunpack.c.l.b16 %v1171
    %v3225 = vunpack.c.l.b16 %v1172
    %v3226 = vunpack.c.l.b16 %v1173
    %v3227 = vunpack.c.l.b16 %v1174
    %v3228 = vunpack.c.l.b16 %v1175
    %v3229 = vunpack.c.l.b16 %v1176
    %v3230 = vunpack.c.l.b16 %v1177
    %v3231 = vunpack.c.l.b16 %v1178
    %v3232 = vunpack.c.l.b16 %v1179
    %v3233 = vunpack.c.l.b16 %v1180
    %v3234 = vunpack.c.l.b16 %v1181
    %v3235 = vunpack.c.l.b16 %v1182
    %v3236 = vunpack.c.l.b16 %v1183
    %v3237 = vunpack.c.l.b16 %v1184
    %v3238 = vunpack.c.l.b16 %v1185
    %v3239 = vunpack.c.l.b16 %v1186
    %v3240 = vunpack.c.l.b16 %v1187
    %v3241 = vunpack.c.l.b16 %v1188
    %v3242 = vunpack.c.l.b16 %v1189
    %v3243 = vunpack.c.l.b16 %v1190
    %v3244 = vunpack.c.l.b16 %v1191
    %v3245 = vunpack.c.l.b16 %v1192
    %v3246 = vunpack.c.l.b16 %v1193
    %v3247 = vunpack.c.l.b16 %v1194
    %v3248 = vunpack.c.l.b16 %v1195
    %v3249 = vunpack.c.l.b16 %v1196
    %v3250 = vunpack.c.l.b16 %v1197
    %v3251 = vunpack.c.l.b16 %v1198
    %v3252 = vunpack.c.l.b16 %v1199
    %v3253 = vunpack.c.l.b16 %v1200
    %v3254 = vunpack.c.l.b16 %v1201
    %v3255 = vunpack.c.l.b16 %v1202
    %v3256 = vunpack.c.l.b16 %v1203
    %v3257 = vunpack.c.l.b16 %v1204
    %v3258 = vunpack.c.l.b16 %v1205
    %v3259 = vunpack.c.l.b16 %v1206
    %v3260 = vunpack.c.l.b16 %v1207
    %v3261 = vunpack.c.l.b16 %v1208
    %v3262 = vunpack.c.l.b16 %v1209
    %v3263 = vunpack.c.l.b16 %v1210
    %v3264 = vunpack.c.l.b16 %v1211
    %v3265 = vunpack.c.l.b16 %v1212
    %v3266 = vunpack.c.l.b16 %v1213
    %v3267 = vunpack.c.l.b16 %v1214
    %v3268 = vunpack.c.l.b16 %v1215
    %v3269 = vunpack.c.l.b16 %v1216
    %v3270 = vunpack.c.l.b16 %v1217
    %v3271 = vunpack.c.l.b16 %v1218
    %v3272 = vunpack.c.l.b16 %v1219
    %v3273 = vunpack.c.l.b16 %v1220
    %v3274 = vunpack.c.l.b16 %v1221
    %v3275 = vunpack.c.l.b16 %v1222
    %v3276 = vunpack.c.l.b16 %v1223
    %v3277 = vunpack.c.l.b16 %v1224
    %v3278 = vunpack.c.l.b16 %v1225
    %v3279 = vunpack.c.l.b16 %v1226
    %v3280 = vunpack.c.l.b16 %v1227
    %v3281 = vunpack.c.l.b16 %v1228
    %v3282 = vunpack.c.l.b16 %v1229
    %v3283 = vunpack.c.l.b16 %v1230
    %v3284 = vunpack.c.l.b16 %v1231
    %v3285 = vunpack.c.l.b16 %v1232
    %v3286 = vunpack.c.l.b16 %v1233
    %v3287 = vunpack.c.l.b16 %v1234
    %v3288 = vunpack.c.l.b16 %v1235
    %v3289 = vunpack.c.l.b16 %v1236
    %v3290 = vunpack.c.l.b16 %v1237
    %v3291 = vunpack.c.l.b16 %v1238
    %v3292 = vunpack.c.l.b16 %v1239
    %v3293 = vunpack.c.l.b16 %v1240
    %v3294 = vunpack.c.l.b16 %v1241
    %v3295 = vunpack.c.l.b16 %v1242
    %v3296 = vunpack.c.l.b16 %v1243
    %v3297 = vunpack.c.l.b16 %v1244
    %v3298 = vunpack.c.l.b16 %v1245
    %v3299 = vunpack.c.l.b16 %v1246
    %v3300 = vunpack.c.l.b16 %v1247
    %v3301 = vunpack.c.l.b16 %v1248
    %v3302 = vunpack.c.l.b16 %v1249
    %v3303 = vunpack.c.l.b16 %v1250
    %v3304 = vunpack.c.l.b16 %v1251
    %v3305 = vunpack.c.l.b16 %v1252
    %v3306 = vunpack.c.l.b16 %v1253
    %v3307 = vunpack.c.l.b16 %v1254
    %v3308 = vunpack.c.l.b16 %v1255
    %v3309 = vunpack.c.l.b16 %v1256
    %v3310 = vunpack.c.l.b16 %v1257
    %v3311 = vunpack.c.l.b16 %v1258
    %v3312 = vunpack.c.l.b16 %v1259
    %v3313 = vunpack.c.l.b16 %v1260
    %v3314 = vunpack.c.l.b16 %v1261
    %v3315 = vunpack.c.l.b16 %v1262
    %v3316 = vunpack.c.l.b16 %v1263
    %v3317 = vunpack.c.l.b16 %v1264
    %v3318 = vunpack.c.l.b16 %v1265
    %v3319 = vunpack.c.l.b16 %v1266
    %v3320 = vunpack.c.l.b16 %v1267
    %v3321 = vunpack.c.l.b16 %v1268
    %v3322 = vunpack.c.l.b16 %v1269
    %v3323 = vunpack.c.l.b16 %v1270
    %v3324 = vunpack.c.l.b16 %v1271
    %v3325 = vunpack.c.l.b16 %v1272
    %v3326 = vunpack.c.l.b16 %v1273
    %v3327 = vunpack.c.l.b16 %v1274
    %v3328 = vunpack.c.l.b16 %v1275
    %v3329 = vunpack.c.l.b16 %v1276
    %v3330 = vunpack.c.l.b16 %v1277
    %v3331 = vunpack.c.l.b16 %v1278
    %v3332 = vunpack.c.l.b16 %v1279
    %v3333 = vunpack.c.l.b16 %v1280
    %v3334 = vunpack.c.l.b16 %v1281
    %v3335 = vunpack.c.l.b16 %v1282
    %v3336 = vunpack.c.l.b16 %v1283
    %v3337 = vunpack.c.l.b16 %v1284
    %v3338 = vunpack.c.l.b16 %v1285
    %v3339 = vunpack.c.l.b16 %v1286
    %v3340 = vunpack.c.l.b16 %v1287
    %v3341 = vunpack.c.l.b16 %v1288
    %v3342 = vunpack.c.l.b16 %v1289
    %v3343 = vunpack.c.l.b16 %v1290
    %v3344 = vunpack.c.l.b16 %v1291
    %v3345 = vunpack.c.l.b16 %v1292
    %v3346 = vunpack.c.l.b16 %v1293
    %v3347 = vunpack.c.l.b16 %v1294
    %v3348 = vunpack.c.l.b16 %v1295
    %v3349 = vunpack.c.l.b16 %v1296
    %v3350 = vunpack.c.l.b16 %v1297
    %v3351 = vunpack.c.l.b16 %v1298
    %v3352 = vunpack.c.l.b16 %v1299
    %v3353 = vunpack.c.l.b16 %v1300
    %v3354 = vunpack.c.l.b16 %v1301
    %v3355 = vunpack.c.l.b16 %v1302
    %v3356 = vunpack.c.l.b16 %v1303
    %v3357 = vunpack.c.l.b16 %v1304
    %v3358 = vunpack.c.l.b16 %v1305
    %v3359 = vunpack.c.l.b16 %v1306
    %v3360 = vunpack.c.l.b16 %v1307
    %v3361 = vunpack.c.l.b16 %v1308
    %v3362 = vunpack.c.l.b16 %v1309
    %v3363 = vunpack.c.l.b16 %v1310
    %v3364 = vunpack.c.l.b16 %v1311
    %v3365 = vunpack.c.l.b16 %v1312
    %v3366 = vunpack.c.l.b16 %v1313
    %v3367 = vunpack.c.l.b16 %v1314
    %v3368 = vunpack.c.l.b16 %v1315
    %v3369 = vunpack.c.l.b16 %v1316
    %v3370 = vunpack.c.l.b16 %v1317
    %v3371 = vunpack.c.l.b16 %v1318
    %v3372 = vunpack.c.l.b16 %v1319
    %v3373 = vunpack.c.l.b16 %v1320
    %v3374 = vunpack.c.l.b16 %v1321
    %v3375 = vunpack.c.l.b16 %v1322
    %v3376 = vunpack.c.l.b16 %v1323
    %v3377 = vunpack.c.l.b16 %v1324
    %v3378 = vunpack.c.l.b16 %v1325
    %v3379 = vunpack.c.l.b16 %v1326
    %v3380 = vunpack.c.l.b16 %v1327
    %v3381 = vunpack.c.l.b16 %v1328
    %v3382 = vunpack.c.l.b16 %v1329
    %v3383 = vunpack.c.l.b16 %v1330
    %v3384 = vunpack.c.l.b16 %v1331
    %v3385 = vunpack.c.l.b16 %v1332
    %v3386 = vunpack.c.l.b16 %v1333
    %v3387 = vunpack.c.l.b16 %v1334
    %v3388 = vunpack.c.l.b16 %v1335
    %v3389 = vunpack.c.l.b16 %v1336
    %v3390 = vunpack.c.l.b16 %v1337
    %v3391 = vunpack.c.l.b16 %v1338
    %v3392 = vunpack.c.l.b16 %v1339
    %v3393 = vunpack.c.l.b16 %v1340
    %v3394 = vunpack.c.l.b16 %v1341
    %v3395 = vunpack.c.l.b16 %v1342
    %v3396 = vunpack.c.l.b16 %v1343
    %v3397 = vunpack.c.l.b16 %v1344
    %v3398 = vunpack.c.l.b16 %v1345
    %v3399 = vunpack.c.l.b16 %v1346
    %v3400 = vunpack.c.l.b16 %v1347
    %v3401 = vunpack.c.l.b16 %v1348
    %v3402 = vunpack.c.l.b16 %v1349
    %v3403 = vunpack.c.l.b16 %v1350
    %v3404 = vunpack.c.l.b16 %v1351
    %v3405 = vunpack.c.l.b16 %v1352
    %v3406 = vunpack.c.l.b16 %v1353
    %v3407 = vunpack.c.l.b16 %v1354
    %v3408 = vunpack.c.l.b16 %v1355
    %v3409 = vunpack.c.l.b16 %v1356
    %v3410 = vunpack.c.l.b16 %v1357
    %v3411 = vunpack.c.l.b16 %v1358
    %v3412 = vunpack.c.l.b16 %v1359
    %v3413 = vunpack.c.l.b16 %v1360
    %v3414 = vunpack.c.l.b16 %v1361
    %v3415 = vunpack.c.l.b16 %v1362
    %v3416 = vunpack.c.l.b16 %v1363
    %v3417 = vunpack.c.l.b16 %v1364
    %v3418 = vunpack.c.l.b16 %v1365
    %v3419 = vunpack.c.l.b16 %v1366
    %v3420 = vunpack.c.l.b16 %v1367
    %v3421 = vunpack.c.l.b16 %v1368
    %v3422 = vunpack.c.l.b16 %v1369
    %v3423 = vunpack.c.l.b16 %v1370
    %v3424 = vunpack.c.l.b16 %v1371
    %v3425 = vunpack.c.l.b16 %v1372
    %v3426 = vunpack.c.l.b16 %v1373
    %v3427 = vunpack.c.l.b16 %v1374
    %v3428 = vunpack.c.l.b16 %v1375
    %v3429 = vunpack.c.l.b16 %v1376
    %v3430 = vunpack.c.l.b16 %v1377
    %v3431 = vunpack.c.l.b16 %v1378
    %v3432 = vunpack.c.l.b16 %v1379
    %v3433 = vunpack.c.l.b16 %v1380
    %v3434 = vunpack.c.l.b16 %v1381
    %v3435 = vunpack.c.l.b16 %v1382
    %v3436 = vunpack.c.l.b16 %v1383
    %v3437 = vunpack.c.l.b16 %v1384
    %v3438 = vunpack.c.l.b16 %v1385
    %v3439 = vunpack.c.l.b16 %v1386
    %v3440 = vunpack.c.l.b16 %v1387
    %v3441 = vunpack.c.l.b16 %v1388
    %v3442 = vunpack.c.l.b16 %v1389
    %v3443 = vunpack.c.l.b16 %v1390
    %v3444 = vunpack.c.l.b16 %v1391
    %v3445 = vunpack.c.l.b16 %v1392
    %v3446 = vunpack.c.l.b16 %v1393
    %v3447 = vunpack.c.l.b16 %v1394
    %v3448 = vunpack.c.l.b16 %v1395
    %v3449 = vunpack.c.l.b16 %v1396
    %v3450 = vunpack.c.l.b16 %v1397
    %v3451 = vunpack.c.l.b16 %v1398
    %v3452 = vunpack.c.l.b16 %v1399
    %v3453 = vunpack.c.l.b16 %v1400
    %v3454 = vunpack.c.l.b16 %v1401
    %v3455 = vunpack.c.l.b16 %v1402
    %v3456 = vunpack.c.l.b16 %v1403
    %v3457 = vunpack.c.l.b16 %v1404
    %v3458 = vunpack.c.l.b16 %v1405
    %v3459 = vunpack.c.l.b16 %v1406
    %v3460 = vunpack.c.l.b16 %v1407
    %v3461 = vunpack.c.l.b16 %v1408
    %v3462 = vunpack.c.l.b16 %v1409
    %v3463 = vunpack.c.l.b16 %v1410
    %v3464 = vunpack.c.l.b16 %v1411
    %v3465 = vunpack.c.l.b16 %v1412
    %v3466 = vunpack.c.l.b16 %v1413
    %v3467 = vunpack.c.l.b16 %v1414
    %v3468 = vunpack.c.l.b16 %v1415
    %v3469 = vunpack.c.l.b16 %v1416
    %v3470 = vunpack.c.l.b16 %v1417
    %v3471 = vunpack.c.l.b16 %v1418
    %v3472 = vunpack.c.l.b16 %v1419
    %v3473 = vunpack.c.l.b16 %v1420
    %v3474 = vunpack.c.l.b16 %v1421
    %v3475 = vunpack.c.l.b16 %v1422
    %v3476 = vunpack.c.l.b16 %v1423
    %v3477 = vunpack.c.l.b16 %v1424
    %v3478 = vunpack.c.l.b16 %v1425
    %v3479 = vunpack.c.l.b16 %v1426
    %v3480 = vunpack.c.l.b16 %v1427
    %v3481 = vunpack.c.l.b16 %v1428
    %v3482 = vunpack.c.l.b16 %v1429
    %v3483 = vunpack.c.l.b16 %v1430
    %v3484 = vunpack.c.l.b16 %v1431
    %v3485 = vunpack.c.l.b16 %v1432
    %v3486 = vunpack.c.l.b16 %v1433
    %v3487 = vunpack.c.l.b16 %v1434
    %v3488 = vunpack.c.l.b16 %v1435
    %v3489 = vunpack.c.l.b16 %v1436
    %v3490 = vunpack.c.l.b16 %v1437
    %v3491 = vunpack.c.l.b16 %v1438
    %v3492 = vunpack.c.l.b16 %v1439
    %v3493 = vunpack.c.l.b16 %v1440
    %v3494 = vunpack.c.l.b16 %v1441
    %v3495 = vunpack.c.l.b16 %v1442
    %v3496 = vunpack.c.l.b16 %v1443
    %v3497 = vunpack.c.l.b16 %v1444
    %v3498 = vunpack.c.l.b16 %v1445
    %v3499 = vunpack.c.l.b16 %v1446
    %v3500 = vunpack.c.l.b16 %v1447
    %v3501 = vunpack.c.l.b16 %v1448
    %v3502 = vunpack.c.l.b16 %v1449
    %v3503 = vunpack.c.l.b16 %v1450
    %v3504 = vunpack.c.l.b16 %v1451
    %v3505 = vunpack.c.l.b16 %v1452
    %v3506 = vunpack.c.l.b16 %v1453
    %v3507 = vunpack.c.l.b16 %v1454
    %v3508 = vunpack.c.l.b16 %v1455
    %v3509 = vunpack.c.l.b16 %v1456
    %v3510 = vunpack.c.l.b16 %v1457
    %v3511 = vunpack.c.l.b16 %v1458
    %v3512 = vunpack.c.l.b16 %v1459
    %v3513 = vunpack.c.l.b16 %v1460
    %v3514 = vunpack.c.l.b16 %v1461
    %v3515 = vunpack.c.l.b16 %v1462
    %v3516 = vunpack.c.l.b16 %v1463
    %v3517 = vunpack.c.l.b16 %v1464
    %v3518 = vunpack.c.l.b16 %v1465
    %v3519 = vunpack.c.l.b16 %v1466
    %v3520 = vunpack.c.l.b16 %v1467
    %v3521 = vunpack.c.l.b16 %v1468
    %v3522 = vunpack.c.l.b16 %v1469
    %v3523 = vunpack.c.l.b16 %v1470
    %v3524 = vunpack.c.l.b16 %v1471
    %v3525 = vunpack.c.l.b16 %v1472
    %v3526 = vunpack.c.l.b16 %v1473
    %v3527 = vunpack.c.l.b16 %v1474
    %v3528 = vunpack.c.l.b16 %v1475
    %v3529 = vunpack.c.l.b16 %v1476
    %v3530 = vunpack.c.l.b16 %v1477
    %v3531 = vunpack.c.l.b16 %v1478
    %v3532 = vunpack.c.l.b16 %v1479
    %v3533 = vunpack.c.l.b16 %v1480
    %v3534 = vpack.c.b16 %v2511, %v2510
    %v3535 = vpack.c.b16 %v2513, %v2512
    %v3536 = vpack.c.b16 %v2515, %v2514
    %v3537 = vpack.c.b16 %v2517, %v2516
    %v3538 = vpack.c.b16 %v2519, %v2518
    %v3539 = vpack.c.b16 %v2521, %v2520
    %v3540 = vpack.c.b16 %v2523, %v2522
    %v3541 = vpack.c.b16 %v2525, %v2524
    %v3542 = vpack.c.b16 %v2527, %v2526
    %v3543 = vpack.c.b16 %v2529, %v2528
    %v3544 = vpack.c.b16 %v2531, %v2530
    %v3545 = vpack.c.b16 %v2533, %v2532
    %v3546 = vpack.c.b16 %v2535, %v2534
    %v3547 = vpack.c.b16 %v2537, %v2536
    %v3548 = vpack.c.b16 %v2539, %v2538
    %v3549 = vpack.c.b16 %v2541, %v2540
    %v3550 = vpack.c.b16 %v2543, %v2542
    %v3551 = vpack.c.b16 %v2545, %v2544
    %v3552 = vpack.c.b16 %v2547, %v2546
    %v3553 = vpack.c.b16 %v2549, %v2548
    %v3554 = vpack.c.b16 %v2551, %v2550
    %v3555 = vpack.c.b16 %v2553, %v2552
    %v3556 = vpack.c.b16 %v2555, %v2554
    %v3557 = vpack.c.b16 %v2557, %v2556
    %v3558 = vpack.c.b16 %v2559, %v2558
    %v3559 = vpack.c.b16 %v2561, %v2560
    %v3560 = vpack.c.b16 %v2563, %v2562
    %v3561 = vpack.c.b16 %v2565, %v2564
    %v3562 = vpack.c.b16 %v2567, %v2566
    %v3563 = vpack.c.b16 %v2569, %v2568
    %v3564 = vpack.c.b16 %v2571, %v2570
    %v3565 = vpack.c.b16 %v2573, %v2572
    %v3566 = vpack.c.b16 %v2575, %v2574
    %v3567 = vpack.c.b16 %v2577, %v2576
    %v3568 = vpack.c.b16 %v2579, %v2578
    %v3569 = vpack.c.b16 %v2581, %v2580
    %v3570 = vpack.c.b16 %v2583, %v2582
    %v3571 = vpack.c.b16 %v2585, %v2584
    %v3572 = vpack.c.b16 %v2587, %v2586
    %v3573 = vpack.c.b16 %v2589, %v2588
    %v3574 = vpack.c.b16 %v2591, %v2590
    %v3575 = vpack.c.b16 %v2593, %v2592
    %v3576 = vpack.c.b16 %v2595, %v2594
    %v3577 = vpack.c.b16 %v2597, %v2596
    %v3578 = vpack.c.b16 %v2599, %v2598
    %v3579 = vpack.c.b16 %v2601, %v2600
    %v3580 = vpack.c.b16 %v2603, %v2602
    %v3581 = vpack.c.b16 %v2605, %v2604
    %v3582 = vpack.c.b16 %v2607, %v2606
    %v3583 = vpack.c.b16 %v2609, %v2608
    %v3584 = vpack.c.b16 %v2611, %v2610
    %v3585 = vpack.c.b16 %v2613, %v2612
    %v3586 = vpack.c.b16 %v2615, %v2614
    %v3587 = vpack.c.b16 %v2617, %v2616
    %v3588 = vpack.c.b16 %v2619, %v2618
    %v3589 = vpack.c.b16 %v2621, %v2620
    %v3590 = vpack.c.b16 %v2623, %v2622
    %v3591 = vpack.c.b16 %v2625, %v2624
    %v3592 = vpack.c.b16 %v2627, %v2626
    %v3593 = vpack.c.b16 %v2629, %v2628
    %v3594 = vpack.c.b16 %v2631, %v2630
    %v3595 = vpack.c.b16 %v2633, %v2632
    %v3596 = vpack.c.b16 %v2635, %v2634
    %v3597 = vpack.c.b16 %v2637, %v2636
    %v3598 = vpack.c.b16 %v2639, %v2638
    %v3599 = vpack.c.b16 %v2641, %v2640
    %v3600 = vpack.c.b16 %v2643, %v2642
    %v3601 = vpack.c.b16 %v2645, %v2644
    %v3602 = vpack.c.b16 %v2647, %v2646
    %v3603 = vpack.c.b16 %v2649, %v2648
    %v3604 = vpack.c.b16 %v2651, %v2650
    %v3605 = vpack.c.b16 %v2653, %v2652
    %v3606 = vpack.c.b16 %v2655, %v2654
    %v3607 = vpack.c.b16 %v2657, %v2656
    %v3608 = vpack.c.b16 %v2659, %v2658
    %v3609 = vpack.c.b16 %v2661, %v2660
    %v3610 = vpack.c.b16 %v2663, %v2662
    %v3611 = vpack.c.b16 %v2665, %v2664
    %v3612 = vpack.c.b16 %v2667, %v2666
    %v3613 = vpack.c.b16 %v2669, %v2668
    %v3614 = vpack.c.b16 %v2671, %v2670
    %v3615 = vpack.c.b16 %v2673, %v2672
    %v3616 = vpack.c.b16 %v2675, %v2674
    %v3617 = vpack.c.b16 %v2677, %v2676
    %v3618 = vpack.c.b16 %v2679, %v2678
    %v3619 = vpack.c.b16 %v2681, %v2680
    %v3620 = vpack.c.b16 %v2683, %v2682
    %v3621 = vpack.c.b16 %v2685, %v2684
    %v3622 = vpack.c.b16 %v2687, %v2686
    %v3623 = vpack.c.b16 %v2689, %v2688
    %v3624 = vpack.c.b16 %v2691, %v2690
    %v3625 = vpack.c.b16 %v2693, %v2692
    %v3626 = vpack.c.b16 %v2695, %v2694
    %v3627 = vpack.c.b16 %v2697, %v2696
    %v3628 = vpack.c.b16 %v2699, %v2698
    %v3629 = vpack.c.b16 %v2701, %v2700
    %v3630 = vpack.c.b16 %v2703, %v2702
    %v3631 = vpack.c.b16 %v2705, %v2704
    %v3632 = vpack.c.b16 %v2707, %v2706
    %v3633 = vpack.c.b16 %v2709, %v2708
    %v3634 = vpack.c.b16 %v2711, %v2710
    %v3635 = vpack.c.b16 %v2713, %v2712
    %v3636 = vpack.c.b16 %v2715, %v2714
    %v3637 = vpack.c.b16 %v2717, %v2716
    %v3638 = vpack.c.b16 %v2719, %v2718
    %v3639 = vpack.c.b16 %v2721, %v2720
    %v3640 = vpack.c.b16 %v2723, %v2722
    %v3641 = vpack.c.b16 %v2725, %v2724
    %v3642 = vpack.c.b16 %v2727, %v2726
    %v3643 = vpack.c.b16 %v2729, %v2728
    %v3644 = vpack.c.b16 %v2731, %v2730
    %v3645 = vpack.c.b16 %v2733, %v2732
    %v3646 = vpack.c.b16 %v2735, %v2734
    %v3647 = vpack.c.b16 %v2737, %v2736
    %v3648 = vpack.c.b16 %v2739, %v2738
    %v3649 = vpack.c.b16 %v2741, %v2740
    %v3650 = vpack.c.b16 %v2743, %v2742
    %v3651 = vpack.c.b16 %v2745, %v2744
    %v3652 = vpack.c.b16 %v2747, %v2746
    %v3653 = vpack.c.b16 %v2749, %v2748
    %v3654 = vpack.c.b16 %v2751, %v2750
    %v3655 = vpack.c.b16 %v2753, %v2752
    %v3656 = vpack.c.b16 %v2755, %v2754
    %v3657 = vpack.c.b16 %v2757, %v2756
    %v3658 = vpack.c.b16 %v2759, %v2758
    %v3659 = vpack.c.b16 %v2761, %v2760
    %v3660 = vpack.c.b16 %v2763, %v2762
    %v3661 = vpack.c.b16 %v2765, %v2764
    %v3662 = vpack.c.b16 %v2767, %v2766
    %v3663 = vpack.c.b16 %v2769, %v2768
    %v3664 = vpack.c.b16 %v2771, %v2770
    %v3665 = vpack.c.b16 %v2773, %v2772
    %v3666 = vpack.c.b16 %v2775, %v2774
    %v3667 = vpack.c.b16 %v2777, %v2776
    %v3668 = vpack.c.b16 %v2779, %v2778
    %v3669 = vpack.c.b16 %v2781, %v2780
    %v3670 = vpack.c.b16 %v2783, %v2782
    %v3671 = vpack.c.b16 %v2785, %v2784
    %v3672 = vpack.c.b16 %v2787, %v2786
    %v3673 = vpack.c.b16 %v2789, %v2788
    %v3674 = vpack.c.b16 %v2791, %v2790
    %v3675 = vpack.c.b16 %v2793, %v2792
    %v3676 = vpack.c.b16 %v2795, %v2794
    %v3677 = vpack.c.b16 %v2797, %v2796
    %v3678 = vpack.c.b16 %v2799, %v2798
    %v3679 = vpack.c.b16 %v2801, %v2800
    %v3680 = vpack.c.b16 %v2803, %v2802
    %v3681 = vpack.c.b16 %v2805, %v2804
    %v3682 = vpack.c.b16 %v2807, %v2806
    %v3683 = vpack.c.b16 %v2809, %v2808
    %v3684 = vpack.c.b16 %v2811, %v2810
    %v3685 = vpack.c.b16 %v2813, %v2812
    %v3686 = vpack.c.b16 %v2815, %v2814
    %v3687 = vpack.c.b16 %v2817, %v2816
    %v3688 = vpack.c.b16 %v2819, %v2818
    %v3689 = vpack.c.b16 %v2821, %v2820
    %v3690 = vpack.c.b16 %v2823, %v2822
    %v3691 = vpack.c.b16 %v2825, %v2824
    %v3692 = vpack.c.b16 %v2827, %v2826
    %v3693 = vpack.c.b16 %v2829, %v2828
    %v3694 = vpack.c.b16 %v2831, %v2830
    %v3695 = vpack.c.b16 %v2833, %v2832
    %v3696 = vpack.c.b16 %v2835, %v2834
    %v3697 = vpack.c.b16 %v2837, %v2836
    %v3698 = vpack.c.b16 %v2839, %v2838
    %v3699 = vpack.c.b16 %v2841, %v2840
    %v3700 = vpack.c.b16 %v2843, %v2842
    %v3701 = vpack.c.b16 %v2845, %v2844
    %v3702 = vpack.c.b16 %v2847, %v2846
    %v3703 = vpack.c.b16 %v2849, %v2848
    %v3704 = vpack.c.b16 %v2851, %v2850
    %v3705 = vpack.c.b16 %v2853, %v2852
    %v3706 = vpack.c.b16 %v2855, %v2854
    %v3707 = vpack.c.b16 %v2857, %v2856
    %v3708 = vpack.c.b16 %v2859, %v2858
    %v3709 = vpack.c.b16 %v2861, %v2860
    %v3710 = vpack.c.b16 %v2863, %v2862
    %v3711 = vpack.c.b16 %v2865, %v2864
    %v3712 = vpack.c.b16 %v2867, %v2866
    %v3713 = vpack.c.b16 %v2869, %v2868
    %v3714 = vpack.c.b16 %v2871, %v2870
    %v3715 = vpack.c.b16 %v2873, %v2872
    %v3716 = vpack.c.b16 %v2875, %v2874
    %v3717 = vpack.c.b16 %v2877, %v2876
    %v3718 = vpack.c.b16 %v2879, %v2878
    %v3719 = vpack.c.b16 %v2881, %v2880
    %v3720 = vpack.c.b16 %v2883, %v2882
    %v3721 = vpack.c.b16 %v2885, %v2884
    %v3722 = vpack.c.b16 %v2887, %v2886
    %v3723 = vpack.c.b16 %v2889, %v2888
    %v3724 = vpack.c.b16 %v2891, %v2890
    %v3725 = vpack.c.b16 %v2893, %v2892
    %v3726 = vpack.c.b16 %v2895, %v2894
    %v3727 = vpack.c.b16 %v2897, %v2896
    %v3728 = vpack.c.b16 %v2899, %v2898
    %v3729 = vpack.c.b16 %v2901, %v2900
    %v3730 = vpack.c.b16 %v2903, %v2902
    %v3731 = vpack.c.b16 %v2905, %v2904
    %v3732 = vpack.c.b16 %v2907, %v2906
    %v3733 = vpack.c.b16 %v2909, %v2908
    %v3734 = vpack.c.b16 %v2911, %v2910
    %v3735 = vpack.c.b16 %v2913, %v2912
    %v3736 = vpack.c.b16 %v2915, %v2914
    %v3737 = vpack.c.b16 %v2917, %v2916
    %v3738 = vpack.c.b16 %v2919, %v2918
    %v3739 = vpack.c.b16 %v2921, %v2920
    %v3740 = vpack.c.b16 %v2923, %v2922
    %v3741 = vpack.c.b16 %v2925, %v2924
    %v3742 = vpack.c.b16 %v2927, %v2926
    %v3743 = vpack.c.b16 %v2929, %v2928
    %v3744 = vpack.c.b16 %v2931, %v2930
    %v3745 = vpack.c.b16 %v2933, %v2932
    %v3746 = vpack.c.b16 %v2935, %v2934
    %v3747 = vpack.c.b16 %v2937, %v2936
    %v3748 = vpack.c.b16 %v2939, %v2938
    %v3749 = vpack.c.b16 %v2941, %v2940
    %v3750 = vpack.c.b16 %v2943, %v2942
    %v3751 = vpack.c.b16 %v2945, %v2944
    %v3752 = vpack.c.b16 %v2947, %v2946
    %v3753 = vpack.c.b16 %v2949, %v2948
    %v3754 = vpack.c.b16 %v2951, %v2950
    %v3755 = vpack.c.b16 %v2953, %v2952
    %v3756 = vpack.c.b16 %v2955, %v2954
    %v3757 = vpack.c.b16 %v2957, %v2956
    %v3758 = vpack.c.b16 %v2959, %v2958
    %v3759 = vpack.c.b16 %v2961, %v2960
    %v3760 = vpack.c.b16 %v2963, %v2962
    %v3761 = vpack.c.b16 %v2965, %v2964
    %v3762 = vpack.c.b16 %v2967, %v2966
    %v3763 = vpack.c.b16 %v2969, %v2968
    %v3764 = vpack.c.b16 %v2971, %v2970
    %v3765 = vpack.c.b16 %v2973, %v2972
    %v3766 = vpack.c.b16 %v2975, %v2974
    %v3767 = vpack.c.b16 %v2977, %v2976
    %v3768 = vpack.c.b16 %v2979, %v2978
    %v3769 = vpack.c.b16 %v2981, %v2980
    %v3770 = vpack.c.b16 %v2983, %v2982
    %v3771 = vpack.c.b16 %v2985, %v2984
    %v3772 = vpack.c.b16 %v2987, %v2986
    %v3773 = vpack.c.b16 %v2989, %v2988
    %v3774 = vpack.c.b16 %v2991, %v2990
    %v3775 = vpack.c.b16 %v2993, %v2992
    %v3776 = vpack.c.b16 %v2995, %v2994
    %v3777 = vpack.c.b16 %v2997, %v2996
    %v3778 = vpack.c.b16 %v2999, %v2998
    %v3779 = vpack.c.b16 %v3001, %v3000
    %v3780 = vpack.c.b16 %v3003, %v3002
    %v3781 = vpack.c.b16 %v3005, %v3004
    %v3782 = vpack.c.b16 %v3007, %v3006
    %v3783 = vpack.c.b16 %v3009, %v3008
    %v3784 = vpack.c.b16 %v3011, %v3010
    %v3785 = vpack.c.b16 %v3013, %v3012
    %v3786 = vpack.c.b16 %v3015, %v3014
    %v3787 = vpack.c.b16 %v3017, %v3016
    %v3788 = vpack.c.b16 %v3019, %v3018
    %v3789 = vpack.c.b16 %v3021, %v3020
    %v3790 = vpack.c.b16 %v3023, %v3022
    %v3791 = vpack.c.b16 %v3025, %v3024
    %v3792 = vpack.c.b16 %v3027, %v3026
    %v3793 = vpack.c.b16 %v3029, %v3028
    %v3794 = vpack.c.b16 %v3031, %v3030
    %v3795 = vpack.c.b16 %v3033, %v3032
    %v3796 = vpack.c.b16 %v3035, %v3034
    %v3797 = vpack.c.b16 %v3037, %v3036
    %v3798 = vpack.c.b16 %v3039, %v3038
    %v3799 = vpack.c.b16 %v3041, %v3040
    %v3800 = vpack.c.b16 %v3043, %v3042
    %v3801 = vpack.c.b16 %v3045, %v3044
    %v3802 = vpack.c.b16 %v3047, %v3046
    %v3803 = vpack.c.b16 %v3049, %v3048
    %v3804 = vpack.c.b16 %v3051, %v3050
    %v3805 = vpack.c.b16 %v3053, %v3052
    %v3806 = vpack.c.b16 %v3055, %v3054
    %v3807 = vpack.c.b16 %v3057, %v3056
    %v3808 = vpack.c.b16 %v3059, %v3058
    %v3809 = vpack.c.b16 %v3061, %v3060
    %v3810 = vpack.c.b16 %v3063, %v3062
    %v3811 = vpack.c.b16 %v3065, %v3064
    %v3812 = vpack.c.b16 %v3067, %v3066
    %v3813 = vpack.c.b16 %v3069, %v3068
    %v3814 = vpack.c.b16 %v3071, %v3070
    %v3815 = vpack.c.b16 %v3073, %v3072
    %v3816 = vpack.c.b16 %v3075, %v3074
    %v3817 = vpack.c.b16 %v3077, %v3076
    %v3818 = vpack.c.b16 %v3079, %v3078
    %v3819 = vpack.c.b16 %v3081, %v3080
    %v3820 = vpack.c.b16 %v3083, %v3082
    %v3821 = vpack.c.b16 %v3085, %v3084
    %v3822 = vpack.c.b16 %v3087, %v3086
    %v3823 = vpack.c.b16 %v3089, %v3088
    %v3824 = vpack.c.b16 %v3091, %v3090
    %v3825 = vpack.c.b16 %v3093, %v3092
    %v3826 = vpack.c.b16 %v3095, %v3094
    %v3827 = vpack.c.b16 %v3097, %v3096
    %v3828 = vpack.c.b16 %v3099, %v3098
    %v3829 = vpack.c.b16 %v3101, %v3100
    %v3830 = vpack.c.b16 %v3103, %v3102
    %v3831 = vpack.c.b16 %v3105, %v3104
    %v3832 = vpack.c.b16 %v3107, %v3106
    %v3833 = vpack.c.b16 %v3109, %v3108
    %v3834 = vpack.c.b16 %v3111, %v3110
    %v3835 = vpack.c.b16 %v3113, %v3112
    %v3836 = vpack.c.b16 %v3115, %v3114
    %v3837 = vpack.c.b16 %v3117, %v3116
    %v3838 = vpack.c.b16 %v3119, %v3118
    %v3839 = vpack.c.b16 %v3121, %v3120
    %v3840 = vpack.c.b16 %v3123, %v3122
    %v3841 = vpack.c.b16 %v3125, %v3124
    %v3842 = vpack.c.b16 %v3127, %v3126
    %v3843 = vpack.c.b16 %v3129, %v3128
    %v3844 = vpack.c.b16 %v3131, %v3130
    %v3845 = vpack.c.b16 %v3133, %v3132
    %v3846 = vpack.c.b16 %v3135, %v3134
    %v3847 = vpack.c.b16 %v3137, %v3136
    %v3848 = vpack.c.b16 %v3139, %v3138
    %v3849 = vpack.c.b16 %v3141, %v3140
    %v3850 = vpack.c.b16 %v3143, %v3142
    %v3851 = vpack.c.b16 %v3145, %v3144
    %v3852 = vpack.c.b16 %v3147, %v3146
    %v3853 = vpack.c.b16 %v3149, %v3148
    %v3854 = vpack.c.b16 %v3151, %v3150
    %v3855 = vpack.c.b16 %v3153, %v3152
    %v3856 = vpack.c.b16 %v3155, %v3154
    %v3857 = vpack.c.b16 %v3157, %v3156
    %v3858 = vpack.c.b16 %v3159, %v3158
    %v3859 = vpack.c.b16 %v3161, %v3160
    %v3860 = vpack.c.b16 %v3163, %v3162
    %v3861 = vpack.c.b16 %v3165, %v3164
    %v3862 = vpack.c.b16 %v3167, %v3166
    %v3863 = vpack.c.b16 %v3169, %v3168
    %v3864 = vpack.c.b16 %v3171, %v3170
    %v3865 = vpack.c.b16 %v3173, %v3172
    %v3866 = vpack.c.b16 %v3175, %v3174
    %v3867 = vpack.c.b16 %v3177, %v3176
    %v3868 = vpack.c.b16 %v3179, %v3178
    %v3869 = vpack.c.b16 %v3181, %v3180
    %v3870 = vpack.c.b16 %v3183, %v3182
    %v3871 = vpack.c.b16 %v3185, %v3184
    %v3872 = vpack.c.b16 %v3187, %v3186
    %v3873 = vpack.c.b16 %v3189, %v3188
    %v3874 = vpack.c.b16 %v3191, %v3190
    %v3875 = vpack.c.b16 %v3193, %v3192
    %v3876 = vpack.c.b16 %v3195, %v3194
    %v3877 = vpack.c.b16 %v3197, %v3196
    %v3878 = vpack.c.b16 %v3199, %v3198
    %v3879 = vpack.c.b16 %v3201, %v3200
    %v3880 = vpack.c.b16 %v3203, %v3202
    %v3881 = vpack.c.b16 %v3205, %v3204
    %v3882 = vpack.c.b16 %v3207, %v3206
    %v3883 = vpack.c.b16 %v3209, %v3208
    %v3884 = vpack.c.b16 %v3211, %v3210
    %v3885 = vpack.c.b16 %v3213, %v3212
    %v3886 = vpack.c.b16 %v3215, %v3214
    %v3887 = vpack.c.b16 %v3217, %v3216
    %v3888 = vpack.c.b16 %v3219, %v3218
    %v3889 = vpack.c.b16 %v3221, %v3220
    %v3890 = vpack.c.b16 %v3223, %v3222
    %v3891 = vpack.c.b16 %v3225, %v3224
    %v3892 = vpack.c.b16 %v3227, %v3226
    %v3893 = vpack.c.b16 %v3229, %v3228
    %v3894 = vpack.c.b16 %v3231, %v3230
    %v3895 = vpack.c.b16 %v3233, %v3232
    %v3896 = vpack.c.b16 %v3235, %v3234
    %v3897 = vpack.c.b16 %v3237, %v3236
    %v3898 = vpack.c.b16 %v3239, %v3238
    %v3899 = vpack.c.b16 %v3241, %v3240
    %v3900 = vpack.c.b16 %v3243, %v3242
    %v3901 = vpack.c.b16 %v3245, %v3244
    %v3902 = vpack.c.b16 %v3247, %v3246
    %v3903 = vpack.c.b16 %v3249, %v3248
    %v3904 = vpack.c.b16 %v3251, %v3250
    %v3905 = vpack.c.b16 %v3253, %v3252
    %v3906 = vpack.c.b16 %v3255, %v3254
    %v3907 = vpack.c.b16 %v3257, %v3256
    %v3908 = vpack.c.b16 %v3259, %v3258
    %v3909 = vpack.c.b16 %v3261, %v3260
    %v3910 = vpack.c.b16 %v3263, %v3262
    %v3911 = vpack.c.b16 %v3265, %v3264
    %v3912 = vpack.c.b16 %v3267, %v3266
    %v3913 = vpack.c.b16 %v3269, %v3268
    %v3914 = vpack.c.b16 %v3271, %v3270
    %v3915 = vpack.c.b16 %v3273, %v3272
    %v3916 = vpack.c.b16 %v3275, %v3274
    %v3917 = vpack.c.b16 %v3277, %v3276
    %v3918 = vpack.c.b16 %v3279, %v3278
    %v3919 = vpack.c.b16 %v3281, %v3280
    %v3920 = vpack.c.b16 %v3283, %v3282
    %v3921 = vpack.c.b16 %v3285, %v3284
    %v3922 = vpack.c.b16 %v3287, %v3286
    %v3923 = vpack.c.b16 %v3289, %v3288
    %v3924 = vpack.c.b16 %v3291, %v3290
    %v3925 = vpack.c.b16 %v3293, %v3292
    %v3926 = vpack.c.b16 %v3295, %v3294
    %v3927 = vpack.c.b16 %v3297, %v3296
    %v3928 = vpack.c.b16 %v3299, %v3298
    %v3929 = vpack.c.b16 %v3301, %v3300
    %v3930 = vpack.c.b16 %v3303, %v3302
    %v3931 = vpack.c.b16 %v3305, %v3304
    %v3932 = vpack.c.b16 %v3307, %v3306
    %v3933 = vpack.c.b16 %v3309, %v3308
    %v3934 = vpack.c.b16 %v3311, %v3310
    %v3935 = vpack.c.b16 %v3313, %v3312
    %v3936 = vpack.c.b16 %v3315, %v3314
    %v3937 = vpack.c.b16 %v3317, %v3316
    %v3938 = vpack.c.b16 %v3319, %v3318
    %v3939 = vpack.c.b16 %v3321, %v3320
    %v3940 = vpack.c.b16 %v3323, %v3322
    %v3941 = vpack.c.b16 %v3325, %v3324
    %v3942 = vpack.c.b16 %v3327, %v3326
    %v3943 = vpack.c.b16 %v3329, %v3328
    %v3944 = vpack.c.b16 %v3331, %v3330
    %v3945 = vpack.c.b16 %v3333, %v3332
    %v3946 = vpack.c.b16 %v3335, %v3334
    %v3947 = vpack.c.b16 %v3337, %v3336
    %v3948 = vpack.c.b16 %v3339, %v3338
    %v3949 = vpack.c.b16 %v3341, %v3340
    %v3950 = vpack.c.b16 %v3343, %v3342
    %v3951 = vpack.c.b16 %v3345, %v3344
    %v3952 = vpack.c.b16 %v3347, %v3346
    %v3953 = vpack.c.b16 %v3349, %v3348
    %v3954 = vpack.c.b16 %v3351, %v3350
    %v3955 = vpack.c.b16 %v3353, %v3352
    %v3956 = vpack.c.b16 %v3355, %v3354
    %v3957 = vpack.c.b16 %v3357, %v3356
    %v3958 = vpack.c.b16 %v3359, %v3358
    %v3959 = vpack.c.b16 %v3361, %v3360
    %v3960 = vpack.c.b16 %v3363, %v3362
    %v3961 = vpack.c.b16 %v3365, %v3364
    %v3962 = vpack.c.b16 %v3367, %v3366
    %v3963 = vpack.c.b16 %v3369, %v3368
    %v3964 = vpack.c.b16 %v3371, %v3370
    %v3965 = vpack.c.b16 %v3373, %v3372
    %v3966 = vpack.c.b16 %v3375, %v3374
    %v3967 = vpack.c.b16 %v3377, %v3376
    %v3968 = vpack.c.b16 %v3379, %v3378
    %v3969 = vpack.c.b16 %v3381, %v3380
    %v3970 = vpack.c.b16 %v3383, %v3382
    %v3971 = vpack.c.b16 %v3385, %v3384
    %v3972 = vpack.c.b16 %v3387, %v3386
    %v3973 = vpack.c.b16 %v3389, %v3388
    %v3974 = vpack.c.b16 %v3391, %v3390
    %v3975 = vpack.c.b16 %v3393, %v3392
    %v3976 = vpack.c.b16 %v3395, %v3394
    %v3977 = vpack.c.b16 %v3397, %v3396
    %v3978 = vpack.c.b16 %v3399, %v3398
    %v3979 = vpack.c.b16 %v3401, %v3400
    %v3980 = vpack.c.b16 %v3403, %v3402
    %v3981 = vpack.c.b16 %v3405, %v3404
    %v3982 = vpack.c.b16 %v3407, %v3406
    %v3983 = vpack.c.b16 %v3409, %v3408
    %v3984 = vpack.c.b16 %v3411, %v3410
    %v3985 = vpack.c.b16 %v3413, %v3412
    %v3986 = vpack.c.b16 %v3415, %v3414
    %v3987 = vpack.c.b16 %v3417, %v3416
    %v3988 = vpack.c.b16 %v3419, %v3418
    %v3989 = vpack.c.b16 %v3421, %v3420
    %v3990 = vpack.c.b16 %v3423, %v3422
    %v3991 = vpack.c.b16 %v3425, %v3424
    %v3992 = vpack.c.b16 %v3427, %v3426
    %v3993 = vpack.c.b16 %v3429, %v3428
    %v3994 = vpack.c.b16 %v3431, %v3430
    %v3995 = vpack.c.b16 %v3433, %v3432
    %v3996 = vpack.c.b16 %v3435, %v3434
    %v3997 = vpack.c.b16 %v3437, %v3436
    %v3998 = vpack.c.b16 %v3439, %v3438
    %v3999 = vpack.c.b16 %v3441, %v3440
    %v4000 = vpack.c.b16 %v3443, %v3442
    %v4001 = vpack.c.b16 %v3445, %v3444
    %v4002 = vpack.c.b16 %v3447, %v3446
    %v4003 = vpack.c.b16 %v3449, %v3448
    %v4004 = vpack.c.b16 %v3451, %v3450
    %v4005 = vpack.c.b16 %v3453, %v3452
    %v4006 = vpack.c.b16 %v3455, %v3454
    %v4007 = vpack.c.b16 %v3457, %v3456
    %v4008 = vpack.c.b16 %v3459, %v3458
    %v4009 = vpack.c.b16 %v3461, %v3460
    %v4010 = vpack.c.b16 %v3463, %v3462
    %v4011 = vpack.c.b16 %v3465, %v3464
    %v4012 = vpack.c.b16 %v3467, %v3466
    %v4013 = vpack.c.b16 %v3469, %v3468
    %v4014 = vpack.c.b16 %v3471, %v3470
    %v4015 = vpack.c.b16 %v3473, %v3472
    %v4016 = vpack.c.b16 %v3475, %v3474
    %v4017 = vpack.c.b16 %v3477, %v3476
    %v4018 = vpack.c.b16 %v3479, %v3478
    %v4019 = vpack.c.b16 %v3481, %v3480
    %v4020 = vpack.c.b16 %v3483, %v3482
    %v4021 = vpack.c.b16 %v3485, %v3484
    %v4022 = vpack.c.b16 %v3487, %v3486
    %v4023 = vpack.c.b16 %v3489, %v3488
    %v4024 = vpack.c.b16 %v3491, %v3490
    %v4025 = vpack.c.b16 %v3493, %v3492
    %v4026 = vpack.c.b16 %v3495, %v3494
    %v4027 = vpack.c.b16 %v3497, %v3496
    %v4028 = vpack.c.b16 %v3499, %v3498
    %v4029 = vpack.c.b16 %v3501, %v3500
    %v4030 = vpack.c.b16 %v3503, %v3502
    %v4031 = vpack.c.b16 %v3505, %v3504
    %v4032 = vpack.c.b16 %v3507, %v3506
    %v4033 = vpack.c.b16 %v3509, %v3508
    %v4034 = vpack.c.b16 %v3511, %v3510
    %v4035 = vpack.c.b16 %v3513, %v3512
    %v4036 = vpack.c.b16 %v3515, %v3514
    %v4037 = vpack.c.b16 %v3517, %v3516
    %v4038 = vpack.c.b16 %v3519, %v3518
    %v4039 = vpack.c.b16 %v3521, %v3520
    %v4040 = vpack.c.b16 %v3523, %v3522
    %v4041 = vpack.c.b16 %v3525, %v3524
    %v4042 = vpack.c.b16 %v3527, %v3526
    %v4043 = vpack.c.b16 %v3529, %v3528
    %v4044 = vpack.c.b16 %v3531, %v3530
    %v4045 = vpack.c.b16 %v3533, %v3532
    %4558 = vmatprep.subr.bf16.mxu0 0
    %4559 = vmatpush1.bf16.msra.mxu0 %v3534
    %4560 = vmatprep.subr.bf16.mxu0 0
    %4561 = vmatpush1.bf16.msra.mxu0 %v3535
    %4562 = vmatprep.subr.bf16.mxu0 0
    %4563 = vmatpush1.bf16.msra.mxu0 %v3536
    %4564 = vmatprep.subr.bf16.mxu0 0
    %4565 = vmatpush1.bf16.msra.mxu0 %v3537
    %4566 = vmatprep.subr.bf16.mxu0 0
    %4567 = vmatpush1.bf16.msra.mxu0 %v3538
    %4568 = vmatprep.subr.bf16.mxu0 0
    %4569 = vmatpush1.bf16.msra.mxu0 %v3539
    %4570 = vmatprep.subr.bf16.mxu0 0
    %4571 = vmatpush1.bf16.msra.mxu0 %v3540
    %4572 = vmatprep.subr.bf16.mxu0 0
    %4573 = vmatpush1.bf16.msra.mxu0 %v3541
    %4574 = vmatprep.subr.bf16.mxu0 0
    %4575 = vmatpush1.bf16.msra.mxu0 %v3542
    %4576 = vmatprep.subr.bf16.mxu0 0
    %4577 = vmatpush1.bf16.msra.mxu0 %v3543
    %4578 = vmatprep.subr.bf16.mxu0 0
    %4579 = vmatpush1.bf16.msra.mxu0 %v3544
    %4580 = vmatprep.subr.bf16.mxu0 0
    %4581 = vmatpush1.bf16.msra.mxu0 %v3545
    %4582 = vmatprep.subr.bf16.mxu0 0
    %4583 = vmatpush1.bf16.msra.mxu0 %v3546
    %4584 = vmatprep.subr.bf16.mxu0 0
    %4585 = vmatpush1.bf16.msra.mxu0 %v3547
    %4586 = vmatprep.subr.bf16.mxu0 0
    %4587 = vmatpush1.bf16.msra.mxu0 %v3548
    %4588 = vmatprep.subr.bf16.mxu0 0
    %4589 = vmatpush1.bf16.msra.mxu0 %v3549
    %4590 = vmatprep.mubr.bf16.mxu0 %v394
    %4591 = vmatmul.mubr.bf16.gmra.mrb[0].mxu0 %v393
    %v4592 = vpop.f32.mrb[0].mxu0
    %v4593 = vadd.f32 %v1485, %v4592
    %v4594 = vpop.f32.mrb[0].mxu0
    %v4595 = vpop.f32.mrb[0].mxu0
    %v4596 = vpop.f32.mrb[0].mxu0
    %4597 = vdwg.mxu0
    %4598 = vmatprep.subr.bf16.mxu0 0
    %4599 = vmatpush1.bf16.msra.mxu0 %v3550
    %4600 = vmatprep.subr.bf16.mxu0 0
    %4601 = vmatpush1.bf16.msra.mxu0 %v3551
    %4602 = vmatprep.subr.bf16.mxu0 0
    %4603 = vmatpush1.bf16.msra.mxu0 %v3552
    %4604 = vmatprep.subr.bf16.mxu0 0
    %4605 = vmatpush1.bf16.msra.mxu0 %v3553
    %4606 = vmatprep.subr.bf16.mxu0 0
    %4607 = vmatpush1.bf16.msra.mxu0 %v3554
    %4608 = vmatprep.subr.bf16.mxu0 0
    %4609 = vmatpush1.bf16.msra.mxu0 %v3555
    %4610 = vmatprep.subr.bf16.mxu0 0
    %4611 = vmatpush1.bf16.msra.mxu0 %v3556
    %4612 = vmatprep.subr.bf16.mxu0 0
    %4613 = vmatpush1.bf16.msra.mxu0 %v3557
    %4614 = vmatprep.subr.bf16.mxu0 0
    %4615 = vmatpush1.bf16.msra.mxu0 %v3558
    %4616 = vmatprep.subr.bf16.mxu0 0
    %4617 = vmatpush1.bf16.msra.mxu0 %v3559
    %4618 = vmatprep.subr.bf16.mxu0 0
    %4619 = vmatpush1.bf16.msra.mxu0 %v3560
    %4620 = vmatprep.subr.bf16.mxu0 0
    %4621 = vmatpush1.bf16.msra.mxu0 %v3561
    %4622 = vmatprep.subr.bf16.mxu0 0
    %4623 = vmatpush1.bf16.msra.mxu0 %v3562
    %4624 = vmatprep.subr.bf16.mxu0 0
    %4625 = vmatpush1.bf16.msra.mxu0 %v3563
    %4626 = vmatprep.subr.bf16.mxu0 0
    %4627 = vmatpush1.bf16.msra.mxu0 %v3564
    %4628 = vmatprep.subr.bf16.mxu0 0
    %4629 = vmatpush1.bf16.msra.mxu0 %v3565
    %4630 = vmatprep.mubr.bf16.mxu0 %v396
    %4631 = vmatmul.mubr.bf16.gmra.mrb[0].mxu0 %v395
    %v4632 = vpop.f32.mrb[0].mxu0
    %v4633 = vadd.f32 %v4593, %v4632
    %v4634 = vpop.f32.mrb[0].mxu0
    %v4635 = vpop.f32.mrb[0].mxu0
    %v4636 = vpop.f32.mrb[0].mxu0
    %4637 = vdwg.mxu0
    %4638 = vmatprep.subr.bf16.mxu0 0
    %4639 = vmatpush1.bf16.msra.mxu0 %v3566
    %4640 = vmatprep.subr.bf16.mxu0 0
    %4641 = vmatpush1.bf16.msra.mxu0 %v3567
    %4642 = vmatprep.subr.bf16.mxu0 0
    %4643 = vmatpush1.bf16.msra.mxu0 %v3568
    %4644 = vmatprep.subr.bf16.mxu0 0
    %4645 = vmatpush1.bf16.msra.mxu0 %v3569
    %4646 = vmatprep.subr.bf16.mxu0 0
    %4647 = vmatpush1.bf16.msra.mxu0 %v3570
    %4648 = vmatprep.subr.bf16.mxu0 0
    %4649 = vmatpush1.bf16.msra.mxu0 %v3571
    %4650 = vmatprep.subr.bf16.mxu0 0
    %4651 = vmatpush1.bf16.msra.mxu0 %v3572
    %4652 = vmatprep.subr.bf16.mxu0 0
    %4653 = vmatpush1.bf16.msra.mxu0 %v3573
    %4654 = vmatprep.subr.bf16.mxu0 0
    %4655 = vmatpush1.bf16.msra.mxu0 %v3574
    %4656 = vmatprep.subr.bf16.mxu0 0
    %4657 = vmatpush1.bf16.msra.mxu0 %v3575
    %4658 = vmatprep.subr.bf16.mxu0 0
    %4659 = vmatpush1.bf16.msra.mxu0 %v3576
    %4660 = vmatprep.subr.bf16.mxu0 0
    %4661 = vmatpush1.bf16.msra.mxu0 %v3577
    %4662 = vmatprep.subr.bf16.mxu0 0
    %4663 = vmatpush1.bf16.msra.mxu0 %v3578
    %4664 = vmatprep.subr.bf16.mxu0 0
    %4665 = vmatpush1.bf16.msra.mxu0 %v3579
    %4666 = vmatprep.subr.bf16.mxu0 0
    %4667 = vmatpush1.bf16.msra.mxu0 %v3580
    %4668 = vmatprep.subr.bf16.mxu0 0
    %4669 = vmatpush1.bf16.msra.mxu0 %v3581
    %4670 = vmatprep.mubr.bf16.mxu0 %v398
    %4671 = vmatmul.mubr.bf16.gmra.mrb[0].mxu0 %v397
    %v4672 = vpop.f32.mrb[0].mxu0
    %v4673 = vadd.f32 %v4633, %v4672
    %v4674 = vpop.f32.mrb[0].mxu0
    %v4675 = vpop.f32.mrb[0].mxu0
    %v4676 = vpop.f32.mrb[0].mxu0
    %4677 = vdwg.mxu0
    %4678 = vmatprep.subr.bf16.mxu0 0
    %4679 = vmatpush1.bf16.msra.mxu0 %v3582
    %4680 = vmatprep.subr.bf16.mxu0 0
    %4681 = vmatpush1.bf16.msra.mxu0 %v3583
    %4682 = vmatprep.subr.bf16.mxu0 0
    %4683 = vmatpush1.bf16.msra.mxu0 %v3584
    %4684 = vmatprep.subr.bf16.mxu0 0
    %4685 = vmatpush1.bf16.msra.mxu0 %v3585
    %4686 = vmatprep.subr.bf16.mxu0 0
    %4687 = vmatpush1.bf16.msra.mxu0 %v3586
    %4688 = vmatprep.subr.bf16.mxu0 0
    %4689 = vmatpush1.bf16.msra.mxu0 %v3587
    %4690 = vmatprep.subr.bf16.mxu0 0
    %4691 = vmatpush1.bf16.msra.mxu0 %v3588
    %4692 = vmatprep.subr.bf16.mxu0 0
    %4693 = vmatpush1.bf16.msra.mxu0 %v3589
    %4694 = vmatprep.subr.bf16.mxu0 0
    %4695 = vmatpush1.bf16.msra.mxu0 %v3590
    %4696 = vmatprep.subr.bf16.mxu0 0
    %4697 = vmatpush1.bf16.msra.mxu0 %v3591
    %4698 = vmatprep.subr.bf16.mxu0 0
    %4699 = vmatpush1.bf16.msra.mxu0 %v3592
    %4700 = vmatprep.subr.bf16.mxu0 0
    %4701 = vmatpush1.bf16.msra.mxu0 %v3593
    %4702 = vmatprep.subr.bf16.mxu0 0
    %4703 = vmatpush1.bf16.msra.mxu0 %v3594
    %4704 = vmatprep.subr.bf16.mxu0 0
    %4705 = vmatpush1.bf16.msra.mxu0 %v3595
    %4706 = vmatprep.subr.bf16.mxu0 0
    %4707 = vmatpush1.bf16.msra.mxu0 %v3596
    %4708 = vmatprep.subr.bf16.mxu0 0
    %4709 = vmatpush1.bf16.msra.mxu0 %v3597
    %4710 = vmatprep.mubr.bf16.mxu0 %v400
    %4711 = vmatmul.mubr.bf16.gmra.mrb[0].mxu0 %v399
    %v4712 = vpop.f32.mrb[0].mxu0
    %v4713 = vadd.f32 %v4673, %v4712
    %v4714 = vpop.f32.mrb[0].mxu0
    %v4715 = vpop.f32.mrb[0].mxu0
    %v4716 = vpop.f32.mrb[0].mxu0
    %4717 = vdwg.mxu0
    %4718 = vmatprep.subr.bf16.mxu0 0
    %4719 = vmatpush1.bf16.msra.mxu0 %v3598
    %4720 = vmatprep.subr.bf16.mxu0 0
    %4721 = vmatpush1.bf16.msra.mxu0 %v3599
    %4722 = vmatprep.subr.bf16.mxu0 0
    %4723 = vmatpush1.bf16.msra.mxu0 %v3600
    %4724 = vmatprep.subr.bf16.mxu0 0
    %4725 = vmatpush1.bf16.msra.mxu0 %v3601
    %4726 = vmatprep.subr.bf16.mxu0 0
    %4727 = vmatpush1.bf16.msra.mxu0 %v3602
    %4728 = vmatprep.subr.bf16.mxu0 0
    %4729 = vmatpush1.bf16.msra.mxu0 %v3603
    %4730 = vmatprep.subr.bf16.mxu0 0
    %4731 = vmatpush1.bf16.msra.mxu0 %v3604
    %4732 = vmatprep.subr.bf16.mxu0 0
    %4733 = vmatpush1.bf16.msra.mxu0 %v3605
    %4734 = vmatprep.subr.bf16.mxu0 0
    %4735 = vmatpush1.bf16.msra.mxu0 %v3606
    %4736 = vmatprep.subr.bf16.mxu0 0
    %4737 = vmatpush1.bf16.msra.mxu0 %v3607
    %4738 = vmatprep.subr.bf16.mxu0 0
    %4739 = vmatpush1.bf16.msra.mxu0 %v3608
    %4740 = vmatprep.subr.bf16.mxu0 0
    %4741 = vmatpush1.bf16.msra.mxu0 %v3609
    %4742 = vmatprep.subr.bf16.mxu0 0
    %4743 = vmatpush1.bf16.msra.mxu0 %v3610
    %4744 = vmatprep.subr.bf16.mxu0 0
    %4745 = vmatpush1.bf16.msra.mxu0 %v3611
    %4746 = vmatprep.subr.bf16.mxu0 0
    %4747 = vmatpush1.bf16.msra.mxu0 %v3612
    %4748 = vmatprep.subr.bf16.mxu0 0
    %4749 = vmatpush1.bf16.msra.mxu0 %v3613
    %4750 = vmatprep.mubr.bf16.mxu0 %v402
    %4751 = vmatmul.mubr.bf16.gmra.mrb[0].mxu0 %v401
    %v4752 = vpop.f32.mrb[0].mxu0
    %v4753 = vadd.f32 %v4713, %v4752
    %v4754 = vpop.f32.mrb[0].mxu0
    %v4755 = vpop.f32.mrb[0].mxu0
    %v4756 = vpop.f32.mrb[0].mxu0
    %4757 = vdwg.mxu0
    %4758 = vmatprep.subr.bf16.mxu0 0
    %4759 = vmatpush1.bf16.msra.mxu0 %v3614
    %4760 = vmatprep.subr.bf16.mxu0 0
    %4761 = vmatpush1.bf16.msra.mxu0 %v3615
    %4762 = vmatprep.subr.bf16.mxu0 0
    %4763 = vmatpush1.bf16.msra.mxu0 %v3616
    %4764 = vmatprep.subr.bf16.mxu0 0
    %4765 = vmatpush1.bf16.msra.mxu0 %v3617
    %4766 = vmatprep.subr.bf16.mxu0 0
    %4767 = vmatpush1.bf16.msra.mxu0 %v3618
    %4768 = vmatprep.subr.bf16.mxu0 0
    %4769 = vmatpush1.bf16.msra.mxu0 %v3619
    %4770 = vmatprep.subr.bf16.mxu0 0
    %4771 = vmatpush1.bf16.msra.mxu0 %v3620
    %4772 = vmatprep.subr.bf16.mxu0 0
    %4773 = vmatpush1.bf16.msra.mxu0 %v3621
    %4774 = vmatprep.subr.bf16.mxu0 0
    %4775 = vmatpush1.bf16.msra.mxu0 %v3622
    %4776 = vmatprep.subr.bf16.mxu0 0
    %4777 = vmatpush1.bf16.msra.mxu0 %v3623
    %4778 = vmatprep.subr.bf16.mxu0 0
    %4779 = vmatpush1.bf16.msra.mxu0 %v3624
    %4780 = vmatprep.subr.bf16.mxu0 0
    %4781 = vmatpush1.bf16.msra.mxu0 %v3625
    %4782 = vmatprep.subr.bf16.mxu0 0
    %4783 = vmatpush1.bf16.msra.mxu0 %v3626
    %4784 = vmatprep.subr.bf16.mxu0 0
    %4785 = vmatpush1.bf16.msra.mxu0 %v3627
    %4786 = vmatprep.subr.bf16.mxu0 0
    %4787 = vmatpush1.bf16.msra.mxu0 %v3628
    %4788 = vmatprep.subr.bf16.mxu0 0
    %4789 = vmatpush1.bf16.msra.mxu0 %v3629
    %4790 = vmatprep.mubr.bf16.mxu0 %v404
    %4791 = vmatmul.mubr.bf16.gmra.mrb[0].mxu0 %v403
    %v4792 = vpop.f32.mrb[0].mxu0
    %v4793 = vadd.f32 %v4753, %v4792
    %v4794 = vpop.f32.mrb[0].mxu0
    %v4795 = vpop.f32.mrb[0].mxu0
    %v4796 = vpop.f32.mrb[0].mxu0
    %4797 = vdwg.mxu0
    %4798 = vmatprep.subr.bf16.mxu0 0
    %4799 = vmatpush1.bf16.msra.mxu0 %v3630
    %4800 = vmatprep.subr.bf16.mxu0 0
    %4801 = vmatpush1.bf16.msra.mxu0 %v3631
    %4802 = vmatprep.subr.bf16.mxu0 0
    %4803 = vmatpush1.bf16.msra.mxu0 %v3632
    %4804 = vmatprep.subr.bf16.mxu0 0
    %4805 = vmatpush1.bf16.msra.mxu0 %v3633
    %4806 = vmatprep.subr.bf16.mxu0 0
    %4807 = vmatpush1.bf16.msra.mxu0 %v3634
    %4808 = vmatprep.subr.bf16.mxu0 0
    %4809 = vmatpush1.bf16.msra.mxu0 %v3635
    %4810 = vmatprep.subr.bf16.mxu0 0
    %4811 = vmatpush1.bf16.msra.mxu0 %v3636
    %4812 = vmatprep.subr.bf16.mxu0 0
    %4813 = vmatpush1.bf16.msra.mxu0 %v3637
    %4814 = vmatprep.subr.bf16.mxu0 0
    %4815 = vmatpush1.bf16.msra.mxu0 %v3638
    %4816 = vmatprep.subr.bf16.mxu0 0
    %4817 = vmatpush1.bf16.msra.mxu0 %v3639
    %4818 = vmatprep.subr.bf16.mxu0 0
    %4819 = vmatpush1.bf16.msra.mxu0 %v3640
    %4820 = vmatprep.subr.bf16.mxu0 0
    %4821 = vmatpush1.bf16.msra.mxu0 %v3641
    %4822 = vmatprep.subr.bf16.mxu0 0
    %4823 = vmatpush1.bf16.msra.mxu0 %v3642
    %4824 = vmatprep.subr.bf16.mxu0 0
    %4825 = vmatpush1.bf16.msra.mxu0 %v3643
    %4826 = vmatprep.subr.bf16.mxu0 0
    %4827 = vmatpush1.bf16.msra.mxu0 %v3644
    %4828 = vmatprep.subr.bf16.mxu0 0
    %4829 = vmatpush1.bf16.msra.mxu0 %v3645
    %4830 = vmatprep.mubr.bf16.mxu0 %v406
    %4831 = vmatmul.mubr.bf16.gmra.mrb[0].mxu0 %v405
    %v4832 = vpop.f32.mrb[0].mxu0
    %v4833 = vadd.f32 %v4793, %v4832
    %v4834 = vpop.f32.mrb[0].mxu0
    %v4835 = vpop.f32.mrb[0].mxu0
    %v4836 = vpop.f32.mrb[0].mxu0
    %4837 = vdwg.mxu0
    %4838 = vmatprep.subr.bf16.mxu0 0
    %4839 = vmatpush1.bf16.msra.mxu0 %v3646
    %4840 = vmatprep.subr.bf16.mxu0 0
    %4841 = vmatpush1.bf16.msra.mxu0 %v3647
    %4842 = vmatprep.subr.bf16.mxu0 0
    %4843 = vmatpush1.bf16.msra.mxu0 %v3648
    %4844 = vmatprep.subr.bf16.mxu0 0
    %4845 = vmatpush1.bf16.msra.mxu0 %v3649
    %4846 = vmatprep.subr.bf16.mxu0 0
    %4847 = vmatpush1.bf16.msra.mxu0 %v3650
    %4848 = vmatprep.subr.bf16.mxu0 0
    %4849 = vmatpush1.bf16.msra.mxu0 %v3651
    %4850 = vmatprep.subr.bf16.mxu0 0
    %4851 = vmatpush1.bf16.msra.mxu0 %v3652
    %4852 = vmatprep.subr.bf16.mxu0 0
    %4853 = vmatpush1.bf16.msra.mxu0 %v3653
    %4854 = vmatprep.subr.bf16.mxu0 0
    %4855 = vmatpush1.bf16.msra.mxu0 %v3654
    %4856 = vmatprep.subr.bf16.mxu0 0
    %4857 = vmatpush1.bf16.msra.mxu0 %v3655
    %4858 = vmatprep.subr.bf16.mxu0 0
    %4859 = vmatpush1.bf16.msra.mxu0 %v3656
    %4860 = vmatprep.subr.bf16.mxu0 0
    %4861 = vmatpush1.bf16.msra.mxu0 %v3657
    %4862 = vmatprep.subr.bf16.mxu0 0
    %4863 = vmatpush1.bf16.msra.mxu0 %v3658
    %4864 = vmatprep.subr.bf16.mxu0 0
    %4865 = vmatpush1.bf16.msra.mxu0 %v3659
    %4866 = vmatprep.subr.bf16.mxu0 0
    %4867 = vmatpush1.bf16.msra.mxu0 %v3660
    %4868 = vmatprep.subr.bf16.mxu0 0
    %4869 = vmatpush1.bf16.msra.mxu0 %v3661
    %4870 = vmatprep.mubr.bf16.mxu0 %v408
    %4871 = vmatmul.mubr.bf16.gmra.mrb[0].mxu0 %v407
    %v4872 = vpop.f32.mrb[0].mxu0
    %v4873 = vadd.f32 %v4833, %v4872
    %v4874 = vpop.f32.mrb[0].mxu0
    %v4875 = vpop.f32.mrb[0].mxu0
    %v4876 = vpop.f32.mrb[0].mxu0
    %4877 = vdwg.mxu0
    %4878 = vmatprep.subr.bf16.mxu0 0
    %4879 = vmatpush1.bf16.msra.mxu0 %v3662
    %4880 = vmatprep.subr.bf16.mxu0 0
    %4881 = vmatpush1.bf16.msra.mxu0 %v3663
    %4882 = vmatprep.subr.bf16.mxu0 0
    %4883 = vmatpush1.bf16.msra.mxu0 %v3664
    %4884 = vmatprep.subr.bf16.mxu0 0
    %4885 = vmatpush1.bf16.msra.mxu0 %v3665
    %4886 = vmatprep.subr.bf16.mxu0 0
    %4887 = vmatpush1.bf16.msra.mxu0 %v3666
    %4888 = vmatprep.subr.bf16.mxu0 0
    %4889 = vmatpush1.bf16.msra.mxu0 %v3667
    %4890 = vmatprep.subr.bf16.mxu0 0
    %4891 = vmatpush1.bf16.msra.mxu0 %v3668
    %4892 = vmatprep.subr.bf16.mxu0 0
    %4893 = vmatpush1.bf16.msra.mxu0 %v3669
    %4894 = vmatprep.subr.bf16.mxu0 0
    %4895 = vmatpush1.bf16.msra.mxu0 %v3670
    %4896 = vmatprep.subr.bf16.mxu0 0
    %4897 = vmatpush1.bf16.msra.mxu0 %v3671
    %4898 = vmatprep.subr.bf16.mxu0 0
    %4899 = vmatpush1.bf16.msra.mxu0 %v3672
    %4900 = vmatprep.subr.bf16.mxu0 0
    %4901 = vmatpush1.bf16.msra.mxu0 %v3673
    %4902 = vmatprep.subr.bf16.mxu0 0
    %4903 = vmatpush1.bf16.msra.mxu0 %v3674
    %4904 = vmatprep.subr.bf16.mxu0 0
    %4905 = vmatpush1.bf16.msra.mxu0 %v3675
    %4906 = vmatprep.subr.bf16.mxu0 0
    %4907 = vmatpush1.bf16.msra.mxu0 %v3676
    %4908 = vmatprep.subr.bf16.mxu0 0
    %4909 = vmatpush1.bf16.msra.mxu0 %v3677
    %4910 = vmatprep.mubr.bf16.mxu0 %v410
    %4911 = vmatmul.mubr.bf16.gmra.mrb[0].mxu0 %v409
    %v4912 = vpop.f32.mrb[0].mxu0
    %v4913 = vadd.f32 %v4873, %v4912
    %v4914 = vpop.f32.mrb[0].mxu0
    %v4915 = vpop.f32.mrb[0].mxu0
    %v4916 = vpop.f32.mrb[0].mxu0
    %4917 = vdwg.mxu0
    %4918 = vmatprep.subr.bf16.mxu0 0
    %4919 = vmatpush1.bf16.msra.mxu0 %v3678
    %4920 = vmatprep.subr.bf16.mxu0 0
    %4921 = vmatpush1.bf16.msra.mxu0 %v3679
    %4922 = vmatprep.subr.bf16.mxu0 0
    %4923 = vmatpush1.bf16.msra.mxu0 %v3680
    %4924 = vmatprep.subr.bf16.mxu0 0
    %4925 = vmatpush1.bf16.msra.mxu0 %v3681
    %4926 = vmatprep.subr.bf16.mxu0 0
    %4927 = vmatpush1.bf16.msra.mxu0 %v3682
    %4928 = vmatprep.subr.bf16.mxu0 0
    %4929 = vmatpush1.bf16.msra.mxu0 %v3683
    %4930 = vmatprep.subr.bf16.mxu0 0
    %4931 = vmatpush1.bf16.msra.mxu0 %v3684
    %4932 = vmatprep.subr.bf16.mxu0 0
    %4933 = vmatpush1.bf16.msra.mxu0 %v3685
    %4934 = vmatprep.subr.bf16.mxu0 0
    %4935 = vmatpush1.bf16.msra.mxu0 %v3686
    %4936 = vmatprep.subr.bf16.mxu0 0
    %4937 = vmatpush1.bf16.msra.mxu0 %v3687
    %4938 = vmatprep.subr.bf16.mxu0 0
    %4939 = vmatpush1.bf16.msra.mxu0 %v3688
    %4940 = vmatprep.subr.bf16.mxu0 0
    %4941 = vmatpush1.bf16.msra.mxu0 %v3689
    %4942 = vmatprep.subr.bf16.mxu0 0
    %4943 = vmatpush1.bf16.msra.mxu0 %v3690
    %4944 = vmatprep.subr.bf16.mxu0 0
    %4945 = vmatpush1.bf16.msra.mxu0 %v3691
    %4946 = vmatprep.subr.bf16.mxu0 0
    %4947 = vmatpush1.bf16.msra.mxu0 %v3692
    %4948 = vmatprep.subr.bf16.mxu0 0
    %4949 = vmatpush1.bf16.msra.mxu0 %v3693
    %4950 = vmatprep.mubr.bf16.mxu0 %v412
    %4951 = vmatmul.mubr.bf16.gmra.mrb[0].mxu0 %v411
    %v4952 = vpop.f32.mrb[0].mxu0
    %v4953 = vadd.f32 %v4913, %v4952
    %v4954 = vpop.f32.mrb[0].mxu0
    %v4955 = vpop.f32.mrb[0].mxu0
    %v4956 = vpop.f32.mrb[0].mxu0
    %4957 = vdwg.mxu0
    %4958 = vmatprep.subr.bf16.mxu0 0
    %4959 = vmatpush1.bf16.msra.mxu0 %v3694
    %4960 = vmatprep.subr.bf16.mxu0 0
    %4961 = vmatpush1.bf16.msra.mxu0 %v3695
    %4962 = vmatprep.subr.bf16.mxu0 0
    %4963 = vmatpush1.bf16.msra.mxu0 %v3696
    %4964 = vmatprep.subr.bf16.mxu0 0
    %4965 = vmatpush1.bf16.msra.mxu0 %v3697
    %4966 = vmatprep.subr.bf16.mxu0 0
    %4967 = vmatpush1.bf16.msra.mxu0 %v3698
    %4968 = vmatprep.subr.bf16.mxu0 0
    %4969 = vmatpush1.bf16.msra.mxu0 %v3699
    %4970 = vmatprep.subr.bf16.mxu0 0
    %4971 = vmatpush1.bf16.msra.mxu0 %v3700
    %4972 = vmatprep.subr.bf16.mxu0 0
    %4973 = vmatpush1.bf16.msra.mxu0 %v3701
    %4974 = vmatprep.subr.bf16.mxu0 0
    %4975 = vmatpush1.bf16.msra.mxu0 %v3702
    %4976 = vmatprep.subr.bf16.mxu0 0
    %4977 = vmatpush1.bf16.msra.mxu0 %v3703
    %4978 = vmatprep.subr.bf16.mxu0 0
    %4979 = vmatpush1.bf16.msra.mxu0 %v3704
    %4980 = vmatprep.subr.bf16.mxu0 0
    %4981 = vmatpush1.bf16.msra.mxu0 %v3705
    %4982 = vmatprep.subr.bf16.mxu0 0
    %4983 = vmatpush1.bf16.msra.mxu0 %v3706
    %4984 = vmatprep.subr.bf16.mxu0 0
    %4985 = vmatpush1.bf16.msra.mxu0 %v3707
    %4986 = vmatprep.subr.bf16.mxu0 0
    %4987 = vmatpush1.bf16.msra.mxu0 %v3708
    %4988 = vmatprep.subr.bf16.mxu0 0
    %4989 = vmatpush1.bf16.msra.mxu0 %v3709
    %4990 = vmatprep.mubr.bf16.mxu0 %v414
    %4991 = vmatmul.mubr.bf16.gmra.mrb[0].mxu0 %v413
    %v4992 = vpop.f32.mrb[0].mxu0
    %v4993 = vadd.f32 %v4953, %v4992
    %v4994 = vpop.f32.mrb[0].mxu0
    %v4995 = vpop.f32.mrb[0].mxu0
    %v4996 = vpop.f32.mrb[0].mxu0
    %4997 = vdwg.mxu0
    %4998 = vmatprep.subr.bf16.mxu0 0
    %4999 = vmatpush1.bf16.msra.mxu0 %v3710
    %5000 = vmatprep.subr.bf16.mxu0 0
    %5001 = vmatpush1.bf16.msra.mxu0 %v3711
    %5002 = vmatprep.subr.bf16.mxu0 0
    %5003 = vmatpush1.bf16.msra.mxu0 %v3712
    %5004 = vmatprep.subr.bf16.mxu0 0
    %5005 = vmatpush1.bf16.msra.mxu0 %v3713
    %5006 = vmatprep.subr.bf16.mxu0 0
    %5007 = vmatpush1.bf16.msra.mxu0 %v3714
    %5008 = vmatprep.subr.bf16.mxu0 0
    %5009 = vmatpush1.bf16.msra.mxu0 %v3715
    %5010 = vmatprep.subr.bf16.mxu0 0
    %5011 = vmatpush1.bf16.msra.mxu0 %v3716
    %5012 = vmatprep.subr.bf16.mxu0 0
    %5013 = vmatpush1.bf16.msra.mxu0 %v3717
    %5014 = vmatprep.subr.bf16.mxu0 0
    %5015 = vmatpush1.bf16.msra.mxu0 %v3718
    %5016 = vmatprep.subr.bf16.mxu0 0
    %5017 = vmatpush1.bf16.msra.mxu0 %v3719
    %5018 = vmatprep.subr.bf16.mxu0 0
    %5019 = vmatpush1.bf16.msra.mxu0 %v3720
    %5020 = vmatprep.subr.bf16.mxu0 0
    %5021 = vmatpush1.bf16.msra.mxu0 %v3721
    %5022 = vmatprep.subr.bf16.mxu0 0
    %5023 = vmatpush1.bf16.msra.mxu0 %v3722
    %5024 = vmatprep.subr.bf16.mxu0 0
    %5025 = vmatpush1.bf16.msra.mxu0 %v3723
    %5026 = vmatprep.subr.bf16.mxu0 0
    %5027 = vmatpush1.bf16.msra.mxu0 %v3724
    %5028 = vmatprep.subr.bf16.mxu0 0
    %5029 = vmatpush1.bf16.msra.mxu0 %v3725
    %5030 = vmatprep.mubr.bf16.mxu0 %v416
    %5031 = vmatmul.mubr.bf16.gmra.mrb[0].mxu0 %v415
    %v5032 = vpop.f32.mrb[0].mxu0
    %v5033 = vadd.f32 %v4993, %v5032
    %v5034 = vpop.f32.mrb[0].mxu0
    %v5035 = vpop.f32.mrb[0].mxu0
    %v5036 = vpop.f32.mrb[0].mxu0
    %5037 = vdwg.mxu0
    %5038 = vmatprep.subr.bf16.mxu0 0
    %5039 = vmatpush1.bf16.msra.mxu0 %v3726
    %5040 = vmatprep.subr.bf16.mxu0 0
    %5041 = vmatpush1.bf16.msra.mxu0 %v3727
    %5042 = vmatprep.subr.bf16.mxu0 0
    %5043 = vmatpush1.bf16.msra.mxu0 %v3728
    %5044 = vmatprep.subr.bf16.mxu0 0
    %5045 = vmatpush1.bf16.msra.mxu0 %v3729
    %5046 = vmatprep.subr.bf16.mxu0 0
    %5047 = vmatpush1.bf16.msra.mxu0 %v3730
    %5048 = vmatprep.subr.bf16.mxu0 0
    %5049 = vmatpush1.bf16.msra.mxu0 %v3731
    %5050 = vmatprep.subr.bf16.mxu0 0
    %5051 = vmatpush1.bf16.msra.mxu0 %v3732
    %5052 = vmatprep.subr.bf16.mxu0 0
    %5053 = vmatpush1.bf16.msra.mxu0 %v3733
    %5054 = vmatprep.subr.bf16.mxu0 0
    %5055 = vmatpush1.bf16.msra.mxu0 %v3734
    %5056 = vmatprep.subr.bf16.mxu0 0
    %5057 = vmatpush1.bf16.msra.mxu0 %v3735
    %5058 = vmatprep.subr.bf16.mxu0 0
    %5059 = vmatpush1.bf16.msra.mxu0 %v3736
    %5060 = vmatprep.subr.bf16.mxu0 0
    %5061 = vmatpush1.bf16.msra.mxu0 %v3737
    %5062 = vmatprep.subr.bf16.mxu0 0
    %5063 = vmatpush1.bf16.msra.mxu0 %v3738
    %5064 = vmatprep.subr.bf16.mxu0 0
    %5065 = vmatpush1.bf16.msra.mxu0 %v3739
    %5066 = vmatprep.subr.bf16.mxu0 0
    %5067 = vmatpush1.bf16.msra.mxu0 %v3740
    %5068 = vmatprep.subr.bf16.mxu0 0
    %5069 = vmatpush1.bf16.msra.mxu0 %v3741
    %5070 = vmatprep.mubr.bf16.mxu0 %v418
    %5071 = vmatmul.mubr.bf16.gmra.mrb[0].mxu0 %v417
    %v5072 = vpop.f32.mrb[0].mxu0
    %v5073 = vadd.f32 %v5033, %v5072
    %v5074 = vpop.f32.mrb[0].mxu0
    %v5075 = vpop.f32.mrb[0].mxu0
    %v5076 = vpop.f32.mrb[0].mxu0
    %5077 = vdwg.mxu0
    %5078 = vmatprep.subr.bf16.mxu0 0
    %5079 = vmatpush1.bf16.msra.mxu0 %v3742
    %5080 = vmatprep.subr.bf16.mxu0 0
    %5081 = vmatpush1.bf16.msra.mxu0 %v3743
    %5082 = vmatprep.subr.bf16.mxu0 0
    %5083 = vmatpush1.bf16.msra.mxu0 %v3744
    %5084 = vmatprep.subr.bf16.mxu0 0
    %5085 = vmatpush1.bf16.msra.mxu0 %v3745
    %5086 = vmatprep.subr.bf16.mxu0 0
    %5087 = vmatpush1.bf16.msra.mxu0 %v3746
    %5088 = vmatprep.subr.bf16.mxu0 0
    %5089 = vmatpush1.bf16.msra.mxu0 %v3747
    %5090 = vmatprep.subr.bf16.mxu0 0
    %5091 = vmatpush1.bf16.msra.mxu0 %v3748
    %5092 = vmatprep.subr.bf16.mxu0 0
    %5093 = vmatpush1.bf16.msra.mxu0 %v3749
    %5094 = vmatprep.subr.bf16.mxu0 0
    %5095 = vmatpush1.bf16.msra.mxu0 %v3750
    %5096 = vmatprep.subr.bf16.mxu0 0
    %5097 = vmatpush1.bf16.msra.mxu0 %v3751
    %5098 = vmatprep.subr.bf16.mxu0 0
    %5099 = vmatpush1.bf16.msra.mxu0 %v3752
    %5100 = vmatprep.subr.bf16.mxu0 0
    %5101 = vmatpush1.bf16.msra.mxu0 %v3753
    %5102 = vmatprep.subr.bf16.mxu0 0
    %5103 = vmatpush1.bf16.msra.mxu0 %v3754
    %5104 = vmatprep.subr.bf16.mxu0 0
    %5105 = vmatpush1.bf16.msra.mxu0 %v3755
    %5106 = vmatprep.subr.bf16.mxu0 0
    %5107 = vmatpush1.bf16.msra.mxu0 %v3756
    %5108 = vmatprep.subr.bf16.mxu0 0
    %5109 = vmatpush1.bf16.msra.mxu0 %v3757
    %5110 = vmatprep.mubr.bf16.mxu0 %v420
    %5111 = vmatmul.mubr.bf16.gmra.mrb[0].mxu0 %v419
    %v5112 = vpop.f32.mrb[0].mxu0
    %v5113 = vadd.f32 %v5073, %v5112
    %v5114 = vpop.f32.mrb[0].mxu0
    %v5115 = vpop.f32.mrb[0].mxu0
    %v5116 = vpop.f32.mrb[0].mxu0
    %5117 = vdwg.mxu0
    %5118 = vmatprep.subr.bf16.mxu0 0
    %5119 = vmatpush1.bf16.msra.mxu0 %v3758
    %5120 = vmatprep.subr.bf16.mxu0 0
    %5121 = vmatpush1.bf16.msra.mxu0 %v3759
    %5122 = vmatprep.subr.bf16.mxu0 0
    %5123 = vmatpush1.bf16.msra.mxu0 %v3760
    %5124 = vmatprep.subr.bf16.mxu0 0
    %5125 = vmatpush1.bf16.msra.mxu0 %v3761
    %5126 = vmatprep.subr.bf16.mxu0 0
    %5127 = vmatpush1.bf16.msra.mxu0 %v3762
    %5128 = vmatprep.subr.bf16.mxu0 0
    %5129 = vmatpush1.bf16.msra.mxu0 %v3763
    %5130 = vmatprep.subr.bf16.mxu0 0
    %5131 = vmatpush1.bf16.msra.mxu0 %v3764
    %5132 = vmatprep.subr.bf16.mxu0 0
    %5133 = vmatpush1.bf16.msra.mxu0 %v3765
    %5134 = vmatprep.subr.bf16.mxu0 0
    %5135 = vmatpush1.bf16.msra.mxu0 %v3766
    %5136 = vmatprep.subr.bf16.mxu0 0
    %5137 = vmatpush1.bf16.msra.mxu0 %v3767
    %5138 = vmatprep.subr.bf16.mxu0 0
    %5139 = vmatpush1.bf16.msra.mxu0 %v3768
    %5140 = vmatprep.subr.bf16.mxu0 0
    %5141 = vmatpush1.bf16.msra.mxu0 %v3769
    %5142 = vmatprep.subr.bf16.mxu0 0
    %5143 = vmatpush1.bf16.msra.mxu0 %v3770
    %5144 = vmatprep.subr.bf16.mxu0 0
    %5145 = vmatpush1.bf16.msra.mxu0 %v3771
    %5146 = vmatprep.subr.bf16.mxu0 0
    %5147 = vmatpush1.bf16.msra.mxu0 %v3772
    %5148 = vmatprep.subr.bf16.mxu0 0
    %5149 = vmatpush1.bf16.msra.mxu0 %v3773
    %5150 = vmatprep.mubr.bf16.mxu0 %v422
    %5151 = vmatmul.mubr.bf16.gmra.mrb[0].mxu0 %v421
    %v5152 = vpop.f32.mrb[0].mxu0
    %v5153 = vadd.f32 %v5113, %v5152
    %v5154 = vpop.f32.mrb[0].mxu0
    %v5155 = vpop.f32.mrb[0].mxu0
    %v5156 = vpop.f32.mrb[0].mxu0
    %5157 = vdwg.mxu0
    %5158 = vmatprep.subr.bf16.mxu0 0
    %5159 = vmatpush1.bf16.msra.mxu0 %v3774
    %5160 = vmatprep.subr.bf16.mxu0 0
    %5161 = vmatpush1.bf16.msra.mxu0 %v3775
    %5162 = vmatprep.subr.bf16.mxu0 0
    %5163 = vmatpush1.bf16.msra.mxu0 %v3776
    %5164 = vmatprep.subr.bf16.mxu0 0
    %5165 = vmatpush1.bf16.msra.mxu0 %v3777
    %5166 = vmatprep.subr.bf16.mxu0 0
    %5167 = vmatpush1.bf16.msra.mxu0 %v3778
    %5168 = vmatprep.subr.bf16.mxu0 0
    %5169 = vmatpush1.bf16.msra.mxu0 %v3779
    %5170 = vmatprep.subr.bf16.mxu0 0
    %5171 = vmatpush1.bf16.msra.mxu0 %v3780
    %5172 = vmatprep.subr.bf16.mxu0 0
    %5173 = vmatpush1.bf16.msra.mxu0 %v3781
    %5174 = vmatprep.subr.bf16.mxu0 0
    %5175 = vmatpush1.bf16.msra.mxu0 %v3782
    %5176 = vmatprep.subr.bf16.mxu0 0
    %5177 = vmatpush1.bf16.msra.mxu0 %v3783
    %5178 = vmatprep.subr.bf16.mxu0 0
    %5179 = vmatpush1.bf16.msra.mxu0 %v3784
    %5180 = vmatprep.subr.bf16.mxu0 0
    %5181 = vmatpush1.bf16.msra.mxu0 %v3785
    %5182 = vmatprep.subr.bf16.mxu0 0
    %5183 = vmatpush1.bf16.msra.mxu0 %v3786
    %5184 = vmatprep.subr.bf16.mxu0 0
    %5185 = vmatpush1.bf16.msra.mxu0 %v3787
    %5186 = vmatprep.subr.bf16.mxu0 0
    %5187 = vmatpush1.bf16.msra.mxu0 %v3788
    %5188 = vmatprep.subr.bf16.mxu0 0
    %5189 = vmatpush1.bf16.msra.mxu0 %v3789
    %5190 = vmatprep.mubr.bf16.mxu0 %v424
    %5191 = vmatmul.mubr.bf16.gmra.mrb[0].mxu0 %v423
    %v5192 = vpop.f32.mrb[0].mxu0
    %v5193 = vadd.f32 %v5153, %v5192
    %v5194 = vpop.f32.mrb[0].mxu0
    %v5195 = vpop.f32.mrb[0].mxu0
    %v5196 = vpop.f32.mrb[0].mxu0
    %5197 = vdwg.mxu0
    %5198 = vmatprep.subr.bf16.mxu0 0
    %5199 = vmatpush1.bf16.msra.mxu0 %v3790
    %5200 = vmatprep.subr.bf16.mxu0 0
    %5201 = vmatpush1.bf16.msra.mxu0 %v3791
    %5202 = vmatprep.subr.bf16.mxu0 0
    %5203 = vmatpush1.bf16.msra.mxu0 %v3792
    %5204 = vmatprep.subr.bf16.mxu0 0
    %5205 = vmatpush1.bf16.msra.mxu0 %v3793
    %5206 = vmatprep.subr.bf16.mxu0 0
    %5207 = vmatpush1.bf16.msra.mxu0 %v3794
    %5208 = vmatprep.subr.bf16.mxu0 0
    %5209 = vmatpush1.bf16.msra.mxu0 %v3795
    %5210 = vmatprep.subr.bf16.mxu0 0
    %5211 = vmatpush1.bf16.msra.mxu0 %v3796
    %5212 = vmatprep.subr.bf16.mxu0 0
    %5213 = vmatpush1.bf16.msra.mxu0 %v3797
    %5214 = vmatprep.subr.bf16.mxu0 0
    %5215 = vmatpush1.bf16.msra.mxu0 %v3798
    %5216 = vmatprep.subr.bf16.mxu0 0
    %5217 = vmatpush1.bf16.msra.mxu0 %v3799
    %5218 = vmatprep.subr.bf16.mxu0 0
    %5219 = vmatpush1.bf16.msra.mxu0 %v3800
    %5220 = vmatprep.subr.bf16.mxu0 0
    %5221 = vmatpush1.bf16.msra.mxu0 %v3801
    %5222 = vmatprep.subr.bf16.mxu0 0
    %5223 = vmatpush1.bf16.msra.mxu0 %v3802
    %5224 = vmatprep.subr.bf16.mxu0 0
    %5225 = vmatpush1.bf16.msra.mxu0 %v3803
    %5226 = vmatprep.subr.bf16.mxu0 0
    %5227 = vmatpush1.bf16.msra.mxu0 %v3804
    %5228 = vmatprep.subr.bf16.mxu0 0
    %5229 = vmatpush1.bf16.msra.mxu0 %v3805
    %5230 = vmatprep.mubr.bf16.mxu0 %v426
    %5231 = vmatmul.mubr.bf16.gmra.mrb[0].mxu0 %v425
    %v5232 = vpop.f32.mrb[0].mxu0
    %v5233 = vadd.f32 %v5193, %v5232
    %v5234 = vpop.f32.mrb[0].mxu0
    %v5235 = vpop.f32.mrb[0].mxu0
    %v5236 = vpop.f32.mrb[0].mxu0
    %5237 = vdwg.mxu0
    %5238 = vmatprep.subr.bf16.mxu0 0
    %5239 = vmatpush1.bf16.msra.mxu0 %v3806
    %5240 = vmatprep.subr.bf16.mxu0 0
    %5241 = vmatpush1.bf16.msra.mxu0 %v3807
    %5242 = vmatprep.subr.bf16.mxu0 0
    %5243 = vmatpush1.bf16.msra.mxu0 %v3808
    %5244 = vmatprep.subr.bf16.mxu0 0
    %5245 = vmatpush1.bf16.msra.mxu0 %v3809
    %5246 = vmatprep.subr.bf16.mxu0 0
    %5247 = vmatpush1.bf16.msra.mxu0 %v3810
    %5248 = vmatprep.subr.bf16.mxu0 0
    %5249 = vmatpush1.bf16.msra.mxu0 %v3811
    %5250 = vmatprep.subr.bf16.mxu0 0
    %5251 = vmatpush1.bf16.msra.mxu0 %v3812
    %5252 = vmatprep.subr.bf16.mxu0 0
    %5253 = vmatpush1.bf16.msra.mxu0 %v3813
    %5254 = vmatprep.subr.bf16.mxu0 0
    %5255 = vmatpush1.bf16.msra.mxu0 %v3814
    %5256 = vmatprep.subr.bf16.mxu0 0
    %5257 = vmatpush1.bf16.msra.mxu0 %v3815
    %5258 = vmatprep.subr.bf16.mxu0 0
    %5259 = vmatpush1.bf16.msra.mxu0 %v3816
    %5260 = vmatprep.subr.bf16.mxu0 0
    %5261 = vmatpush1.bf16.msra.mxu0 %v3817
    %5262 = vmatprep.subr.bf16.mxu0 0
    %5263 = vmatpush1.bf16.msra.mxu0 %v3818
    %5264 = vmatprep.subr.bf16.mxu0 0
    %5265 = vmatpush1.bf16.msra.mxu0 %v3819
    %5266 = vmatprep.subr.bf16.mxu0 0
    %5267 = vmatpush1.bf16.msra.mxu0 %v3820
    %5268 = vmatprep.subr.bf16.mxu0 0
    %5269 = vmatpush1.bf16.msra.mxu0 %v3821
    %5270 = vmatprep.mubr.bf16.mxu0 %v428
    %5271 = vmatmul.mubr.bf16.gmra.mrb[0].mxu0 %v427
    %v5272 = vpop.f32.mrb[0].mxu0
    %v5273 = vadd.f32 %v5233, %v5272
    %v5274 = vpop.f32.mrb[0].mxu0
    %v5275 = vpop.f32.mrb[0].mxu0
    %v5276 = vpop.f32.mrb[0].mxu0
    %5277 = vdwg.mxu0
    %5278 = vmatprep.subr.bf16.mxu0 0
    %5279 = vmatpush1.bf16.msra.mxu0 %v3822
    %5280 = vmatprep.subr.bf16.mxu0 0
    %5281 = vmatpush1.bf16.msra.mxu0 %v3823
    %5282 = vmatprep.subr.bf16.mxu0 0
    %5283 = vmatpush1.bf16.msra.mxu0 %v3824
    %5284 = vmatprep.subr.bf16.mxu0 0
    %5285 = vmatpush1.bf16.msra.mxu0 %v3825
    %5286 = vmatprep.subr.bf16.mxu0 0
    %5287 = vmatpush1.bf16.msra.mxu0 %v3826
    %5288 = vmatprep.subr.bf16.mxu0 0
    %5289 = vmatpush1.bf16.msra.mxu0 %v3827
    %5290 = vmatprep.subr.bf16.mxu0 0
    %5291 = vmatpush1.bf16.msra.mxu0 %v3828
    %5292 = vmatprep.subr.bf16.mxu0 0
    %5293 = vmatpush1.bf16.msra.mxu0 %v3829
    %5294 = vmatprep.subr.bf16.mxu0 0
    %5295 = vmatpush1.bf16.msra.mxu0 %v3830
    %5296 = vmatprep.subr.bf16.mxu0 0
    %5297 = vmatpush1.bf16.msra.mxu0 %v3831
    %5298 = vmatprep.subr.bf16.mxu0 0
    %5299 = vmatpush1.bf16.msra.mxu0 %v3832
    %5300 = vmatprep.subr.bf16.mxu0 0
    %5301 = vmatpush1.bf16.msra.mxu0 %v3833
    %5302 = vmatprep.subr.bf16.mxu0 0
    %5303 = vmatpush1.bf16.msra.mxu0 %v3834
    %5304 = vmatprep.subr.bf16.mxu0 0
    %5305 = vmatpush1.bf16.msra.mxu0 %v3835
    %5306 = vmatprep.subr.bf16.mxu0 0
    %5307 = vmatpush1.bf16.msra.mxu0 %v3836
    %5308 = vmatprep.subr.bf16.mxu0 0
    %5309 = vmatpush1.bf16.msra.mxu0 %v3837
    %5310 = vmatprep.mubr.bf16.mxu0 %v430
    %5311 = vmatmul.mubr.bf16.gmra.mrb[0].mxu0 %v429
    %v5312 = vpop.f32.mrb[0].mxu0
    %v5313 = vadd.f32 %v5273, %v5312
    %v5314 = vpop.f32.mrb[0].mxu0
    %v5315 = vpop.f32.mrb[0].mxu0
    %v5316 = vpop.f32.mrb[0].mxu0
    %5317 = vdwg.mxu0
    %5318 = vmatprep.subr.bf16.mxu0 0
    %5319 = vmatpush1.bf16.msra.mxu0 %v3838
    %5320 = vmatprep.subr.bf16.mxu0 0
    %5321 = vmatpush1.bf16.msra.mxu0 %v3839
    %5322 = vmatprep.subr.bf16.mxu0 0
    %5323 = vmatpush1.bf16.msra.mxu0 %v3840
    %5324 = vmatprep.subr.bf16.mxu0 0
    %5325 = vmatpush1.bf16.msra.mxu0 %v3841
    %5326 = vmatprep.subr.bf16.mxu0 0
    %5327 = vmatpush1.bf16.msra.mxu0 %v3842
    %5328 = vmatprep.subr.bf16.mxu0 0
    %5329 = vmatpush1.bf16.msra.mxu0 %v3843
    %5330 = vmatprep.subr.bf16.mxu0 0
    %5331 = vmatpush1.bf16.msra.mxu0 %v3844
    %5332 = vmatprep.subr.bf16.mxu0 0
    %5333 = vmatpush1.bf16.msra.mxu0 %v3845
    %5334 = vmatprep.subr.bf16.mxu0 0
    %5335 = vmatpush1.bf16.msra.mxu0 %v3846
    %5336 = vmatprep.subr.bf16.mxu0 0
    %5337 = vmatpush1.bf16.msra.mxu0 %v3847
    %5338 = vmatprep.subr.bf16.mxu0 0
    %5339 = vmatpush1.bf16.msra.mxu0 %v3848
    %5340 = vmatprep.subr.bf16.mxu0 0
    %5341 = vmatpush1.bf16.msra.mxu0 %v3849
    %5342 = vmatprep.subr.bf16.mxu0 0
    %5343 = vmatpush1.bf16.msra.mxu0 %v3850
    %5344 = vmatprep.subr.bf16.mxu0 0
    %5345 = vmatpush1.bf16.msra.mxu0 %v3851
    %5346 = vmatprep.subr.bf16.mxu0 0
    %5347 = vmatpush1.bf16.msra.mxu0 %v3852
    %5348 = vmatprep.subr.bf16.mxu0 0
    %5349 = vmatpush1.bf16.msra.mxu0 %v3853
    %5350 = vmatprep.mubr.bf16.mxu0 %v432
    %5351 = vmatmul.mubr.bf16.gmra.mrb[0].mxu0 %v431
    %v5352 = vpop.f32.mrb[0].mxu0
    %v5353 = vadd.f32 %v5313, %v5352
    %v5354 = vpop.f32.mrb[0].mxu0
    %v5355 = vpop.f32.mrb[0].mxu0
    %v5356 = vpop.f32.mrb[0].mxu0
    %5357 = vdwg.mxu0
    %5358 = vmatprep.subr.bf16.mxu0 0
    %5359 = vmatpush1.bf16.msra.mxu0 %v3854
    %5360 = vmatprep.subr.bf16.mxu0 0
    %5361 = vmatpush1.bf16.msra.mxu0 %v3855
    %5362 = vmatprep.subr.bf16.mxu0 0
    %5363 = vmatpush1.bf16.msra.mxu0 %v3856
    %5364 = vmatprep.subr.bf16.mxu0 0
    %5365 = vmatpush1.bf16.msra.mxu0 %v3857
    %5366 = vmatprep.subr.bf16.mxu0 0
    %5367 = vmatpush1.bf16.msra.mxu0 %v3858
    %5368 = vmatprep.subr.bf16.mxu0 0
    %5369 = vmatpush1.bf16.msra.mxu0 %v3859
    %5370 = vmatprep.subr.bf16.mxu0 0
    %5371 = vmatpush1.bf16.msra.mxu0 %v3860
    %5372 = vmatprep.subr.bf16.mxu0 0
    %5373 = vmatpush1.bf16.msra.mxu0 %v3861
    %5374 = vmatprep.subr.bf16.mxu0 0
    %5375 = vmatpush1.bf16.msra.mxu0 %v3862
    %5376 = vmatprep.subr.bf16.mxu0 0
    %5377 = vmatpush1.bf16.msra.mxu0 %v3863
    %5378 = vmatprep.subr.bf16.mxu0 0
    %5379 = vmatpush1.bf16.msra.mxu0 %v3864
    %5380 = vmatprep.subr.bf16.mxu0 0
    %5381 = vmatpush1.bf16.msra.mxu0 %v3865
    %5382 = vmatprep.subr.bf16.mxu0 0
    %5383 = vmatpush1.bf16.msra.mxu0 %v3866
    %5384 = vmatprep.subr.bf16.mxu0 0
    %5385 = vmatpush1.bf16.msra.mxu0 %v3867
    %5386 = vmatprep.subr.bf16.mxu0 0
    %5387 = vmatpush1.bf16.msra.mxu0 %v3868
    %5388 = vmatprep.subr.bf16.mxu0 0
    %5389 = vmatpush1.bf16.msra.mxu0 %v3869
    %5390 = vmatprep.mubr.bf16.mxu0 %v434
    %5391 = vmatmul.mubr.bf16.gmra.mrb[0].mxu0 %v433
    %v5392 = vpop.f32.mrb[0].mxu0
    %v5393 = vadd.f32 %v5353, %v5392
    %v5394 = vpop.f32.mrb[0].mxu0
    %v5395 = vpop.f32.mrb[0].mxu0
    %v5396 = vpop.f32.mrb[0].mxu0
    %5397 = vdwg.mxu0
    %5398 = vmatprep.subr.bf16.mxu0 0
    %5399 = vmatpush1.bf16.msra.mxu0 %v3870
    %5400 = vmatprep.subr.bf16.mxu0 0
    %5401 = vmatpush1.bf16.msra.mxu0 %v3871
    %5402 = vmatprep.subr.bf16.mxu0 0
    %5403 = vmatpush1.bf16.msra.mxu0 %v3872
    %5404 = vmatprep.subr.bf16.mxu0 0
    %5405 = vmatpush1.bf16.msra.mxu0 %v3873
    %5406 = vmatprep.subr.bf16.mxu0 0
    %5407 = vmatpush1.bf16.msra.mxu0 %v3874
    %5408 = vmatprep.subr.bf16.mxu0 0
    %5409 = vmatpush1.bf16.msra.mxu0 %v3875
    %5410 = vmatprep.subr.bf16.mxu0 0
    %5411 = vmatpush1.bf16.msra.mxu0 %v3876
    %5412 = vmatprep.subr.bf16.mxu0 0
    %5413 = vmatpush1.bf16.msra.mxu0 %v3877
    %5414 = vmatprep.subr.bf16.mxu0 0
    %5415 = vmatpush1.bf16.msra.mxu0 %v3878
    %5416 = vmatprep.subr.bf16.mxu0 0
    %5417 = vmatpush1.bf16.msra.mxu0 %v3879
    %5418 = vmatprep.subr.bf16.mxu0 0
    %5419 = vmatpush1.bf16.msra.mxu0 %v3880
    %5420 = vmatprep.subr.bf16.mxu0 0
    %5421 = vmatpush1.bf16.msra.mxu0 %v3881
    %5422 = vmatprep.subr.bf16.mxu0 0
    %5423 = vmatpush1.bf16.msra.mxu0 %v3882
    %5424 = vmatprep.subr.bf16.mxu0 0
    %5425 = vmatpush1.bf16.msra.mxu0 %v3883
    %5426 = vmatprep.subr.bf16.mxu0 0
    %5427 = vmatpush1.bf16.msra.mxu0 %v3884
    %5428 = vmatprep.subr.bf16.mxu0 0
    %5429 = vmatpush1.bf16.msra.mxu0 %v3885
    %5430 = vmatprep.mubr.bf16.mxu0 %v436
    %5431 = vmatmul.mubr.bf16.gmra.mrb[0].mxu0 %v435
    %v5432 = vpop.f32.mrb[0].mxu0
    %v5433 = vadd.f32 %v5393, %v5432
    %v5434 = vpop.f32.mrb[0].mxu0
    %v5435 = vpop.f32.mrb[0].mxu0
    %v5436 = vpop.f32.mrb[0].mxu0
    %5437 = vdwg.mxu0
    %5438 = vmatprep.subr.bf16.mxu0 0
    %5439 = vmatpush1.bf16.msra.mxu0 %v3886
    %5440 = vmatprep.subr.bf16.mxu0 0
    %5441 = vmatpush1.bf16.msra.mxu0 %v3887
    %5442 = vmatprep.subr.bf16.mxu0 0
    %5443 = vmatpush1.bf16.msra.mxu0 %v3888
    %5444 = vmatprep.subr.bf16.mxu0 0
    %5445 = vmatpush1.bf16.msra.mxu0 %v3889
    %5446 = vmatprep.subr.bf16.mxu0 0
    %5447 = vmatpush1.bf16.msra.mxu0 %v3890
    %5448 = vmatprep.subr.bf16.mxu0 0
    %5449 = vmatpush1.bf16.msra.mxu0 %v3891
    %5450 = vmatprep.subr.bf16.mxu0 0
    %5451 = vmatpush1.bf16.msra.mxu0 %v3892
    %5452 = vmatprep.subr.bf16.mxu0 0
    %5453 = vmatpush1.bf16.msra.mxu0 %v3893
    %5454 = vmatprep.subr.bf16.mxu0 0
    %5455 = vmatpush1.bf16.msra.mxu0 %v3894
    %5456 = vmatprep.subr.bf16.mxu0 0
    %5457 = vmatpush1.bf16.msra.mxu0 %v3895
    %5458 = vmatprep.subr.bf16.mxu0 0
    %5459 = vmatpush1.bf16.msra.mxu0 %v3896
    %5460 = vmatprep.subr.bf16.mxu0 0
    %5461 = vmatpush1.bf16.msra.mxu0 %v3897
    %5462 = vmatprep.subr.bf16.mxu0 0
    %5463 = vmatpush1.bf16.msra.mxu0 %v3898
    %5464 = vmatprep.subr.bf16.mxu0 0
    %5465 = vmatpush1.bf16.msra.mxu0 %v3899
    %5466 = vmatprep.subr.bf16.mxu0 0
    %5467 = vmatpush1.bf16.msra.mxu0 %v3900
    %5468 = vmatprep.subr.bf16.mxu0 0
    %5469 = vmatpush1.bf16.msra.mxu0 %v3901
    %5470 = vmatprep.mubr.bf16.mxu0 %v438
    %5471 = vmatmul.mubr.bf16.gmra.mrb[0].mxu0 %v437
    %v5472 = vpop.f32.mrb[0].mxu0
    %v5473 = vadd.f32 %v5433, %v5472
    %v5474 = vpop.f32.mrb[0].mxu0
    %v5475 = vpop.f32.mrb[0].mxu0
    %v5476 = vpop.f32.mrb[0].mxu0
    %5477 = vdwg.mxu0
    %5478 = vmatprep.subr.bf16.mxu0 0
    %5479 = vmatpush1.bf16.msra.mxu0 %v3902
    %5480 = vmatprep.subr.bf16.mxu0 0
    %5481 = vmatpush1.bf16.msra.mxu0 %v3903
    %5482 = vmatprep.subr.bf16.mxu0 0
    %5483 = vmatpush1.bf16.msra.mxu0 %v3904
    %5484 = vmatprep.subr.bf16.mxu0 0
    %5485 = vmatpush1.bf16.msra.mxu0 %v3905
    %5486 = vmatprep.subr.bf16.mxu0 0
    %5487 = vmatpush1.bf16.msra.mxu0 %v3906
    %5488 = vmatprep.subr.bf16.mxu0 0
    %5489 = vmatpush1.bf16.msra.mxu0 %v3907
    %5490 = vmatprep.subr.bf16.mxu0 0
    %5491 = vmatpush1.bf16.msra.mxu0 %v3908
    %5492 = vmatprep.subr.bf16.mxu0 0
    %5493 = vmatpush1.bf16.msra.mxu0 %v3909
    %5494 = vmatprep.subr.bf16.mxu0 0
    %5495 = vmatpush1.bf16.msra.mxu0 %v3910
    %5496 = vmatprep.subr.bf16.mxu0 0
    %5497 = vmatpush1.bf16.msra.mxu0 %v3911
    %5498 = vmatprep.subr.bf16.mxu0 0
    %5499 = vmatpush1.bf16.msra.mxu0 %v3912
    %5500 = vmatprep.subr.bf16.mxu0 0
    %5501 = vmatpush1.bf16.msra.mxu0 %v3913
    %5502 = vmatprep.subr.bf16.mxu0 0
    %5503 = vmatpush1.bf16.msra.mxu0 %v3914
    %5504 = vmatprep.subr.bf16.mxu0 0
    %5505 = vmatpush1.bf16.msra.mxu0 %v3915
    %5506 = vmatprep.subr.bf16.mxu0 0
    %5507 = vmatpush1.bf16.msra.mxu0 %v3916
    %5508 = vmatprep.subr.bf16.mxu0 0
    %5509 = vmatpush1.bf16.msra.mxu0 %v3917
    %5510 = vmatprep.mubr.bf16.mxu0 %v440
    %5511 = vmatmul.mubr.bf16.gmra.mrb[0].mxu0 %v439
    %v5512 = vpop.f32.mrb[0].mxu0
    %v5513 = vadd.f32 %v5473, %v5512
    %v5514 = vpop.f32.mrb[0].mxu0
    %v5515 = vpop.f32.mrb[0].mxu0
    %v5516 = vpop.f32.mrb[0].mxu0
    %5517 = vdwg.mxu0
    %5518 = vmatprep.subr.bf16.mxu0 0
    %5519 = vmatpush1.bf16.msra.mxu0 %v3918
    %5520 = vmatprep.subr.bf16.mxu0 0
    %5521 = vmatpush1.bf16.msra.mxu0 %v3919
    %5522 = vmatprep.subr.bf16.mxu0 0
    %5523 = vmatpush1.bf16.msra.mxu0 %v3920
    %5524 = vmatprep.subr.bf16.mxu0 0
    %5525 = vmatpush1.bf16.msra.mxu0 %v3921
    %5526 = vmatprep.subr.bf16.mxu0 0
    %5527 = vmatpush1.bf16.msra.mxu0 %v3922
    %5528 = vmatprep.subr.bf16.mxu0 0
    %5529 = vmatpush1.bf16.msra.mxu0 %v3923
    %5530 = vmatprep.subr.bf16.mxu0 0
    %5531 = vmatpush1.bf16.msra.mxu0 %v3924
    %5532 = vmatprep.subr.bf16.mxu0 0
    %5533 = vmatpush1.bf16.msra.mxu0 %v3925
    %5534 = vmatprep.subr.bf16.mxu0 0
    %5535 = vmatpush1.bf16.msra.mxu0 %v3926
    %5536 = vmatprep.subr.bf16.mxu0 0
    %5537 = vmatpush1.bf16.msra.mxu0 %v3927
    %5538 = vmatprep.subr.bf16.mxu0 0
    %5539 = vmatpush1.bf16.msra.mxu0 %v3928
    %5540 = vmatprep.subr.bf16.mxu0 0
    %5541 = vmatpush1.bf16.msra.mxu0 %v3929
    %5542 = vmatprep.subr.bf16.mxu0 0
    %5543 = vmatpush1.bf16.msra.mxu0 %v3930
    %5544 = vmatprep.subr.bf16.mxu0 0
    %5545 = vmatpush1.bf16.msra.mxu0 %v3931
    %5546 = vmatprep.subr.bf16.mxu0 0
    %5547 = vmatpush1.bf16.msra.mxu0 %v3932
    %5548 = vmatprep.subr.bf16.mxu0 0
    %5549 = vmatpush1.bf16.msra.mxu0 %v3933
    %5550 = vmatprep.mubr.bf16.mxu0 %v442
    %5551 = vmatmul.mubr.bf16.gmra.mrb[0].mxu0 %v441
    %v5552 = vpop.f32.mrb[0].mxu0
    %v5553 = vadd.f32 %v5513, %v5552
    %v5554 = vpop.f32.mrb[0].mxu0
    %v5555 = vpop.f32.mrb[0].mxu0
    %v5556 = vpop.f32.mrb[0].mxu0
    %5557 = vdwg.mxu0
    %5558 = vmatprep.subr.bf16.mxu0 0
    %5559 = vmatpush1.bf16.msra.mxu0 %v3934
    %5560 = vmatprep.subr.bf16.mxu0 0
    %5561 = vmatpush1.bf16.msra.mxu0 %v3935
    %5562 = vmatprep.subr.bf16.mxu0 0
    %5563 = vmatpush1.bf16.msra.mxu0 %v3936
    %5564 = vmatprep.subr.bf16.mxu0 0
    %5565 = vmatpush1.bf16.msra.mxu0 %v3937
    %5566 = vmatprep.subr.bf16.mxu0 0
    %5567 = vmatpush1.bf16.msra.mxu0 %v3938
    %5568 = vmatprep.subr.bf16.mxu0 0
    %5569 = vmatpush1.bf16.msra.mxu0 %v3939
    %5570 = vmatprep.subr.bf16.mxu0 0
    %5571 = vmatpush1.bf16.msra.mxu0 %v3940
    %5572 = vmatprep.subr.bf16.mxu0 0
    %5573 = vmatpush1.bf16.msra.mxu0 %v3941
    %5574 = vmatprep.subr.bf16.mxu0 0
    %5575 = vmatpush1.bf16.msra.mxu0 %v3942
    %5576 = vmatprep.subr.bf16.mxu0 0
    %5577 = vmatpush1.bf16.msra.mxu0 %v3943
    %5578 = vmatprep.subr.bf16.mxu0 0
    %5579 = vmatpush1.bf16.msra.mxu0 %v3944
    %5580 = vmatprep.subr.bf16.mxu0 0
    %5581 = vmatpush1.bf16.msra.mxu0 %v3945
    %5582 = vmatprep.subr.bf16.mxu0 0
    %5583 = vmatpush1.bf16.msra.mxu0 %v3946
    %5584 = vmatprep.subr.bf16.mxu0 0
    %5585 = vmatpush1.bf16.msra.mxu0 %v3947
    %5586 = vmatprep.subr.bf16.mxu0 0
    %5587 = vmatpush1.bf16.msra.mxu0 %v3948
    %5588 = vmatprep.subr.bf16.mxu0 0
    %5589 = vmatpush1.bf16.msra.mxu0 %v3949
    %5590 = vmatprep.mubr.bf16.mxu0 %v444
    %5591 = vmatmul.mubr.bf16.gmra.mrb[0].mxu0 %v443
    %v5592 = vpop.f32.mrb[0].mxu0
    %v5593 = vadd.f32 %v5553, %v5592
    %v5594 = vpop.f32.mrb[0].mxu0
    %v5595 = vpop.f32.mrb[0].mxu0
    %v5596 = vpop.f32.mrb[0].mxu0
    %5597 = vdwg.mxu0
    %5598 = vmatprep.subr.bf16.mxu0 0
    %5599 = vmatpush1.bf16.msra.mxu0 %v3950
    %5600 = vmatprep.subr.bf16.mxu0 0
    %5601 = vmatpush1.bf16.msra.mxu0 %v3951
    %5602 = vmatprep.subr.bf16.mxu0 0
    %5603 = vmatpush1.bf16.msra.mxu0 %v3952
    %5604 = vmatprep.subr.bf16.mxu0 0
    %5605 = vmatpush1.bf16.msra.mxu0 %v3953
    %5606 = vmatprep.subr.bf16.mxu0 0
    %5607 = vmatpush1.bf16.msra.mxu0 %v3954
    %5608 = vmatprep.subr.bf16.mxu0 0
    %5609 = vmatpush1.bf16.msra.mxu0 %v3955
    %5610 = vmatprep.subr.bf16.mxu0 0
    %5611 = vmatpush1.bf16.msra.mxu0 %v3956
    %5612 = vmatprep.subr.bf16.mxu0 0
    %5613 = vmatpush1.bf16.msra.mxu0 %v3957
    %5614 = vmatprep.subr.bf16.mxu0 0
    %5615 = vmatpush1.bf16.msra.mxu0 %v3958
    %5616 = vmatprep.subr.bf16.mxu0 0
    %5617 = vmatpush1.bf16.msra.mxu0 %v3959
    %5618 = vmatprep.subr.bf16.mxu0 0
    %5619 = vmatpush1.bf16.msra.mxu0 %v3960
    %5620 = vmatprep.subr.bf16.mxu0 0
    %5621 = vmatpush1.bf16.msra.mxu0 %v3961
    %5622 = vmatprep.subr.bf16.mxu0 0
    %5623 = vmatpush1.bf16.msra.mxu0 %v3962
    %5624 = vmatprep.subr.bf16.mxu0 0
    %5625 = vmatpush1.bf16.msra.mxu0 %v3963
    %5626 = vmatprep.subr.bf16.mxu0 0
    %5627 = vmatpush1.bf16.msra.mxu0 %v3964
    %5628 = vmatprep.subr.bf16.mxu0 0
    %5629 = vmatpush1.bf16.msra.mxu0 %v3965
    %5630 = vmatprep.mubr.bf16.mxu0 %v446
    %5631 = vmatmul.mubr.bf16.gmra.mrb[0].mxu0 %v445
    %v5632 = vpop.f32.mrb[0].mxu0
    %v5633 = vadd.f32 %v5593, %v5632
    %v5634 = vpop.f32.mrb[0].mxu0
    %v5635 = vpop.f32.mrb[0].mxu0
    %v5636 = vpop.f32.mrb[0].mxu0
    %5637 = vdwg.mxu0
    %5638 = vmatprep.subr.bf16.mxu0 0
    %5639 = vmatpush1.bf16.msra.mxu0 %v3966
    %5640 = vmatprep.subr.bf16.mxu0 0
    %5641 = vmatpush1.bf16.msra.mxu0 %v3967
    %5642 = vmatprep.subr.bf16.mxu0 0
    %5643 = vmatpush1.bf16.msra.mxu0 %v3968
    %5644 = vmatprep.subr.bf16.mxu0 0
    %5645 = vmatpush1.bf16.msra.mxu0 %v3969
    %5646 = vmatprep.subr.bf16.mxu0 0
    %5647 = vmatpush1.bf16.msra.mxu0 %v3970
    %5648 = vmatprep.subr.bf16.mxu0 0
    %5649 = vmatpush1.bf16.msra.mxu0 %v3971
    %5650 = vmatprep.subr.bf16.mxu0 0
    %5651 = vmatpush1.bf16.msra.mxu0 %v3972
    %5652 = vmatprep.subr.bf16.mxu0 0
    %5653 = vmatpush1.bf16.msra.mxu0 %v3973
    %5654 = vmatprep.subr.bf16.mxu0 0
    %5655 = vmatpush1.bf16.msra.mxu0 %v3974
    %5656 = vmatprep.subr.bf16.mxu0 0
    %5657 = vmatpush1.bf16.msra.mxu0 %v3975
    %5658 = vmatprep.subr.bf16.mxu0 0
    %5659 = vmatpush1.bf16.msra.mxu0 %v3976
    %5660 = vmatprep.subr.bf16.mxu0 0
    %5661 = vmatpush1.bf16.msra.mxu0 %v3977
    %5662 = vmatprep.subr.bf16.mxu0 0
    %5663 = vmatpush1.bf16.msra.mxu0 %v3978
    %5664 = vmatprep.subr.bf16.mxu0 0
    %5665 = vmatpush1.bf16.msra.mxu0 %v3979
    %5666 = vmatprep.subr.bf16.mxu0 0
    %5667 = vmatpush1.bf16.msra.mxu0 %v3980
    %5668 = vmatprep.subr.bf16.mxu0 0
    %5669 = vmatpush1.bf16.msra.mxu0 %v3981
    %5670 = vmatprep.mubr.bf16.mxu0 %v448
    %5671 = vmatmul.mubr.bf16.gmra.mrb[0].mxu0 %v447
    %v5672 = vpop.f32.mrb[0].mxu0
    %v5673 = vadd.f32 %v5633, %v5672
    %v5674 = vpop.f32.mrb[0].mxu0
    %v5675 = vpop.f32.mrb[0].mxu0
    %v5676 = vpop.f32.mrb[0].mxu0
    %5677 = vdwg.mxu0
    %5678 = vmatprep.subr.bf16.mxu0 0
    %5679 = vmatpush1.bf16.msra.mxu0 %v3982
    %5680 = vmatprep.subr.bf16.mxu0 0
    %5681 = vmatpush1.bf16.msra.mxu0 %v3983
    %5682 = vmatprep.subr.bf16.mxu0 0
    %5683 = vmatpush1.bf16.msra.mxu0 %v3984
    %5684 = vmatprep.subr.bf16.mxu0 0
    %5685 = vmatpush1.bf16.msra.mxu0 %v3985
    %5686 = vmatprep.subr.bf16.mxu0 0
    %5687 = vmatpush1.bf16.msra.mxu0 %v3986
    %5688 = vmatprep.subr.bf16.mxu0 0
    %5689 = vmatpush1.bf16.msra.mxu0 %v3987
    %5690 = vmatprep.subr.bf16.mxu0 0
    %5691 = vmatpush1.bf16.msra.mxu0 %v3988
    %5692 = vmatprep.subr.bf16.mxu0 0
    %5693 = vmatpush1.bf16.msra.mxu0 %v3989
    %5694 = vmatprep.subr.bf16.mxu0 0
    %5695 = vmatpush1.bf16.msra.mxu0 %v3990
    %5696 = vmatprep.subr.bf16.mxu0 0
    %5697 = vmatpush1.bf16.msra.mxu0 %v3991
    %5698 = vmatprep.subr.bf16.mxu0 0
    %5699 = vmatpush1.bf16.msra.mxu0 %v3992
    %5700 = vmatprep.subr.bf16.mxu0 0
    %5701 = vmatpush1.bf16.msra.mxu0 %v3993
    %5702 = vmatprep.subr.bf16.mxu0 0
    %5703 = vmatpush1.bf16.msra.mxu0 %v3994
    %5704 = vmatprep.subr.bf16.mxu0 0
    %5705 = vmatpush1.bf16.msra.mxu0 %v3995
    %5706 = vmatprep.subr.bf16.mxu0 0
    %5707 = vmatpush1.bf16.msra.mxu0 %v3996
    %5708 = vmatprep.subr.bf16.mxu0 0
    %5709 = vmatpush1.bf16.msra.mxu0 %v3997
    %5710 = vmatprep.mubr.bf16.mxu0 %v450
    %5711 = vmatmul.mubr.bf16.gmra.mrb[0].mxu0 %v449
    %v5712 = vpop.f32.mrb[0].mxu0
    %v5713 = vadd.f32 %v5673, %v5712
    %v5714 = vpop.f32.mrb[0].mxu0
    %v5715 = vpop.f32.mrb[0].mxu0
    %v5716 = vpop.f32.mrb[0].mxu0
    %5717 = vdwg.mxu0
    %5718 = vmatprep.subr.bf16.mxu0 0
    %5719 = vmatpush1.bf16.msra.mxu0 %v3998
    %5720 = vmatprep.subr.bf16.mxu0 0
    %5721 = vmatpush1.bf16.msra.mxu0 %v3999
    %5722 = vmatprep.subr.bf16.mxu0 0
    %5723 = vmatpush1.bf16.msra.mxu0 %v4000
    %5724 = vmatprep.subr.bf16.mxu0 0
    %5725 = vmatpush1.bf16.msra.mxu0 %v4001
    %5726 = vmatprep.subr.bf16.mxu0 0
    %5727 = vmatpush1.bf16.msra.mxu0 %v4002
    %5728 = vmatprep.subr.bf16.mxu0 0
    %5729 = vmatpush1.bf16.msra.mxu0 %v4003
    %5730 = vmatprep.subr.bf16.mxu0 0
    %5731 = vmatpush1.bf16.msra.mxu0 %v4004
    %5732 = vmatprep.subr.bf16.mxu0 0
    %5733 = vmatpush1.bf16.msra.mxu0 %v4005
    %5734 = vmatprep.subr.bf16.mxu0 0
    %5735 = vmatpush1.bf16.msra.mxu0 %v4006
    %5736 = vmatprep.subr.bf16.mxu0 0
    %5737 = vmatpush1.bf16.msra.mxu0 %v4007
    %5738 = vmatprep.subr.bf16.mxu0 0
    %5739 = vmatpush1.bf16.msra.mxu0 %v4008
    %5740 = vmatprep.subr.bf16.mxu0 0
    %5741 = vmatpush1.bf16.msra.mxu0 %v4009
    %5742 = vmatprep.subr.bf16.mxu0 0
    %5743 = vmatpush1.bf16.msra.mxu0 %v4010
    %5744 = vmatprep.subr.bf16.mxu0 0
    %5745 = vmatpush1.bf16.msra.mxu0 %v4011
    %5746 = vmatprep.subr.bf16.mxu0 0
    %5747 = vmatpush1.bf16.msra.mxu0 %v4012
    %5748 = vmatprep.subr.bf16.mxu0 0
    %5749 = vmatpush1.bf16.msra.mxu0 %v4013
    %5750 = vmatprep.mubr.bf16.mxu0 %v452
    %5751 = vmatmul.mubr.bf16.gmra.mrb[0].mxu0 %v451
    %v5752 = vpop.f32.mrb[0].mxu0
    %v5753 = vadd.f32 %v5713, %v5752
    %v5754 = vpop.f32.mrb[0].mxu0
    %v5755 = vpop.f32.mrb[0].mxu0
    %v5756 = vpop.f32.mrb[0].mxu0
    %5757 = vdwg.mxu0
    %5758 = vmatprep.subr.bf16.mxu0 0
    %5759 = vmatpush1.bf16.msra.mxu0 %v4014
    %5760 = vmatprep.subr.bf16.mxu0 0
    %5761 = vmatpush1.bf16.msra.mxu0 %v4015
    %5762 = vmatprep.subr.bf16.mxu0 0
    %5763 = vmatpush1.bf16.msra.mxu0 %v4016
    %5764 = vmatprep.subr.bf16.mxu0 0
    %5765 = vmatpush1.bf16.msra.mxu0 %v4017
    %5766 = vmatprep.subr.bf16.mxu0 0
    %5767 = vmatpush1.bf16.msra.mxu0 %v4018
    %5768 = vmatprep.subr.bf16.mxu0 0
    %5769 = vmatpush1.bf16.msra.mxu0 %v4019
    %5770 = vmatprep.subr.bf16.mxu0 0
    %5771 = vmatpush1.bf16.msra.mxu0 %v4020
    %5772 = vmatprep.subr.bf16.mxu0 0
    %5773 = vmatpush1.bf16.msra.mxu0 %v4021
    %5774 = vmatprep.subr.bf16.mxu0 0
    %5775 = vmatpush1.bf16.msra.mxu0 %v4022
    %5776 = vmatprep.subr.bf16.mxu0 0
    %5777 = vmatpush1.bf16.msra.mxu0 %v4023
    %5778 = vmatprep.subr.bf16.mxu0 0
    %5779 = vmatpush1.bf16.msra.mxu0 %v4024
    %5780 = vmatprep.subr.bf16.mxu0 0
    %5781 = vmatpush1.bf16.msra.mxu0 %v4025
    %5782 = vmatprep.subr.bf16.mxu0 0
    %5783 = vmatpush1.bf16.msra.mxu0 %v4026
    %5784 = vmatprep.subr.bf16.mxu0 0
    %5785 = vmatpush1.bf16.msra.mxu0 %v4027
    %5786 = vmatprep.subr.bf16.mxu0 0
    %5787 = vmatpush1.bf16.msra.mxu0 %v4028
    %5788 = vmatprep.subr.bf16.mxu0 0
    %5789 = vmatpush1.bf16.msra.mxu0 %v4029
    %5790 = vmatprep.mubr.bf16.mxu0 %v454
    %5791 = vmatmul.mubr.bf16.gmra.mrb[0].mxu0 %v453
    %v5792 = vpop.f32.mrb[0].mxu0
    %v5793 = vadd.f32 %v5753, %v5792
    %v5794 = vpop.f32.mrb[0].mxu0
    %v5795 = vpop.f32.mrb[0].mxu0
    %v5796 = vpop.f32.mrb[0].mxu0
    %5797 = vdwg.mxu0
    %5798 = vmatprep.subr.bf16.mxu0 0
    %5799 = vmatpush1.bf16.msra.mxu0 %v4030
    %5800 = vmatprep.subr.bf16.mxu0 0
    %5801 = vmatpush1.bf16.msra.mxu0 %v4031
    %5802 = vmatprep.subr.bf16.mxu0 0
    %5803 = vmatpush1.bf16.msra.mxu0 %v4032
    %5804 = vmatprep.subr.bf16.mxu0 0
    %5805 = vmatpush1.bf16.msra.mxu0 %v4033
    %5806 = vmatprep.subr.bf16.mxu0 0
    %5807 = vmatpush1.bf16.msra.mxu0 %v4034
    %5808 = vmatprep.subr.bf16.mxu0 0
    %5809 = vmatpush1.bf16.msra.mxu0 %v4035
    %5810 = vmatprep.subr.bf16.mxu0 0
    %5811 = vmatpush1.bf16.msra.mxu0 %v4036
    %5812 = vmatprep.subr.bf16.mxu0 0
    %5813 = vmatpush1.bf16.msra.mxu0 %v4037
    %5814 = vmatprep.subr.bf16.mxu0 0
    %5815 = vmatpush1.bf16.msra.mxu0 %v4038
    %5816 = vmatprep.subr.bf16.mxu0 0
    %5817 = vmatpush1.bf16.msra.mxu0 %v4039
    %5818 = vmatprep.subr.bf16.mxu0 0
    %5819 = vmatpush1.bf16.msra.mxu0 %v4040
    %5820 = vmatprep.subr.bf16.mxu0 0
    %5821 = vmatpush1.bf16.msra.mxu0 %v4041
    %5822 = vmatprep.subr.bf16.mxu0 0
    %5823 = vmatpush1.bf16.msra.mxu0 %v4042
    %5824 = vmatprep.subr.bf16.mxu0 0
    %5825 = vmatpush1.bf16.msra.mxu0 %v4043
    %5826 = vmatprep.subr.bf16.mxu0 0
    %5827 = vmatpush1.bf16.msra.mxu0 %v4044
    %5828 = vmatprep.subr.bf16.mxu0 0
    %5829 = vmatpush1.bf16.msra.mxu0 %v4045
    %5830 = vmatprep.mubr.bf16.mxu0 %v456
    %5831 = vmatmul.mubr.bf16.gmra.mrb[0].mxu0 %v455
    %v5832 = vpop.f32.mrb[0].mxu0
    %v5833 = vadd.f32 %v5793, %v5832
    %v5834 = vpop.f32.mrb[0].mxu0
    %v5835 = vpop.f32.mrb[0].mxu0
    %v5836 = vpop.f32.mrb[0].mxu0
    %5837 = vdwg.mxu0
    %v5838 = vmax.f32 %v5833, 0.0
    %v5839 = vpack.c.bf16 %v5838, %v5838
    %v5840 = vld [vmem:[%s2] sm:$0xf]
    %v5841 = vld [vmem:[%s2 + $0x4] sm:$0xf]
    %v5842 = vld [vmem:[%s2 + $0x8] sm:$0xf]
    %v5843 = vld [vmem:[%s2 + $0xc] sm:$0xf]
    %v5844 = vld [vmem:[%s5 + $0x1] sm:$0x1]
    %v5845 = vlaneseq
    %v5846 = vshrl.u32 %v5845, 7
    %v5847 = vsub.s32 0, %v5846
    %v5848 = vrot.slane %v5844, %v5847
    %v5853 = vunpack.c.l.b16 %v5840
    %v5854 = vunpack.c.l.b16 %v5841
    %v5855 = vunpack.c.l.b16 %v5842
    %v5856 = vunpack.c.l.b16 %v5843
    %v5857 = vpack.c.b16 %v5854, %v5853
    %v5858 = vpack.c.b16 %v5856, %v5855
    %vm5861 = vcmask 261120
    %v5863 = vsel %vm5861, %v5839, 0
    %5865 = vmatprep.subr.bf16.mxu0 0
    %5866 = vmatpush1.bf16.msra.mxu0 %v5857
    %5867 = vmatprep.subr.bf16.mxu0 0
    %5868 = vmatpush1.bf16.msra.mxu0 %v5858
    %5869 = vmatprep.subr.bf16.mxu0 0
    %5870 = vmatpush1.bf16.msra.mxu0 0
    %5871 = vmatprep.subr.bf16.mxu0 0
    %5872 = vmatpush1.bf16.msra.mxu0 0
    %5873 = vmatprep.subr.bf16.mxu0 0
    %5874 = vmatpush1.bf16.msra.mxu0 0
    %5875 = vmatprep.subr.bf16.mxu0 0
    %5876 = vmatpush1.bf16.msra.mxu0 0
    %5877 = vmatprep.subr.bf16.mxu0 0
    %5878 = vmatpush1.bf16.msra.mxu0 0
    %5879 = vmatprep.subr.bf16.mxu0 0
    %5880 = vmatpush1.bf16.msra.mxu0 0
    %5881 = vmatprep.subr.bf16.mxu0 0
    %5882 = vmatpush1.bf16.msra.mxu0 0
    %5883 = vmatprep.subr.bf16.mxu0 0
    %5884 = vmatpush1.bf16.msra.mxu0 0
    %5885 = vmatprep.subr.bf16.mxu0 0
    %5886 = vmatpush1.bf16.msra.mxu0 0
    %5887 = vmatprep.subr.bf16.mxu0 0
    %5888 = vmatpush1.bf16.msra.mxu0 0
    %5889 = vmatprep.subr.bf16.mxu0 0
    %5890 = vmatpush1.bf16.msra.mxu0 0
    %5891 = vmatprep.subr.bf16.mxu0 0
    %5892 = vmatpush1.bf16.msra.mxu0 0
    %5893 = vmatprep.subr.bf16.mxu0 0
    %5894 = vmatpush1.bf16.msra.mxu0 0
    %5895 = vmatprep.subr.bf16.mxu0 0
    %5896 = vmatpush1.bf16.msra.mxu0 0
    %5897 = vmatprep.mubr.bf16.mxu0 0
    %5898 = vmatmul.mubr.bf16.gmra.mrb[0].mxu0 %v5863
    %v5899 = vpop.f32.mrb[0].mxu0
    %v5900 = vadd.f32 %v5848, %v5899
    %v5901 = vpop.f32.mrb[0].mxu0
    %v5902 = vpop.f32.mrb[0].mxu0
    %v5903 = vpop.f32.mrb[0].mxu0
    %5904 = vdwg.mxu0
    %v5905 = vmax.f32 %v5900, 0.0
    %v5906 = vpack.c.bf16 %v5905, %v5905
    %v5907 = vld [vmem:[%s3] sm:$0xf]
    %v5908 = vld [vmem:[%s3 + $0x4] sm:$0xf]
    %v5909 = vld [vmem:[%s3 + $0x8] sm:$0xf]
    %v5910 = vld [vmem:[%s3 + $0xc] sm:$0xf]
    %v5911 = vld [vmem:[%s5 + $0x2] sm:$0x1]
    %v5912 = vlaneseq
    %v5913 = vshrl.u32 %v5912, 7
    %v5914 = vsub.s32 0, %v5913
    %v5915 = vrot.slane %v5911, %v5914
    %v5920 = vunpack.c.l.b16 %v5907
    %v5921 = vunpack.c.l.b16 %v5908
    %v5922 = vunpack.c.l.b16 %v5909
    %v5923 = vunpack.c.l.b16 %v5910
    %v5924 = vpack.c.b16 %v5921, %v5920
    %v5925 = vpack.c.b16 %v5923, %v5922
    %v5929 = vsel %vm5861, %v5906, 0
    %5931 = vmatprep.subr.bf16.mxu0 0
    %5932 = vmatpush1.bf16.msra.mxu0 %v5924
    %5933 = vmatprep.subr.bf16.mxu0 0
    %5934 = vmatpush1.bf16.msra.mxu0 %v5925
    %5935 = vmatprep.subr.bf16.mxu0 0
    %5936 = vmatpush1.bf16.msra.mxu0 0
    %5937 = vmatprep.subr.bf16.mxu0 0
    %5938 = vmatpush1.bf16.msra.mxu0 0
    %5939 = vmatprep.subr.bf16.mxu0 0
    %5940 = vmatpush1.bf16.msra.mxu0 0
    %5941 = vmatprep.subr.bf16.mxu0 0
    %5942 = vmatpush1.bf16.msra.mxu0 0
    %5943 = vmatprep.subr.bf16.mxu0 0
    %5944 = vmatpush1.bf16.msra.mxu0 0
    %5945 = vmatprep.subr.bf16.mxu0 0
    %5946 = vmatpush1.bf16.msra.mxu0 0
    %5947 = vmatprep.subr.bf16.mxu0 0
    %5948 = vmatpush1.bf16.msra.mxu0 0
    %5949 = vmatprep.subr.bf16.mxu0 0
    %5950 = vmatpush1.bf16.msra.mxu0 0
    %5951 = vmatprep.subr.bf16.mxu0 0
    %5952 = vmatpush1.bf16.msra.mxu0 0
    %5953 = vmatprep.subr.bf16.mxu0 0
    %5954 = vmatpush1.bf16.msra.mxu0 0
    %5955 = vmatprep.subr.bf16.mxu0 0
    %5956 = vmatpush1.bf16.msra.mxu0 0
    %5957 = vmatprep.subr.bf16.mxu0 0
    %5958 = vmatpush1.bf16.msra.mxu0 0
    %5959 = vmatprep.subr.bf16.mxu0 0
    %5960 = vmatpush1.bf16.msra.mxu0 0
    %5961 = vmatprep.subr.bf16.mxu0 0
    %5962 = vmatpush1.bf16.msra.mxu0 0
    %5963 = vmatprep.mubr.bf16.mxu0 0
    %5964 = vmatmul.mubr.bf16.gmra.mrb[0].mxu0 %v5929
    %v5965 = vpop.f32.mrb[0].mxu0
    %v5966 = vadd.f32 %v5915, %v5965
    %v5967 = vpop.f32.mrb[0].mxu0
    %v5968 = vpop.f32.mrb[0].mxu0
    %v5969 = vpop.f32.mrb[0].mxu0
    %5970 = vdwg.mxu0
    %v5971 = vmax.f32 %v5966, 0.0
    %v5972 = vpack.c.bf16 %v5971, %v5971
    %v5973 = vld [vmem:[%s4] sm:$0xf]
    %v5974 = vld [vmem:[%s4 + $0x4] sm:$0xf]
    %v5975 = vld [vmem:[%s4 + $0x8] sm:$0xf]
    %v5976 = vld [vmem:[%s4 + $0xc] sm:$0xf]
    %v5977 = vld [vmem:[%s5 + $0x3] sm:$0x1]
    %v5978 = vlaneseq
    %v5979 = vshrl.u32 %v5978, 7
    %v5980 = vsub.s32 0, %v5979
    %v5981 = vrot.slane %v5977, %v5980
    %v5986 = vunpack.c.l.b16 %v5973
    %v5987 = vunpack.c.l.b16 %v5974
    %v5988 = vunpack.c.l.b16 %v5975
    %v5989 = vunpack.c.l.b16 %v5976
    %v5990 = vpack.c.b16 %v5987, %v5986
    %v5991 = vpack.c.b16 %v5989, %v5988
    %v5995 = vsel %vm5861, %v5972, 0
    %5997 = vmatprep.subr.bf16.mxu0 0
    %5998 = vmatpush1.bf16.msra.mxu0 %v5990
    %5999 = vmatprep.subr.bf16.mxu0 0
    %6000 = vmatpush1.bf16.msra.mxu0 %v5991
    %6001 = vmatprep.subr.bf16.mxu0 0
    %6002 = vmatpush1.bf16.msra.mxu0 0
    %6003 = vmatprep.subr.bf16.mxu0 0
    %6004 = vmatpush1.bf16.msra.mxu0 0
    %6005 = vmatprep.subr.bf16.mxu0 0
    %6006 = vmatpush1.bf16.msra.mxu0 0
    %6007 = vmatprep.subr.bf16.mxu0 0
    %6008 = vmatpush1.bf16.msra.mxu0 0
    %6009 = vmatprep.subr.bf16.mxu0 0
    %6010 = vmatpush1.bf16.msra.mxu0 0
    %6011 = vmatprep.subr.bf16.mxu0 0
    %6012 = vmatpush1.bf16.msra.mxu0 0
    %6013 = vmatprep.subr.bf16.mxu0 0
    %6014 = vmatpush1.bf16.msra.mxu0 0
    %6015 = vmatprep.subr.bf16.mxu0 0
    %6016 = vmatpush1.bf16.msra.mxu0 0
    %6017 = vmatprep.subr.bf16.mxu0 0
    %6018 = vmatpush1.bf16.msra.mxu0 0
    %6019 = vmatprep.subr.bf16.mxu0 0
    %6020 = vmatpush1.bf16.msra.mxu0 0
    %6021 = vmatprep.subr.bf16.mxu0 0
    %6022 = vmatpush1.bf16.msra.mxu0 0
    %6023 = vmatprep.subr.bf16.mxu0 0
    %6024 = vmatpush1.bf16.msra.mxu0 0
    %6025 = vmatprep.subr.bf16.mxu0 0
    %6026 = vmatpush1.bf16.msra.mxu0 0
    %6027 = vmatprep.subr.bf16.mxu0 0
    %6028 = vmatpush1.bf16.msra.mxu0 0
    %6029 = vmatprep.mubr.bf16.mxu0 0
    %6030 = vmatmul.mubr.bf16.gmra.mrb[0].mxu0 %v5995
    %v6031 = vpop.f32.mrb[0].mxu0
    %v6032 = vadd.f32 %v5981, %v6031
    %v6033 = vpop.f32.mrb[0].mxu0
    %v6034 = vpop.f32.mrb[0].mxu0
    %v6035 = vpop.f32.mrb[0].mxu0
    %6036 = vdwg.mxu0
    %6037 = vst [vmem:[#allocation2] sm:$0x3] %v6032
    // Predicated region
    $region26: #{tpu_custom_call.1} parent=1 // pred_check
      _
    $region27: #{tpu_custom_call.1} parent=1 // pred_check_branch
      %6039 = sbr.rel (0) target = $region29
    $region28: #{tpu_custom_call.1} parent=1 // pred_region
      %s6041 = ssub.s32 32, 32
      %6042 = vsyncadd [#allocation3], %s6041
      %s6044 = sshll.u32 [#allocation2], 4
      %s6045 = int_to_ptr.vmem [resolvable:$true] %s6044
      %6047 = dma.vmem_to_hbm [thread:$0]  %s6045, 32, %s6, [#allocation3]
    $region29: #{tpu_custom_call.1} parent=1 // pred_fallthru
      _
    // Predicated region
    $region30: #{tpu_custom_call.1} parent=1 // pred_check
      _
    $region31: #{tpu_custom_call.1} parent=1 // pred_check_branch
      %6049 = sbr.rel (0) target = $region33
    $region32: #{tpu_custom_call.1} parent=1 // pred_region
      %6050 = dma.done [#allocation3], 32
    $region33: #{tpu_custom_call.1} parent=1 // pred_fallthru
      _
    %6051 = vsyncpa [#allocation3], 1

</llo_original>
